<compile_context>
chip_gen: v7x
topology: tpu7x:2x2x1
jax: 0.10.0
libtpu: 0.0.40
codegen_flags: <defaults>
</compile_context>

<pallas_src>
import jax
import jax.numpy as jnp
from jax.experimental import pallas as pl
from jax.experimental.pallas import tpu as pltpu

# ---------------------------------------------------------------------------
# Model hyper-parameters (small, consistent with a multiple-choice transformer)
# ---------------------------------------------------------------------------
BATCH = 2
NUM_CHOICES = 4
SEQ = 8
HIDDEN = 32
NUM_HEADS = 2
HEAD_DIM = HIDDEN // NUM_HEADS
FFN = 64
VOCAB = 128
TYPE_VOCAB = 2
NUM_LAYERS = 2
LN_EPS = 1e-12

# bf16 weight-slab lane offsets (128-aligned segments => no lane rotates).
_QKV_OFF = 0            # (HIDDEN, 3*HIDDEN)  fused Q|K|V (Q pre-scaled)
_WO_OFF = 128           # (HIDDEN, HIDDEN)    attention output projection
_W1_OFF = 256           # (HIDDEN, FFN)       FFN up-projection
_WSLAB_LANES = 384


def _layernorm(x, gamma, beta):
    mu = jnp.mean(x, axis=-1, keepdims=True)
    var = jnp.mean((x - mu) ** 2, axis=-1, keepdims=True)
    return (x - mu) * jax.lax.rsqrt(var + LN_EPS) * gamma + beta


# ---------------------------------------------------------------------------
# Single fused kernel: embed-LN -> NUM_LAYERS encoder layers -> pool -> classify
# ---------------------------------------------------------------------------
def fused_mc_kernel(emb_ref, mask_ref, wA_ref, w2_ref, wp_ref, vec_ref,
                    misc_ref, logits_ref):
    bs, hidden = emb_ref.shape          # (B*S, H) = (64, 32)
    nseq, seq = mask_ref.shape          # (B, S)   = (8, 8)

    # Misc f32 tile: embedding LN, pooler bias, classifier row/bias.
    misc = misc_ref[...]                              # (8, 128)
    emb_g = misc[0:1, 0:HIDDEN]
    emb_b = misc[1:2, 0:HIDDEN]
    pool_b = misc[2:3, 0:HIDDEN]
    cls_w = misc[3:4, 0:HIDDEN]
    cls_b = misc[4:5, 0:1]

    # Embedding LayerNorm (f32 elementwise).
    x = _layernorm(emb_ref[...], emb_g, emb_b)        # (B*S, H) f32

    # Additive attention mask, broadcast ONCE to the full per-head score shape.
    neg = (1.0 - mask_ref[...]) * jnp.float32(-1e9)   # (B, S)
    neg_bias = jnp.broadcast_to(neg.reshape(nseq, 1, seq),
                                (nseq, seq, seq))     # (B, S, S) f32

    for l in range(NUM_LAYERS):                       # static unroll
        vec = vec_ref[l]                              # (8, 128) f32 bias/LN tile
        b_qkv = vec[0:1, 0:3 * HIDDEN]
        b_o = vec[1:2, 0:HIDDEN]
        ln1_g = vec[2:3, 0:HIDDEN]
        ln1_b = vec[3:4, 0:HIDDEN]
        b_1 = vec[4:5, 0:FFN]
        b_2 = vec[5:6, 0:HIDDEN]
        ln2_g = vec[6:7, 0:HIDDEN]
        ln2_b = vec[7:8, 0:HIDDEN]

        # Fused QKV: ONE matmul per layer (Q columns already carry the
        # 1/sqrt(head_dim) attention scale).
        x_bf = x.astype(jnp.bfloat16)
        qkv = jnp.dot(x_bf, wA_ref[l, :, _QKV_OFF:_QKV_OFF + 3 * HIDDEN],
                      preferred_element_type=jnp.float32) + b_qkv   # (64, 96)
        qkv3 = qkv.reshape(nseq, seq, 3 * HIDDEN)                   # (8, 8, 96)

        # Per-head attention with whole-batch (single batch dim) einsums;
        # heads are merged before a single output projection.
        ctx_heads = []
        for h in range(NUM_HEADS):                    # static unroll
            lo = h * HEAD_DIM
            qh = qkv3[..., lo:lo + HEAD_DIM].astype(jnp.bfloat16)
            kh = qkv3[..., HIDDEN + lo:HIDDEN + lo + HEAD_DIM].astype(jnp.bfloat16)
            vh = qkv3[..., 2 * HIDDEN + lo:2 * HIDDEN + lo + HEAD_DIM].astype(jnp.bfloat16)
            s = jnp.einsum('bqd,bkd->bqk', qh, kh,
                           preferred_element_type=jnp.float32) + neg_bias
            s = s - jnp.max(s, axis=-1, keepdims=True)
            p = jnp.exp(s)
            p = p / jnp.sum(p, axis=-1, keepdims=True)              # f32 softmax
            ctx_heads.append(
                jnp.einsum('bqk,bkd->bqd', p.astype(jnp.bfloat16), vh,
                           preferred_element_type=jnp.float32))     # (B, S, hd)

        ctx = jnp.concatenate(ctx_heads, axis=-1).reshape(bs, hidden)  # (64, 32)
        attn = jnp.dot(ctx.astype(jnp.bfloat16),
                       wA_ref[l, :, _WO_OFF:_WO_OFF + HIDDEN],
                       preferred_element_type=jnp.float32) + b_o

        h1 = _layernorm(x + attn, ln1_g, ln1_b)

        f = jnp.dot(h1.astype(jnp.bfloat16),
                    wA_ref[l, :, _W1_OFF:_W1_OFF + FFN],
                    preferred_element_type=jnp.float32) + b_1
        # TODO(synk): HF BERT's default activation is the exact (erf) gelu;
        # the tanh approximation is used here for a clean EUP lowering.
        f = jax.nn.gelu(f, approximate=True)
        f = jnp.dot(f.astype(jnp.bfloat16), w2_ref[l],
                    preferred_element_type=jnp.float32) + b_2
        x = _layernorm(h1 + f, ln2_g, ln2_b)

    # [CLS] rows: first token of every sequence (sublane 0 of each 8-row tile).
    cls = x.reshape(nseq, seq, hidden)[:, 0, :]                     # (B, H)
    pooled = jnp.tanh(
        jnp.dot(cls.astype(jnp.bfloat16), wp_ref[...],
                preferred_element_type=jnp.float32) + pool_b)       # (B, H)
    # Classifier (output dim 1): VPU multiply + lane reduce — no MXU, no .T.
    logits_ref[...] = jnp.sum(pooled * cls_w, axis=-1, keepdims=True) + cls_b


def fused_forward(emb2d, mask, p):
    nseq = mask.shape[0]
    args = (emb2d, mask, p["w_slab"], p["w2"], p["pooler_w"],
            p["vec_slab"], p["misc"])
    vmem = pl.BlockSpec(memory_space=pltpu.MemorySpace.VMEM)
    # No grid: one invocation, everything resident in VMEM, 7 input DMAs,
    # no per-grid-step / per-layer launch overhead.
    return pl.pallas_call(
        fused_mc_kernel,
        out_shape=jax.ShapeDtypeStruct((nseq, 1), jnp.float32),
        in_specs=[vmem] * len(args),
        out_specs=vmem,
    )(*args)


# ---------------------------------------------------------------------------
# Parameter construction (deterministic, BERT-style init; weights packed)
# ---------------------------------------------------------------------------
def init_params(key):
    def dense(k, shape):
        return jax.random.normal(k, shape, jnp.float32) * 0.02

    L = NUM_LAYERS
    keys = jax.random.split(key, 11)
    scale = 1.0 / (HEAD_DIM ** 0.5)

    wq = dense(keys[3], (L, HIDDEN, HIDDEN)) * scale   # attn scale folded in
    wk = dense(keys[4], (L, HIDDEN, HIDDEN))
    wv = dense(keys[5], (L, HIDDEN, HIDDEN))
    wo = dense(keys[6], (L, HIDDEN, HIDDEN))
    w1 = dense(keys[7], (L, HIDDEN, FFN))
    w2 = dense(keys[8], (L, FFN, HIDDEN))
    pooler_w = dense(keys[9], (HIDDEN, HIDDEN))
    cls_w = dense(keys[10], (1, HIDDEN))

    # bf16 weight slab, segments start at 128-aligned lane offsets.
    w_slab = jnp.zeros((L, HIDDEN, _WSLAB_LANES), jnp.float32)
    w_slab = w_slab.at[:, :, _QKV_OFF:_QKV_OFF + HIDDEN].set(wq)
    w_slab = w_slab.at[:, :, _QKV_OFF + HIDDEN:_QKV_OFF + 2 * HIDDEN].set(wk)
    w_slab = w_slab.at[:, :, _QKV_OFF + 2 * HIDDEN:_QKV_OFF + 3 * HIDDEN].set(wv)
    w_slab = w_slab.at[:, :, _WO_OFF:_WO_OFF + HIDDEN].set(wo)
    w_slab = w_slab.at[:, :, _W1_OFF:_W1_OFF + FFN].set(w1)

    # f32 per-layer bias/LN slab: one (8,128) tile per layer.
    # rows: 0=b_qkv 1=b_o 2=ln1_g 3=ln1_b 4=b1 5=b2 6=ln2_g 7=ln2_b
    vec_slab = jnp.zeros((L, 8, 128), jnp.float32)
    vec_slab = vec_slab.at[:, 2, 0:HIDDEN].set(1.0)    # ln1 gamma
    vec_slab = vec_slab.at[:, 6, 0:HIDDEN].set(1.0)    # ln2 gamma

    # f32 misc tile: rows 0=emb_ln_g 1=emb_ln_b 2=pooler_b 3=cls_w 4[0]=cls_b
    misc = jnp.zeros((8, 128), jnp.float32)
    misc = misc.at[0, 0:HIDDEN].set(1.0)
    misc = misc.at[3, 0:HIDDEN].set(cls_w[0])

    return {
        "word_emb": dense(keys[0], (VOCAB, HIDDEN)),
        "pos_emb": dense(keys[1], (SEQ, HIDDEN)),
        "type_emb": dense(keys[2], (TYPE_VOCAB, HIDDEN)),
        "w_slab": w_slab.astype(jnp.bfloat16),
        "w2": w2.astype(jnp.bfloat16),
        "pooler_w": pooler_w.astype(jnp.bfloat16),
        "vec_slab": vec_slab,
        "misc": misc,
    }


# ---------------------------------------------------------------------------
# Forward pass (mirrors AutoModelForMultipleChoice.forward, logits path)
# ---------------------------------------------------------------------------
@jax.jit
def multiple_choice_forward(params, input_ids, attention_mask, token_type_ids):
    batch, num_choices, seq = input_ids.shape
    nseq = batch * num_choices

    # Flatten (batch, choices, seq) -> (nseq, seq), like HF does.
    ids = input_ids.reshape(nseq, seq)
    mask = attention_mask.reshape(nseq, seq).astype(jnp.float32)
    types = token_type_ids.reshape(nseq, seq)

    # Embedding gather is glue (data-dependent row gather; left to XLA).
    emb = (jnp.take(params["word_emb"], ids, axis=0)
           + params["pos_emb"][None, :, :]
           + jnp.take(params["type_emb"], types, axis=0)).astype(jnp.float32)
    emb2d = emb.reshape(nseq * seq, HIDDEN)

    logits = fused_forward(emb2d, mask, params)       # (nseq, 1)
    # TODO(synk): HF also returns a cross-entropy loss when `labels` is given;
    # only the logits path is implemented here.
    return logits.reshape(batch, num_choices)


if __name__ == "__main__":
    key = jax.random.PRNGKey(0)
    pkey, dkey = jax.random.split(key)
    params = init_params(pkey)

    input_ids = jax.random.randint(dkey, (BATCH, NUM_CHOICES, SEQ), 0, VOCAB,
                                   dtype=jnp.int32)
    attention_mask = jnp.ones((BATCH, NUM_CHOICES, SEQ), jnp.int32)
    token_type_ids = jnp.zeros((BATCH, NUM_CHOICES, SEQ), jnp.int32)

    logits = multiple_choice_forward(params, input_ids, attention_mask,
                                     token_type_ids)
    jax.block_until_ready(logits)
    assert logits.shape == (BATCH, NUM_CHOICES)
    assert bool(jnp.all(jnp.isfinite(logits)))
    print("KERNEL_OK")
</pallas_src>

<mosaic_0001>
module attributes {stable_mosaic.version = 11 : i64} {
  func.func @fused_mc_kernel(%arg0: memref<64x32xf32, #tpu.memory_space<vmem>>, %arg1: memref<8x8xf32, #tpu.memory_space<vmem>>, %arg2: memref<2x32x384xbf16, #tpu.memory_space<vmem>>, %arg3: memref<2x64x32xbf16, #tpu.memory_space<vmem>>, %arg4: memref<32x32xbf16, #tpu.memory_space<vmem>>, %arg5: memref<2x8x128xf32, #tpu.memory_space<vmem>>, %arg6: memref<8x128xf32, #tpu.memory_space<vmem>>, %arg7: memref<8x1xf32, #tpu.memory_space<vmem>>) attributes {dimension_semantics = [], scalar_prefetch = 0 : i64, scratch_operands = 0 : i64, tpu.core_type = #tpu.core_type<tc>} {
    %c0 = arith.constant 0 : index
    %c0_0 = arith.constant 0 : index
    %0 = vector.load %arg6[%c0, %c0_0] : memref<8x128xf32, #tpu.memory_space<vmem>>, vector<8x128xf32>
    %1 = vector.extract_strided_slice %0 {offsets = [0, 0], sizes = [1, 32], strides = [1, 1]} : vector<8x128xf32> to vector<1x32xf32>
    %2 = vector.extract_strided_slice %0 {offsets = [1, 0], sizes = [1, 32], strides = [1, 1]} : vector<8x128xf32> to vector<1x32xf32>
    %3 = vector.extract_strided_slice %0 {offsets = [2, 0], sizes = [1, 32], strides = [1, 1]} : vector<8x128xf32> to vector<1x32xf32>
    %4 = vector.extract_strided_slice %0 {offsets = [3, 0], sizes = [1, 32], strides = [1, 1]} : vector<8x128xf32> to vector<1x32xf32>
    %5 = vector.extract_strided_slice %0 {offsets = [4, 0], sizes = [1, 1], strides = [1, 1]} : vector<8x128xf32> to vector<1x1xf32>
    %c0_1 = arith.constant 0 : index
    %c0_2 = arith.constant 0 : index
    %6 = vector.load %arg0[%c0_1, %c0_2] : memref<64x32xf32, #tpu.memory_space<vmem>>, vector<64x32xf32>
    %cst = arith.constant dense<0.000000e+00> : vector<64xf32>
    %7 = vector.multi_reduction <add>, %6, %cst [1] : vector<64x32xf32> to vector<64xf32>
    %8 = vector.shape_cast %7 : vector<64xf32> to vector<64x1xf32>
    %cst_3 = arith.constant 3.200000e+01 : f32
    %9 = vector.broadcast %cst_3 : f32 to vector<64x1xf32>
    %10 = arith.divf %8, %9 : vector<64x1xf32>
    %11 = vector.broadcast %10 : vector<64x1xf32> to vector<64x32xf32>
    %12 = arith.subf %6, %11 : vector<64x32xf32>
    %13 = arith.mulf %12, %12 : vector<64x32xf32>
    %cst_4 = arith.constant dense<0.000000e+00> : vector<64xf32>
    %14 = vector.multi_reduction <add>, %13, %cst_4 [1] : vector<64x32xf32> to vector<64xf32>
    %15 = vector.shape_cast %14 : vector<64xf32> to vector<64x1xf32>
    %cst_5 = arith.constant 3.200000e+01 : f32
    %16 = vector.broadcast %cst_5 : f32 to vector<64x1xf32>
    %17 = arith.divf %15, %16 : vector<64x1xf32>
    %18 = vector.broadcast %10 : vector<64x1xf32> to vector<64x32xf32>
    %19 = arith.subf %6, %18 : vector<64x32xf32>
    %cst_6 = arith.constant 9.99999996E-13 : f32
    %20 = vector.broadcast %cst_6 : f32 to vector<64x1xf32>
    %21 = arith.addf %17, %20 : vector<64x1xf32>
    %22 = math.rsqrt %21 : vector<64x1xf32>
    %23 = vector.broadcast %22 : vector<64x1xf32> to vector<64x32xf32>
    %24 = arith.mulf %19, %23 : vector<64x32xf32>
    %25 = vector.broadcast %1 : vector<1x32xf32> to vector<64x32xf32>
    %26 = arith.mulf %24, %25 : vector<64x32xf32>
    %27 = vector.broadcast %2 : vector<1x32xf32> to vector<64x32xf32>
    %28 = arith.addf %26, %27 : vector<64x32xf32>
    %c0_7 = arith.constant 0 : index
    %c0_8 = arith.constant 0 : index
    %29 = vector.load %arg1[%c0_7, %c0_8] : memref<8x8xf32, #tpu.memory_space<vmem>>, vector<8x8xf32>
    %cst_9 = arith.constant 1.000000e+00 : f32
    %30 = vector.broadcast %cst_9 : f32 to vector<8x8xf32>
    %31 = arith.subf %30, %29 : vector<8x8xf32>
    %cst_10 = arith.constant -1.000000e+09 : f32
    %32 = vector.broadcast %cst_10 : f32 to vector<8x8xf32>
    %33 = arith.mulf %31, %32 : vector<8x8xf32>
    %34 = vector.shape_cast %33 : vector<8x8xf32> to vector<8x1x8xf32>
    %35 = vector.shape_cast %34 : vector<8x1x8xf32> to vector<8x1x8xf32>
    %36 = vector.broadcast %35 : vector<8x1x8xf32> to vector<8x8x8xf32>
    %c0_11 = arith.constant 0 : index
    %c0_12 = arith.constant 0 : index
    %c0_13 = arith.constant 0 : index
    %37 = vector.load %arg5[%c0_11, %c0_12, %c0_13] : memref<2x8x128xf32, #tpu.memory_space<vmem>>, vector<1x8x128xf32>
    %38 = vector.shape_cast %37 : vector<1x8x128xf32> to vector<8x128xf32>
    %39 = vector.extract_strided_slice %38 {offsets = [0, 0], sizes = [1, 96], strides = [1, 1]} : vector<8x128xf32> to vector<1x96xf32>
    %40 = vector.extract_strided_slice %38 {offsets = [1, 0], sizes = [1, 32], strides = [1, 1]} : vector<8x128xf32> to vector<1x32xf32>
    %41 = vector.extract_strided_slice %38 {offsets = [2, 0], sizes = [1, 32], strides = [1, 1]} : vector<8x128xf32> to vector<1x32xf32>
    %42 = vector.extract_strided_slice %38 {offsets = [3, 0], sizes = [1, 32], strides = [1, 1]} : vector<8x128xf32> to vector<1x32xf32>
    %43 = vector.extract_strided_slice %38 {offsets = [4, 0], sizes = [1, 64], strides = [1, 1]} : vector<8x128xf32> to vector<1x64xf32>
    %44 = vector.extract_strided_slice %38 {offsets = [5, 0], sizes = [1, 32], strides = [1, 1]} : vector<8x128xf32> to vector<1x32xf32>
    %45 = vector.extract_strided_slice %38 {offsets = [6, 0], sizes = [1, 32], strides = [1, 1]} : vector<8x128xf32> to vector<1x32xf32>
    %46 = vector.extract_strided_slice %38 {offsets = [7, 0], sizes = [1, 32], strides = [1, 1]} : vector<8x128xf32> to vector<1x32xf32>
    %47 = arith.truncf %28 : vector<64x32xf32> to vector<64x32xbf16>
    %c0_14 = arith.constant 0 : index
    %c0_15 = arith.constant 0 : index
    %c0_16 = arith.constant 0 : index
    %48 = vector.load %arg2[%c0_14, %c0_15, %c0_16] : memref<2x32x384xbf16, #tpu.memory_space<vmem>>, vector<1x32x96xbf16>
    %49 = vector.shape_cast %48 : vector<1x32x96xbf16> to vector<32x96xbf16>
    %cst_17 = arith.constant dense<0.000000e+00> : vector<64x96xf32>
    %50 = tpu.matmul %47, %49, %cst_17 {dimension_numbers = #tpu.dot_dimension_numbers<[1], [0], [0], [1], [0, 0, 1, 1], [], []>} : vector<64x32xbf16>, vector<32x96xbf16>, vector<64x96xf32> -> vector<64x96xf32>
    %51 = vector.broadcast %39 : vector<1x96xf32> to vector<64x96xf32>
    %52 = arith.addf %50, %51 : vector<64x96xf32>
    %53 = vector.shape_cast %52 : vector<64x96xf32> to vector<8x8x96xf32>
    %54 = vector.extract_strided_slice %53 {offsets = [0, 0, 0], sizes = [8, 8, 16], strides = [1, 1, 1]} : vector<8x8x96xf32> to vector<8x8x16xf32>
    %55 = arith.truncf %54 : vector<8x8x16xf32> to vector<8x8x16xbf16>
    %56 = vector.extract_strided_slice %53 {offsets = [0, 0, 32], sizes = [8, 8, 16], strides = [1, 1, 1]} : vector<8x8x96xf32> to vector<8x8x16xf32>
    %57 = arith.truncf %56 : vector<8x8x16xf32> to vector<8x8x16xbf16>
    %58 = vector.extract_strided_slice %53 {offsets = [0, 0, 64], sizes = [8, 8, 16], strides = [1, 1, 1]} : vector<8x8x96xf32> to vector<8x8x16xf32>
    %59 = arith.truncf %58 : vector<8x8x16xf32> to vector<8x8x16xbf16>
    "tpu.trace_start"() <{level = 10 : i32, message = "bqd,bkd->bqk"}> : () -> ()
    %cst_18 = arith.constant dense<0.000000e+00> : vector<8x8x8xf32>
    %60 = tpu.matmul %55, %57, %cst_18 {dimension_numbers = #tpu.dot_dimension_numbers<[2], [2], [1], [1], [0, 0, 0, 1, 1, 1], [0], [0]>} : vector<8x8x16xbf16>, vector<8x8x16xbf16>, vector<8x8x8xf32> -> vector<8x8x8xf32>
    "tpu.trace_stop"() : () -> ()
    %61 = arith.addf %60, %36 : vector<8x8x8xf32>
    %cst_19 = arith.constant dense<0xFF800000> : vector<8x8xf32>
    %62 = vector.multi_reduction <maximumf>, %61, %cst_19 [2] : vector<8x8x8xf32> to vector<8x8xf32>
    %63 = vector.shape_cast %62 : vector<8x8xf32> to vector<8x8x1xf32>
    %64 = vector.broadcast %63 : vector<8x8x1xf32> to vector<8x8x8xf32>
    %65 = arith.subf %61, %64 : vector<8x8x8xf32>
    %66 = math.exp %65 : vector<8x8x8xf32>
    %cst_20 = arith.constant dense<0.000000e+00> : vector<8x8xf32>
    %67 = vector.multi_reduction <add>, %66, %cst_20 [2] : vector<8x8x8xf32> to vector<8x8xf32>
    %68 = vector.shape_cast %67 : vector<8x8xf32> to vector<8x8x1xf32>
    %69 = vector.broadcast %68 : vector<8x8x1xf32> to vector<8x8x8xf32>
    %70 = arith.divf %66, %69 : vector<8x8x8xf32>
    %71 = arith.truncf %70 : vector<8x8x8xf32> to vector<8x8x8xbf16>
    "tpu.trace_start"() <{level = 10 : i32, message = "bqk,bkd->bqd"}> : () -> ()
    %cst_21 = arith.constant dense<0.000000e+00> : vector<8x8x16xf32>
    %72 = tpu.matmul %71, %59, %cst_21 {dimension_numbers = #tpu.dot_dimension_numbers<[2], [1], [1], [2], [0, 0, 0, 1, 1, 2], [0], [0]>} : vector<8x8x8xbf16>, vector<8x8x16xbf16>, vector<8x8x16xf32> -> vector<8x8x16xf32>
    "tpu.trace_stop"() : () -> ()
    %73 = vector.extract_strided_slice %53 {offsets = [0, 0, 16], sizes = [8, 8, 16], strides = [1, 1, 1]} : vector<8x8x96xf32> to vector<8x8x16xf32>
    %74 = arith.truncf %73 : vector<8x8x16xf32> to vector<8x8x16xbf16>
    %75 = vector.extract_strided_slice %53 {offsets = [0, 0, 48], sizes = [8, 8, 16], strides = [1, 1, 1]} : vector<8x8x96xf32> to vector<8x8x16xf32>
    %76 = arith.truncf %75 : vector<8x8x16xf32> to vector<8x8x16xbf16>
    %77 = vector.extract_strided_slice %53 {offsets = [0, 0, 80], sizes = [8, 8, 16], strides = [1, 1, 1]} : vector<8x8x96xf32> to vector<8x8x16xf32>
    %78 = arith.truncf %77 : vector<8x8x16xf32> to vector<8x8x16xbf16>
    "tpu.trace_start"() <{level = 10 : i32, message = "bqd,bkd->bqk"}> : () -> ()
    %cst_22 = arith.constant dense<0.000000e+00> : vector<8x8x8xf32>
    %79 = tpu.matmul %74, %76, %cst_22 {dimension_numbers = #tpu.dot_dimension_numbers<[2], [2], [1], [1], [0, 0, 0, 1, 1, 1], [0], [0]>} : vector<8x8x16xbf16>, vector<8x8x16xbf16>, vector<8x8x8xf32> -> vector<8x8x8xf32>
    "tpu.trace_stop"() : () -> ()
    %80 = arith.addf %79, %36 : vector<8x8x8xf32>
    %cst_23 = arith.constant dense<0xFF800000> : vector<8x8xf32>
    %81 = vector.multi_reduction <maximumf>, %80, %cst_23 [2] : vector<8x8x8xf32> to vector<8x8xf32>
    %82 = vector.shape_cast %81 : vector<8x8xf32> to vector<8x8x1xf32>
    %83 = vector.broadcast %82 : vector<8x8x1xf32> to vector<8x8x8xf32>
    %84 = arith.subf %80, %83 : vector<8x8x8xf32>
    %85 = math.exp %84 : vector<8x8x8xf32>
    %cst_24 = arith.constant dense<0.000000e+00> : vector<8x8xf32>
    %86 = vector.multi_reduction <add>, %85, %cst_24 [2] : vector<8x8x8xf32> to vector<8x8xf32>
    %87 = vector.shape_cast %86 : vector<8x8xf32> to vector<8x8x1xf32>
    %88 = vector.broadcast %87 : vector<8x8x1xf32> to vector<8x8x8xf32>
    %89 = arith.divf %85, %88 : vector<8x8x8xf32>
    %90 = arith.truncf %89 : vector<8x8x8xf32> to vector<8x8x8xbf16>
    "tpu.trace_start"() <{level = 10 : i32, message = "bqk,bkd->bqd"}> : () -> ()
    %cst_25 = arith.constant dense<0.000000e+00> : vector<8x8x16xf32>
    %91 = tpu.matmul %90, %78, %cst_25 {dimension_numbers = #tpu.dot_dimension_numbers<[2], [1], [1], [2], [0, 0, 0, 1, 1, 2], [0], [0]>} : vector<8x8x8xbf16>, vector<8x8x16xbf16>, vector<8x8x16xf32> -> vector<8x8x16xf32>
    "tpu.trace_stop"() : () -> ()
    %92 = tpu.concatenate %72, %91 in 2 : vector<8x8x16xf32>, vector<8x8x16xf32> -> vector<8x8x32xf32>
    %93 = vector.shape_cast %92 : vector<8x8x32xf32> to vector<64x32xf32>
    %94 = arith.truncf %93 : vector<64x32xf32> to vector<64x32xbf16>
    %c0_26 = arith.constant 0 : index
    %c0_27 = arith.constant 0 : index
    %c128 = arith.constant 128 : index
    %95 = vector.load %arg2[%c0_26, %c0_27, %c128] : memref<2x32x384xbf16, #tpu.memory_space<vmem>>, vector<1x32x32xbf16>
    %96 = vector.shape_cast %95 : vector<1x32x32xbf16> to vector<32x32xbf16>
    %cst_28 = arith.constant dense<0.000000e+00> : vector<64x32xf32>
    %97 = tpu.matmul %94, %96, %cst_28 {dimension_numbers = #tpu.dot_dimension_numbers<[1], [0], [0], [1], [0, 0, 1, 1], [], []>} : vector<64x32xbf16>, vector<32x32xbf16>, vector<64x32xf32> -> vector<64x32xf32>
    %98 = vector.broadcast %40 : vector<1x32xf32> to vector<64x32xf32>
    %99 = arith.addf %97, %98 : vector<64x32xf32>
    %100 = arith.addf %28, %99 : vector<64x32xf32>
    %cst_29 = arith.constant dense<0.000000e+00> : vector<64xf32>
    %101 = vector.multi_reduction <add>, %100, %cst_29 [1] : vector<64x32xf32> to vector<64xf32>
    %102 = vector.shape_cast %101 : vector<64xf32> to vector<64x1xf32>
    %cst_30 = arith.constant 3.200000e+01 : f32
    %103 = vector.broadcast %cst_30 : f32 to vector<64x1xf32>
    %104 = arith.divf %102, %103 : vector<64x1xf32>
    %105 = vector.broadcast %104 : vector<64x1xf32> to vector<64x32xf32>
    %106 = arith.subf %100, %105 : vector<64x32xf32>
    %107 = arith.mulf %106, %106 : vector<64x32xf32>
    %cst_31 = arith.constant dense<0.000000e+00> : vector<64xf32>
    %108 = vector.multi_reduction <add>, %107, %cst_31 [1] : vector<64x32xf32> to vector<64xf32>
    %109 = vector.shape_cast %108 : vector<64xf32> to vector<64x1xf32>
    %cst_32 = arith.constant 3.200000e+01 : f32
    %110 = vector.broadcast %cst_32 : f32 to vector<64x1xf32>
    %111 = arith.divf %109, %110 : vector<64x1xf32>
    %112 = vector.broadcast %104 : vector<64x1xf32> to vector<64x32xf32>
    %113 = arith.subf %100, %112 : vector<64x32xf32>
    %cst_33 = arith.constant 9.99999996E-13 : f32
    %114 = vector.broadcast %cst_33 : f32 to vector<64x1xf32>
    %115 = arith.addf %111, %114 : vector<64x1xf32>
    %116 = math.rsqrt %115 : vector<64x1xf32>
    %117 = vector.broadcast %116 : vector<64x1xf32> to vector<64x32xf32>
    %118 = arith.mulf %113, %117 : vector<64x32xf32>
    %119 = vector.broadcast %41 : vector<1x32xf32> to vector<64x32xf32>
    %120 = arith.mulf %118, %119 : vector<64x32xf32>
    %121 = vector.broadcast %42 : vector<1x32xf32> to vector<64x32xf32>
    %122 = arith.addf %120, %121 : vector<64x32xf32>
    %123 = arith.truncf %122 : vector<64x32xf32> to vector<64x32xbf16>
    %c0_34 = arith.constant 0 : index
    %c0_35 = arith.constant 0 : index
    %c256 = arith.constant 256 : index
    %124 = vector.load %arg2[%c0_34, %c0_35, %c256] : memref<2x32x384xbf16, #tpu.memory_space<vmem>>, vector<1x32x64xbf16>
    %125 = vector.shape_cast %124 : vector<1x32x64xbf16> to vector<32x64xbf16>
    %cst_36 = arith.constant dense<0.000000e+00> : vector<64x64xf32>
    %126 = tpu.matmul %123, %125, %cst_36 {dimension_numbers = #tpu.dot_dimension_numbers<[1], [0], [0], [1], [0, 0, 1, 1], [], []>} : vector<64x32xbf16>, vector<32x64xbf16>, vector<64x64xf32> -> vector<64x64xf32>
    %127 = vector.broadcast %43 : vector<1x64xf32> to vector<64x64xf32>
    %128 = arith.addf %126, %127 : vector<64x64xf32>
    %129 = arith.mulf %128, %128 : vector<64x64xf32>
    %130 = arith.mulf %128, %129 : vector<64x64xf32>
    %cst_37 = arith.constant 4.471500e-02 : f32
    %131 = vector.broadcast %cst_37 : f32 to vector<64x64xf32>
    %132 = arith.mulf %131, %130 : vector<64x64xf32>
    %133 = arith.addf %128, %132 : vector<64x64xf32>
    %cst_38 = arith.constant 0.797884583 : f32
    %134 = vector.broadcast %cst_38 : f32 to vector<64x64xf32>
    %135 = arith.mulf %134, %133 : vector<64x64xf32>
    %136 = math.tanh %135 : vector<64x64xf32>
    %cst_39 = arith.constant 1.000000e+00 : f32
    %137 = vector.broadcast %cst_39 : f32 to vector<64x64xf32>
    %138 = arith.addf %137, %136 : vector<64x64xf32>
    %cst_40 = arith.constant 5.000000e-01 : f32
    %139 = vector.broadcast %cst_40 : f32 to vector<64x64xf32>
    %140 = arith.mulf %139, %138 : vector<64x64xf32>
    %141 = arith.mulf %128, %140 : vector<64x64xf32>
    %142 = arith.truncf %141 : vector<64x64xf32> to vector<64x64xbf16>
    %c0_41 = arith.constant 0 : index
    %c0_42 = arith.constant 0 : index
    %c0_43 = arith.constant 0 : index
    %143 = vector.load %arg3[%c0_41, %c0_42, %c0_43] : memref<2x64x32xbf16, #tpu.memory_space<vmem>>, vector<1x64x32xbf16>
    %144 = vector.shape_cast %143 : vector<1x64x32xbf16> to vector<64x32xbf16>
    %cst_44 = arith.constant dense<0.000000e+00> : vector<64x32xf32>
    %145 = tpu.matmul %142, %144, %cst_44 {dimension_numbers = #tpu.dot_dimension_numbers<[1], [0], [0], [1], [0, 0, 1, 1], [], []>} : vector<64x64xbf16>, vector<64x32xbf16>, vector<64x32xf32> -> vector<64x32xf32>
    %146 = vector.broadcast %44 : vector<1x32xf32> to vector<64x32xf32>
    %147 = arith.addf %145, %146 : vector<64x32xf32>
    %148 = arith.addf %122, %147 : vector<64x32xf32>
    %cst_45 = arith.constant dense<0.000000e+00> : vector<64xf32>
    %149 = vector.multi_reduction <add>, %148, %cst_45 [1] : vector<64x32xf32> to vector<64xf32>
    %150 = vector.shape_cast %149 : vector<64xf32> to vector<64x1xf32>
    %cst_46 = arith.constant 3.200000e+01 : f32
    %151 = vector.broadcast %cst_46 : f32 to vector<64x1xf32>
    %152 = arith.divf %150, %151 : vector<64x1xf32>
    %153 = vector.broadcast %152 : vector<64x1xf32> to vector<64x32xf32>
    %154 = arith.subf %148, %153 : vector<64x32xf32>
    %155 = arith.mulf %154, %154 : vector<64x32xf32>
    %cst_47 = arith.constant dense<0.000000e+00> : vector<64xf32>
    %156 = vector.multi_reduction <add>, %155, %cst_47 [1] : vector<64x32xf32> to vector<64xf32>
    %157 = vector.shape_cast %156 : vector<64xf32> to vector<64x1xf32>
    %cst_48 = arith.constant 3.200000e+01 : f32
    %158 = vector.broadcast %cst_48 : f32 to vector<64x1xf32>
    %159 = arith.divf %157, %158 : vector<64x1xf32>
    %160 = vector.broadcast %152 : vector<64x1xf32> to vector<64x32xf32>
    %161 = arith.subf %148, %160 : vector<64x32xf32>
    %cst_49 = arith.constant 9.99999996E-13 : f32
    %162 = vector.broadcast %cst_49 : f32 to vector<64x1xf32>
    %163 = arith.addf %159, %162 : vector<64x1xf32>
    %164 = math.rsqrt %163 : vector<64x1xf32>
    %165 = vector.broadcast %164 : vector<64x1xf32> to vector<64x32xf32>
    %166 = arith.mulf %161, %165 : vector<64x32xf32>
    %167 = vector.broadcast %45 : vector<1x32xf32> to vector<64x32xf32>
    %168 = arith.mulf %166, %167 : vector<64x32xf32>
    %169 = vector.broadcast %46 : vector<1x32xf32> to vector<64x32xf32>
    %170 = arith.addf %168, %169 : vector<64x32xf32>
    %c1 = arith.constant 1 : index
    %c0_50 = arith.constant 0 : index
    %c0_51 = arith.constant 0 : index
    %171 = vector.load %arg5[%c1, %c0_50, %c0_51] : memref<2x8x128xf32, #tpu.memory_space<vmem>>, vector<1x8x128xf32>
    %172 = vector.shape_cast %171 : vector<1x8x128xf32> to vector<8x128xf32>
    %173 = vector.extract_strided_slice %172 {offsets = [0, 0], sizes = [1, 96], strides = [1, 1]} : vector<8x128xf32> to vector<1x96xf32>
    %174 = vector.extract_strided_slice %172 {offsets = [1, 0], sizes = [1, 32], strides = [1, 1]} : vector<8x128xf32> to vector<1x32xf32>
    %175 = vector.extract_strided_slice %172 {offsets = [2, 0], sizes = [1, 32], strides = [1, 1]} : vector<8x128xf32> to vector<1x32xf32>
    %176 = vector.extract_strided_slice %172 {offsets = [3, 0], sizes = [1, 32], strides = [1, 1]} : vector<8x128xf32> to vector<1x32xf32>
    %177 = vector.extract_strided_slice %172 {offsets = [4, 0], sizes = [1, 64], strides = [1, 1]} : vector<8x128xf32> to vector<1x64xf32>
    %178 = vector.extract_strided_slice %172 {offsets = [5, 0], sizes = [1, 32], strides = [1, 1]} : vector<8x128xf32> to vector<1x32xf32>
    %179 = vector.extract_strided_slice %172 {offsets = [6, 0], sizes = [1, 32], strides = [1, 1]} : vector<8x128xf32> to vector<1x32xf32>
    %180 = vector.extract_strided_slice %172 {offsets = [7, 0], sizes = [1, 32], strides = [1, 1]} : vector<8x128xf32> to vector<1x32xf32>
    %181 = arith.truncf %170 : vector<64x32xf32> to vector<64x32xbf16>
    %c1_52 = arith.constant 1 : index
    %c0_53 = arith.constant 0 : index
    %c0_54 = arith.constant 0 : index
    %182 = vector.load %arg2[%c1_52, %c0_53, %c0_54] : memref<2x32x384xbf16, #tpu.memory_space<vmem>>, vector<1x32x96xbf16>
    %183 = vector.shape_cast %182 : vector<1x32x96xbf16> to vector<32x96xbf16>
    %cst_55 = arith.constant dense<0.000000e+00> : vector<64x96xf32>
    %184 = tpu.matmul %181, %183, %cst_55 {dimension_numbers = #tpu.dot_dimension_numbers<[1], [0], [0], [1], [0, 0, 1, 1], [], []>} : vector<64x32xbf16>, vector<32x96xbf16>, vector<64x96xf32> -> vector<64x96xf32>
    %185 = vector.broadcast %173 : vector<1x96xf32> to vector<64x96xf32>
    %186 = arith.addf %184, %185 : vector<64x96xf32>
    %187 = vector.shape_cast %186 : vector<64x96xf32> to vector<8x8x96xf32>
    %188 = vector.extract_strided_slice %187 {offsets = [0, 0, 0], sizes = [8, 8, 16], strides = [1, 1, 1]} : vector<8x8x96xf32> to vector<8x8x16xf32>
    %189 = arith.truncf %188 : vector<8x8x16xf32> to vector<8x8x16xbf16>
    %190 = vector.extract_strided_slice %187 {offsets = [0, 0, 32], sizes = [8, 8, 16], strides = [1, 1, 1]} : vector<8x8x96xf32> to vector<8x8x16xf32>
    %191 = arith.truncf %190 : vector<8x8x16xf32> to vector<8x8x16xbf16>
    %192 = vector.extract_strided_slice %187 {offsets = [0, 0, 64], sizes = [8, 8, 16], strides = [1, 1, 1]} : vector<8x8x96xf32> to vector<8x8x16xf32>
    %193 = arith.truncf %192 : vector<8x8x16xf32> to vector<8x8x16xbf16>
    "tpu.trace_start"() <{level = 10 : i32, message = "bqd,bkd->bqk"}> : () -> ()
    %cst_56 = arith.constant dense<0.000000e+00> : vector<8x8x8xf32>
    %194 = tpu.matmul %189, %191, %cst_56 {dimension_numbers = #tpu.dot_dimension_numbers<[2], [2], [1], [1], [0, 0, 0, 1, 1, 1], [0], [0]>} : vector<8x8x16xbf16>, vector<8x8x16xbf16>, vector<8x8x8xf32> -> vector<8x8x8xf32>
    "tpu.trace_stop"() : () -> ()
    %195 = arith.addf %194, %36 : vector<8x8x8xf32>
    %cst_57 = arith.constant dense<0xFF800000> : vector<8x8xf32>
    %196 = vector.multi_reduction <maximumf>, %195, %cst_57 [2] : vector<8x8x8xf32> to vector<8x8xf32>
    %197 = vector.shape_cast %196 : vector<8x8xf32> to vector<8x8x1xf32>
    %198 = vector.broadcast %197 : vector<8x8x1xf32> to vector<8x8x8xf32>
    %199 = arith.subf %195, %198 : vector<8x8x8xf32>
    %200 = math.exp %199 : vector<8x8x8xf32>
    %cst_58 = arith.constant dense<0.000000e+00> : vector<8x8xf32>
    %201 = vector.multi_reduction <add>, %200, %cst_58 [2] : vector<8x8x8xf32> to vector<8x8xf32>
    %202 = vector.shape_cast %201 : vector<8x8xf32> to vector<8x8x1xf32>
    %203 = vector.broadcast %202 : vector<8x8x1xf32> to vector<8x8x8xf32>
    %204 = arith.divf %200, %203 : vector<8x8x8xf32>
    %205 = arith.truncf %204 : vector<8x8x8xf32> to vector<8x8x8xbf16>
    "tpu.trace_start"() <{level = 10 : i32, message = "bqk,bkd->bqd"}> : () -> ()
    %cst_59 = arith.constant dense<0.000000e+00> : vector<8x8x16xf32>
    %206 = tpu.matmul %205, %193, %cst_59 {dimension_numbers = #tpu.dot_dimension_numbers<[2], [1], [1], [2], [0, 0, 0, 1, 1, 2], [0], [0]>} : vector<8x8x8xbf16>, vector<8x8x16xbf16>, vector<8x8x16xf32> -> vector<8x8x16xf32>
    "tpu.trace_stop"() : () -> ()
    %207 = vector.extract_strided_slice %187 {offsets = [0, 0, 16], sizes = [8, 8, 16], strides = [1, 1, 1]} : vector<8x8x96xf32> to vector<8x8x16xf32>
    %208 = arith.truncf %207 : vector<8x8x16xf32> to vector<8x8x16xbf16>
    %209 = vector.extract_strided_slice %187 {offsets = [0, 0, 48], sizes = [8, 8, 16], strides = [1, 1, 1]} : vector<8x8x96xf32> to vector<8x8x16xf32>
    %210 = arith.truncf %209 : vector<8x8x16xf32> to vector<8x8x16xbf16>
    %211 = vector.extract_strided_slice %187 {offsets = [0, 0, 80], sizes = [8, 8, 16], strides = [1, 1, 1]} : vector<8x8x96xf32> to vector<8x8x16xf32>
    %212 = arith.truncf %211 : vector<8x8x16xf32> to vector<8x8x16xbf16>
    "tpu.trace_start"() <{level = 10 : i32, message = "bqd,bkd->bqk"}> : () -> ()
    %cst_60 = arith.constant dense<0.000000e+00> : vector<8x8x8xf32>
    %213 = tpu.matmul %208, %210, %cst_60 {dimension_numbers = #tpu.dot_dimension_numbers<[2], [2], [1], [1], [0, 0, 0, 1, 1, 1], [0], [0]>} : vector<8x8x16xbf16>, vector<8x8x16xbf16>, vector<8x8x8xf32> -> vector<8x8x8xf32>
    "tpu.trace_stop"() : () -> ()
    %214 = arith.addf %213, %36 : vector<8x8x8xf32>
    %cst_61 = arith.constant dense<0xFF800000> : vector<8x8xf32>
    %215 = vector.multi_reduction <maximumf>, %214, %cst_61 [2] : vector<8x8x8xf32> to vector<8x8xf32>
    %216 = vector.shape_cast %215 : vector<8x8xf32> to vector<8x8x1xf32>
    %217 = vector.broadcast %216 : vector<8x8x1xf32> to vector<8x8x8xf32>
    %218 = arith.subf %214, %217 : vector<8x8x8xf32>
    %219 = math.exp %218 : vector<8x8x8xf32>
    %cst_62 = arith.constant dense<0.000000e+00> : vector<8x8xf32>
    %220 = vector.multi_reduction <add>, %219, %cst_62 [2] : vector<8x8x8xf32> to vector<8x8xf32>
    %221 = vector.shape_cast %220 : vector<8x8xf32> to vector<8x8x1xf32>
    %222 = vector.broadcast %221 : vector<8x8x1xf32> to vector<8x8x8xf32>
    %223 = arith.divf %219, %222 : vector<8x8x8xf32>
    %224 = arith.truncf %223 : vector<8x8x8xf32> to vector<8x8x8xbf16>
    "tpu.trace_start"() <{level = 10 : i32, message = "bqk,bkd->bqd"}> : () -> ()
    %cst_63 = arith.constant dense<0.000000e+00> : vector<8x8x16xf32>
    %225 = tpu.matmul %224, %212, %cst_63 {dimension_numbers = #tpu.dot_dimension_numbers<[2], [1], [1], [2], [0, 0, 0, 1, 1, 2], [0], [0]>} : vector<8x8x8xbf16>, vector<8x8x16xbf16>, vector<8x8x16xf32> -> vector<8x8x16xf32>
    "tpu.trace_stop"() : () -> ()
    %226 = tpu.concatenate %206, %225 in 2 : vector<8x8x16xf32>, vector<8x8x16xf32> -> vector<8x8x32xf32>
    %227 = vector.shape_cast %226 : vector<8x8x32xf32> to vector<64x32xf32>
    %228 = arith.truncf %227 : vector<64x32xf32> to vector<64x32xbf16>
    %c1_64 = arith.constant 1 : index
    %c0_65 = arith.constant 0 : index
    %c128_66 = arith.constant 128 : index
    %229 = vector.load %arg2[%c1_64, %c0_65, %c128_66] : memref<2x32x384xbf16, #tpu.memory_space<vmem>>, vector<1x32x32xbf16>
    %230 = vector.shape_cast %229 : vector<1x32x32xbf16> to vector<32x32xbf16>
    %cst_67 = arith.constant dense<0.000000e+00> : vector<64x32xf32>
    %231 = tpu.matmul %228, %230, %cst_67 {dimension_numbers = #tpu.dot_dimension_numbers<[1], [0], [0], [1], [0, 0, 1, 1], [], []>} : vector<64x32xbf16>, vector<32x32xbf16>, vector<64x32xf32> -> vector<64x32xf32>
    %232 = vector.broadcast %174 : vector<1x32xf32> to vector<64x32xf32>
    %233 = arith.addf %231, %232 : vector<64x32xf32>
    %234 = arith.addf %170, %233 : vector<64x32xf32>
    %cst_68 = arith.constant dense<0.000000e+00> : vector<64xf32>
    %235 = vector.multi_reduction <add>, %234, %cst_68 [1] : vector<64x32xf32> to vector<64xf32>
    %236 = vector.shape_cast %235 : vector<64xf32> to vector<64x1xf32>
    %cst_69 = arith.constant 3.200000e+01 : f32
    %237 = vector.broadcast %cst_69 : f32 to vector<64x1xf32>
    %238 = arith.divf %236, %237 : vector<64x1xf32>
    %239 = vector.broadcast %238 : vector<64x1xf32> to vector<64x32xf32>
    %240 = arith.subf %234, %239 : vector<64x32xf32>
    %241 = arith.mulf %240, %240 : vector<64x32xf32>
    %cst_70 = arith.constant dense<0.000000e+00> : vector<64xf32>
    %242 = vector.multi_reduction <add>, %241, %cst_70 [1] : vector<64x32xf32> to vector<64xf32>
    %243 = vector.shape_cast %242 : vector<64xf32> to vector<64x1xf32>
    %cst_71 = arith.constant 3.200000e+01 : f32
    %244 = vector.broadcast %cst_71 : f32 to vector<64x1xf32>
    %245 = arith.divf %243, %244 : vector<64x1xf32>
    %246 = vector.broadcast %238 : vector<64x1xf32> to vector<64x32xf32>
    %247 = arith.subf %234, %246 : vector<64x32xf32>
    %cst_72 = arith.constant 9.99999996E-13 : f32
    %248 = vector.broadcast %cst_72 : f32 to vector<64x1xf32>
    %249 = arith.addf %245, %248 : vector<64x1xf32>
    %250 = math.rsqrt %249 : vector<64x1xf32>
    %251 = vector.broadcast %250 : vector<64x1xf32> to vector<64x32xf32>
    %252 = arith.mulf %247, %251 : vector<64x32xf32>
    %253 = vector.broadcast %175 : vector<1x32xf32> to vector<64x32xf32>
    %254 = arith.mulf %252, %253 : vector<64x32xf32>
    %255 = vector.broadcast %176 : vector<1x32xf32> to vector<64x32xf32>
    %256 = arith.addf %254, %255 : vector<64x32xf32>
    %257 = arith.truncf %256 : vector<64x32xf32> to vector<64x32xbf16>
    %c1_73 = arith.constant 1 : index
    %c0_74 = arith.constant 0 : index
    %c256_75 = arith.constant 256 : index
    %258 = vector.load %arg2[%c1_73, %c0_74, %c256_75] : memref<2x32x384xbf16, #tpu.memory_space<vmem>>, vector<1x32x64xbf16>
    %259 = vector.shape_cast %258 : vector<1x32x64xbf16> to vector<32x64xbf16>
    %cst_76 = arith.constant dense<0.000000e+00> : vector<64x64xf32>
    %260 = tpu.matmul %257, %259, %cst_76 {dimension_numbers = #tpu.dot_dimension_numbers<[1], [0], [0], [1], [0, 0, 1, 1], [], []>} : vector<64x32xbf16>, vector<32x64xbf16>, vector<64x64xf32> -> vector<64x64xf32>
    %261 = vector.broadcast %177 : vector<1x64xf32> to vector<64x64xf32>
    %262 = arith.addf %260, %261 : vector<64x64xf32>
    %263 = arith.mulf %262, %262 : vector<64x64xf32>
    %264 = arith.mulf %262, %263 : vector<64x64xf32>
    %cst_77 = arith.constant 4.471500e-02 : f32
    %265 = vector.broadcast %cst_77 : f32 to vector<64x64xf32>
    %266 = arith.mulf %265, %264 : vector<64x64xf32>
    %267 = arith.addf %262, %266 : vector<64x64xf32>
    %cst_78 = arith.constant 0.797884583 : f32
    %268 = vector.broadcast %cst_78 : f32 to vector<64x64xf32>
    %269 = arith.mulf %268, %267 : vector<64x64xf32>
    %270 = math.tanh %269 : vector<64x64xf32>
    %cst_79 = arith.constant 1.000000e+00 : f32
    %271 = vector.broadcast %cst_79 : f32 to vector<64x64xf32>
    %272 = arith.addf %271, %270 : vector<64x64xf32>
    %cst_80 = arith.constant 5.000000e-01 : f32
    %273 = vector.broadcast %cst_80 : f32 to vector<64x64xf32>
    %274 = arith.mulf %273, %272 : vector<64x64xf32>
    %275 = arith.mulf %262, %274 : vector<64x64xf32>
    %276 = arith.truncf %275 : vector<64x64xf32> to vector<64x64xbf16>
    %c1_81 = arith.constant 1 : index
    %c0_82 = arith.constant 0 : index
    %c0_83 = arith.constant 0 : index
    %277 = vector.load %arg3[%c1_81, %c0_82, %c0_83] : memref<2x64x32xbf16, #tpu.memory_space<vmem>>, vector<1x64x32xbf16>
    %278 = vector.shape_cast %277 : vector<1x64x32xbf16> to vector<64x32xbf16>
    %cst_84 = arith.constant dense<0.000000e+00> : vector<64x32xf32>
    %279 = tpu.matmul %276, %278, %cst_84 {dimension_numbers = #tpu.dot_dimension_numbers<[1], [0], [0], [1], [0, 0, 1, 1], [], []>} : vector<64x64xbf16>, vector<64x32xbf16>, vector<64x32xf32> -> vector<64x32xf32>
    %280 = vector.broadcast %178 : vector<1x32xf32> to vector<64x32xf32>
    %281 = arith.addf %279, %280 : vector<64x32xf32>
    %282 = arith.addf %256, %281 : vector<64x32xf32>
    %cst_85 = arith.constant dense<0.000000e+00> : vector<64xf32>
    %283 = vector.multi_reduction <add>, %282, %cst_85 [1] : vector<64x32xf32> to vector<64xf32>
    %284 = vector.shape_cast %283 : vector<64xf32> to vector<64x1xf32>
    %cst_86 = arith.constant 3.200000e+01 : f32
    %285 = vector.broadcast %cst_86 : f32 to vector<64x1xf32>
    %286 = arith.divf %284, %285 : vector<64x1xf32>
    %287 = vector.broadcast %286 : vector<64x1xf32> to vector<64x32xf32>
    %288 = arith.subf %282, %287 : vector<64x32xf32>
    %289 = arith.mulf %288, %288 : vector<64x32xf32>
    %cst_87 = arith.constant dense<0.000000e+00> : vector<64xf32>
    %290 = vector.multi_reduction <add>, %289, %cst_87 [1] : vector<64x32xf32> to vector<64xf32>
    %291 = vector.shape_cast %290 : vector<64xf32> to vector<64x1xf32>
    %cst_88 = arith.constant 3.200000e+01 : f32
    %292 = vector.broadcast %cst_88 : f32 to vector<64x1xf32>
    %293 = arith.divf %291, %292 : vector<64x1xf32>
    %294 = vector.broadcast %286 : vector<64x1xf32> to vector<64x32xf32>
    %295 = arith.subf %282, %294 : vector<64x32xf32>
    %cst_89 = arith.constant 9.99999996E-13 : f32
    %296 = vector.broadcast %cst_89 : f32 to vector<64x1xf32>
    %297 = arith.addf %293, %296 : vector<64x1xf32>
    %298 = math.rsqrt %297 : vector<64x1xf32>
    %299 = vector.broadcast %298 : vector<64x1xf32> to vector<64x32xf32>
    %300 = arith.mulf %295, %299 : vector<64x32xf32>
    %301 = vector.broadcast %179 : vector<1x32xf32> to vector<64x32xf32>
    %302 = arith.mulf %300, %301 : vector<64x32xf32>
    %303 = vector.broadcast %180 : vector<1x32xf32> to vector<64x32xf32>
    %304 = arith.addf %302, %303 : vector<64x32xf32>
    %305 = vector.shape_cast %304 : vector<64x32xf32> to vector<8x8x32xf32>
    %306 = vector.extract_strided_slice %305 {offsets = [0, 0, 0], sizes = [8, 1, 32], strides = [1, 1, 1]} : vector<8x8x32xf32> to vector<8x1x32xf32>
    %307 = vector.shape_cast %306 : vector<8x1x32xf32> to vector<8x32xf32>
    %308 = arith.truncf %307 : vector<8x32xf32> to vector<8x32xbf16>
    %c0_90 = arith.constant 0 : index
    %c0_91 = arith.constant 0 : index
    %309 = vector.load %arg4[%c0_90, %c0_91] : memref<32x32xbf16, #tpu.memory_space<vmem>>, vector<32x32xbf16>
    %cst_92 = arith.constant dense<0.000000e+00> : vector<8x32xf32>
    %310 = tpu.matmul %308, %309, %cst_92 {dimension_numbers = #tpu.dot_dimension_numbers<[1], [0], [0], [1], [0, 0, 1, 1], [], []>} : vector<8x32xbf16>, vector<32x32xbf16>, vector<8x32xf32> -> vector<8x32xf32>
    %311 = vector.broadcast %3 : vector<1x32xf32> to vector<8x32xf32>
    %312 = arith.addf %310, %311 : vector<8x32xf32>
    %313 = math.tanh %312 : vector<8x32xf32>
    %314 = vector.broadcast %4 : vector<1x32xf32> to vector<8x32xf32>
    %315 = arith.mulf %313, %314 : vector<8x32xf32>
    %cst_93 = arith.constant dense<0.000000e+00> : vector<8xf32>
    %316 = vector.multi_reduction <add>, %315, %cst_93 [1] : vector<8x32xf32> to vector<8xf32>
    %317 = vector.shape_cast %316 : vector<8xf32> to vector<8x1xf32>
    %318 = vector.broadcast %5 : vector<1x1xf32> to vector<8x1xf32>
    %319 = arith.addf %317, %318 : vector<8x1xf32>
    %c0_94 = arith.constant 0 : index
    %c0_95 = arith.constant 0 : index
    %320 = vector.load %arg7[%c0_94, %c0_95] : memref<8x1xf32, #tpu.memory_space<vmem>>, vector<8x1xf32>
    tpu.vector_store %arg7[%c0_94, %c0_95], %319 {strides = array<i32>} : memref<8x1xf32, #tpu.memory_space<vmem>>, vector<8x1xf32>,
    return
  }
}

</mosaic_0001>

<llo_original>
// kernel: multiple_choice_forward.1
$region0: #{multiple_choice_forward.1}
  #allocation0 [shape = 'u32[]', space=smem, size = 0x4, offset = 0x4, fixed_abs, tag = 'smem constant byte address 0x4 - core index']
  #allocation1 [shape = 'u32[144,128]{1,0:T(1,128)}', space=vmem, size = 0x12000, scoped, tag = 'internal scratch']
  %s0 = inlined_call_operand.vmem [shape: f32[64,32], index: 0, kind: input, shape index: {}]
  %s1 = inlined_call_operand.vmem [shape: f32[8,8], index: 1, kind: input, shape index: {}]
  %s2 = inlined_call_operand.vmem [shape: bf16[2,32,384], index: 2, kind: input, shape index: {}]
  %s3 = inlined_call_operand.vmem [shape: bf16[2,64,32], index: 3, kind: input, shape index: {}]
  %s4 = inlined_call_operand.vmem [shape: bf16[32,32], index: 4, kind: input, shape index: {}]
  %s5 = inlined_call_operand.vmem [shape: f32[2,8,128], index: 5, kind: input, shape index: {}]
  %s6 = inlined_call_operand.vmem [shape: f32[8,128], index: 6, kind: input, shape index: {}]
  %s7 = inlined_call_operand.vmem [shape: f32[8,1], index: 7, kind: output, shape index: {}]
  %s8 = sld [smem:[#allocation0]]
  $region38: #{multiple_choice_forward.1} parent=0
    _
  %s10 = ssub.s32 1, %s8
  %s11 = scalar_select 0, %s10, %s8
  // Predicated region
  $region2: #{multiple_choice_forward.1} parent=0 // pred_check
    _
  $region3: #{multiple_choice_forward.1} parent=0 // pred_check_branch
    %13 = sbr.rel (0) target = $region5
  $region4: #{multiple_choice_forward.1} parent=0 // pred_region
    _
  $region5: #{multiple_choice_forward.1} parent=0 // pred_fallthru
    _
  // Predicated region
  $region6: #{multiple_choice_forward.1} parent=0 // pred_check
    _
  $region7: #{multiple_choice_forward.1} parent=0 // pred_check_branch
    %15 = sbr.rel (0) target = $region9
  $region8: #{multiple_choice_forward.1} parent=0 // pred_region
    _
  $region9: #{multiple_choice_forward.1} parent=0 // pred_fallthru
    _
  // Predicated region
  $region10: #{multiple_choice_forward.1} parent=0 // pred_check
    _
  $region11: #{multiple_choice_forward.1} parent=0 // pred_check_branch
    %17 = sbr.rel (0) target = $region13
  $region12: #{multiple_choice_forward.1} parent=0 // pred_region
    _
  $region13: #{multiple_choice_forward.1} parent=0 // pred_fallthru
    _
  // Predicated region
  $region14: #{multiple_choice_forward.1} parent=0 // pred_check
    _
  $region15: #{multiple_choice_forward.1} parent=0 // pred_check_branch
    %19 = sbr.rel (0) target = $region17
  $region16: #{multiple_choice_forward.1} parent=0 // pred_region
    _
  $region17: #{multiple_choice_forward.1} parent=0 // pred_fallthru
    _
  // Predicated region
  $region18: #{multiple_choice_forward.1} parent=0 // pred_check
    _
  $region19: #{multiple_choice_forward.1} parent=0 // pred_check_branch
    %21 = sbr.rel (0) target = $region21
  $region20: #{multiple_choice_forward.1} parent=0 // pred_region
    _
  $region21: #{multiple_choice_forward.1} parent=0 // pred_fallthru
    _
  // Predicated region
  $region22: #{multiple_choice_forward.1} parent=0 // pred_check
    _
  $region23: #{multiple_choice_forward.1} parent=0 // pred_check_branch
    %23 = sbr.rel (0) target = $region25
  $region24: #{multiple_choice_forward.1} parent=0 // pred_region
    _
  $region25: #{multiple_choice_forward.1} parent=0 // pred_fallthru
    _
  // Predicated region
  $region26: #{multiple_choice_forward.1} parent=0 // pred_check
    _
  $region27: #{multiple_choice_forward.1} parent=0 // pred_check_branch
    %25 = sbr.rel (0) target = $region29
  $region28: #{multiple_choice_forward.1} parent=0 // pred_region
    _
  $region29: #{multiple_choice_forward.1} parent=0 // pred_fallthru
    _
  %v27 = vld [vmem:[%s6] sm:$0xff]
  %v28 = vld [vmem:[%s0] sm:$0xff]
  %v29 = vld [vmem:[%s0 + $0x8] sm:$0xff]
  %v30 = vld [vmem:[%s0 + $0x10] sm:$0xff]
  %v31 = vld [vmem:[%s0 + $0x18] sm:$0xff]
  %v32 = vld [vmem:[%s0 + $0x20] sm:$0xff]
  %v33 = vld [vmem:[%s0 + $0x28] sm:$0xff]
  %v34 = vld [vmem:[%s0 + $0x30] sm:$0xff]
  %v35 = vld [vmem:[%s0 + $0x38] sm:$0xff]
  %vm36 = vcmask 261120
  %v37 = vsel %vm36, %v28, 0.0
  %38 = vadd.xlane.f32.xlu0 %v37
  %v39 = vpop.xlane.xlu0 %38
  %v40 = vsel %vm36, %v29, 0.0
  %41 = vadd.xlane.f32.xlu0 %v40
  %v42 = vpop.xlane.xlu0 %41
  %v43 = vsel %vm36, %v30, 0.0
  %44 = vadd.xlane.f32.xlu0 %v43
  %v45 = vpop.xlane.xlu0 %44
  %v46 = vsel %vm36, %v31, 0.0
  %47 = vadd.xlane.f32.xlu0 %v46
  %v48 = vpop.xlane.xlu0 %47
  %v49 = vsel %vm36, %v32, 0.0
  %50 = vadd.xlane.f32.xlu0 %v49
  %v51 = vpop.xlane.xlu0 %50
  %v52 = vsel %vm36, %v33, 0.0
  %53 = vadd.xlane.f32.xlu0 %v52
  %v54 = vpop.xlane.xlu0 %53
  %v55 = vsel %vm36, %v34, 0.0
  %56 = vadd.xlane.f32.xlu0 %v55
  %v57 = vpop.xlane.xlu0 %56
  %v58 = vsel %vm36, %v35, 0.0
  %59 = vadd.xlane.f32.xlu0 %v58
  %v60 = vpop.xlane.xlu0 %59
  %v61 = vrcp.pop 32.0
  %v62 = vmul.f32 %v39, %v61
  %v63 = vmul.f32 %v42, %v61
  %v64 = vmul.f32 %v45, %v61
  %v65 = vmul.f32 %v48, %v61
  %v66 = vmul.f32 %v51, %v61
  %v67 = vmul.f32 %v54, %v61
  %v68 = vmul.f32 %v57, %v61
  %v69 = vmul.f32 %v60, %v61
  %v70 = vsub.f32 %v28, %v62
  %v71 = vsub.f32 %v29, %v63
  %v72 = vsub.f32 %v30, %v64
  %v73 = vsub.f32 %v31, %v65
  %v74 = vsub.f32 %v32, %v66
  %v75 = vsub.f32 %v33, %v67
  %v76 = vsub.f32 %v34, %v68
  %v77 = vsub.f32 %v35, %v69
  %v78 = vmul.f32 %v70, %v70
  %v79 = vmul.f32 %v71, %v71
  %v80 = vmul.f32 %v72, %v72
  %v81 = vmul.f32 %v73, %v73
  %v82 = vmul.f32 %v74, %v74
  %v83 = vmul.f32 %v75, %v75
  %v84 = vmul.f32 %v76, %v76
  %v85 = vmul.f32 %v77, %v77
  %v86 = vsel %vm36, %v78, 0.0
  %87 = vadd.xlane.f32.xlu0 %v86
  %v88 = vpop.xlane.xlu0 %87
  %v89 = vsel %vm36, %v79, 0.0
  %90 = vadd.xlane.f32.xlu0 %v89
  %v91 = vpop.xlane.xlu0 %90
  %v92 = vsel %vm36, %v80, 0.0
  %93 = vadd.xlane.f32.xlu0 %v92
  %v94 = vpop.xlane.xlu0 %93
  %v95 = vsel %vm36, %v81, 0.0
  %96 = vadd.xlane.f32.xlu0 %v95
  %v97 = vpop.xlane.xlu0 %96
  %v98 = vsel %vm36, %v82, 0.0
  %99 = vadd.xlane.f32.xlu0 %v98
  %v100 = vpop.xlane.xlu0 %99
  %v101 = vsel %vm36, %v83, 0.0
  %102 = vadd.xlane.f32.xlu0 %v101
  %v103 = vpop.xlane.xlu0 %102
  %v104 = vsel %vm36, %v84, 0.0
  %105 = vadd.xlane.f32.xlu0 %v104
  %v106 = vpop.xlane.xlu0 %105
  %v107 = vsel %vm36, %v85, 0.0
  %108 = vadd.xlane.f32.xlu0 %v107
  %v109 = vpop.xlane.xlu0 %108
  %v110 = vmul.f32 %v88, %v61
  %v111 = vmul.f32 %v91, %v61
  %v112 = vmul.f32 %v94, %v61
  %v113 = vmul.f32 %v97, %v61
  %v114 = vmul.f32 %v100, %v61
  %v115 = vmul.f32 %v103, %v61
  %v116 = vmul.f32 %v106, %v61
  %v117 = vmul.f32 %v109, %v61
  %v118 = vadd.f32 %v110, 1e-12
  %v119 = vadd.f32 %v111, 1e-12
  %v120 = vadd.f32 %v112, 1e-12
  %v121 = vadd.f32 %v113, 1e-12
  %v122 = vadd.f32 %v114, 1e-12
  %v123 = vadd.f32 %v115, 1e-12
  %v124 = vadd.f32 %v116, 1e-12
  %v125 = vadd.f32 %v117, 1e-12
  %v126 = vrsqrt.pop %v118
  %v127 = vrsqrt.pop %v119
  %v128 = vrsqrt.pop %v120
  %v129 = vrsqrt.pop %v121
  %v130 = vrsqrt.pop %v122
  %v131 = vrsqrt.pop %v123
  %v132 = vrsqrt.pop %v124
  %v133 = vrsqrt.pop %v125
  %v134 = vmul.f32 %v70, %v126
  %v135 = vmul.f32 %v71, %v127
  %v136 = vmul.f32 %v72, %v128
  %v137 = vmul.f32 %v73, %v129
  %v138 = vmul.f32 %v74, %v130
  %v139 = vmul.f32 %v75, %v131
  %v140 = vmul.f32 %v76, %v132
  %v141 = vmul.f32 %v77, %v133
  %v142 = vlaneseq
  %v143 = vshrl.u32 %v142, 7
  %v144 = vsub.s32 0, %v143
  %v145 = vrot.slane %v27, %v144
  %v146 = vmul.f32 %v134, %v145
  %v147 = vmul.f32 %v135, %v145
  %v148 = vmul.f32 %v136, %v145
  %v149 = vmul.f32 %v137, %v145
  %v150 = vmul.f32 %v138, %v145
  %v151 = vmul.f32 %v139, %v145
  %v152 = vmul.f32 %v140, %v145
  %v153 = vmul.f32 %v141, %v145
  %v154 = vlaneseq
  %v155 = vshrl.u32 %v154, 7
  %v156 = vsub.s32 1, %v155
  %v157 = vrot.slane %v27, %v156
  %v158 = vadd.f32 %v146, %v157
  %v159 = vadd.f32 %v147, %v157
  %v160 = vadd.f32 %v148, %v157
  %v161 = vadd.f32 %v149, %v157
  %v162 = vadd.f32 %v150, %v157
  %v163 = vadd.f32 %v151, %v157
  %v164 = vadd.f32 %v152, %v157
  %v165 = vadd.f32 %v153, %v157
  %v166 = vld [vmem:[%s1] sm:$0xff]
  %v167 = vsub.f32 1.0, %v166
  %v168 = vmul.f32 %v167, -1e+09
  %v170 = vcombine.high %v168, %v168
  %v172 = vunpack.c.l.s4 1966171168
  %v173 = vunpack.c.0.s8 %v172
  %v174 = vlaneseq
  %v175 = vshrl.u32 %v174, 7
  %v176 = vsub.s32 %v173, %v175
  %v177 = vrot.slane %v168, %v176
  %v179 = vunpack.c.l.s4 1966171168
  %v180 = vunpack.c.0.s8 %v179
  %v181 = vlaneseq
  %v182 = vshrl.u32 %v181, 7
  %v183 = vsub.s32 %v180, %v182
  %v184 = vrot.slane %v170, %v183
  %v185 = vcombine.high %v177, %v177
  %v186 = vcombine.high %v184, %v184
  %v188 = vunpack.c.l.s4 1966171168
  %v189 = vunpack.c.0.s8 %v188
  %v190 = vlaneseq
  %v191 = vshrl.u32 %v190, 7
  %v192 = vsub.s32 %v189, %v191
  %v193 = vrot.slane %v177, %v192
  %v195 = vunpack.c.l.s4 1966171168
  %v196 = vunpack.c.0.s8 %v195
  %v197 = vlaneseq
  %v198 = vshrl.u32 %v197, 7
  %v199 = vsub.s32 %v196, %v198
  %v200 = vrot.slane %v184, %v199
  %v202 = vunpack.c.l.s4 1966171168
  %v203 = vunpack.c.0.s8 %v202
  %v204 = vlaneseq
  %v205 = vshrl.u32 %v204, 7
  %v206 = vsub.s32 %v203, %v205
  %v207 = vrot.slane %v185, %v206
  %v209 = vunpack.c.l.s4 1966171168
  %v210 = vunpack.c.0.s8 %v209
  %v211 = vlaneseq
  %v212 = vshrl.u32 %v211, 7
  %v213 = vsub.s32 %v210, %v212
  %v214 = vrot.slane %v186, %v213
  %v215 = vcombine.high %v193, %v193
  %v216 = vcombine.high %v200, %v200
  %v217 = vcombine.high %v207, %v207
  %v218 = vcombine.high %v214, %v214
  %v219 = vlaneseq
  %v220 = vshrl.u32 %v219, 7
  %v221 = vsub.s32 0, %v220
  %v222 = vrot.slane %v193, %v221
  %v223 = vlaneseq
  %v224 = vshrl.u32 %v223, 7
  %v225 = vsub.s32 0, %v224
  %v226 = vrot.slane %v207, %v225
  %v227 = vlaneseq
  %v228 = vshrl.u32 %v227, 7
  %v229 = vsub.s32 0, %v228
  %v230 = vrot.slane %v215, %v229
  %v231 = vlaneseq
  %v232 = vshrl.u32 %v231, 7
  %v233 = vsub.s32 0, %v232
  %v234 = vrot.slane %v217, %v233
  %v235 = vlaneseq
  %v236 = vshrl.u32 %v235, 7
  %v237 = vsub.s32 0, %v236
  %v238 = vrot.slane %v200, %v237
  %v239 = vlaneseq
  %v240 = vshrl.u32 %v239, 7
  %v241 = vsub.s32 0, %v240
  %v242 = vrot.slane %v214, %v241
  %v243 = vlaneseq
  %v244 = vshrl.u32 %v243, 7
  %v245 = vsub.s32 0, %v244
  %v246 = vrot.slane %v216, %v245
  %v247 = vlaneseq
  %v248 = vshrl.u32 %v247, 7
  %v249 = vsub.s32 0, %v248
  %v250 = vrot.slane %v218, %v249
  %v259 = vld [vmem:[%s5] sm:$0xff]
  %v260 = vpack.c.bf16 %v159, %v158
  %v261 = vpack.c.bf16 %v161, %v160
  %v262 = vpack.c.bf16 %v163, %v162
  %v263 = vpack.c.bf16 %v165, %v164
  %v264 = vld [vmem:[%s2] sm:$0xf]
  %v265 = vld [vmem:[%s2 + $0xc] sm:$0xf]
  %v266 = vld [vmem:[%s2 + $0x18] sm:$0xf]
  %v267 = vld [vmem:[%s2 + $0x24] sm:$0xf]
  %v268 = vlaneseq
  %v269 = vshrl.u32 %v268, 7
  %v270 = vsub.s32 0, %v269
  %v271 = vrot.slane %v259, %v270
  %v276 = vunpack.c.l.b16 %v264
  %v277 = vunpack.c.l.b16 %v265
  %v278 = vunpack.c.l.b16 %v266
  %v279 = vunpack.c.l.b16 %v267
  %v280 = vpack.c.b16 %v277, %v276
  %v281 = vpack.c.b16 %v279, %v278
  %v285 = vsel %vm36, %v260, 0
  %v288 = vsel %vm36, %v261, 0
  %v291 = vsel %vm36, %v262, 0
  %v294 = vsel %vm36, %v263, 0
  %296 = vmatprep.subr.bf16.mxu0 0
  %297 = vmatpush1.bf16.msra.mxu0 %v280
  %298 = vmatprep.subr.bf16.mxu0 0
  %299 = vmatpush1.bf16.msra.mxu0 %v281
  %300 = vmatprep.subr.bf16.mxu0 0
  %301 = vmatpush1.bf16.msra.mxu0 0
  %302 = vmatprep.subr.bf16.mxu0 0
  %303 = vmatpush1.bf16.msra.mxu0 0
  %304 = vmatprep.subr.bf16.mxu0 0
  %305 = vmatpush1.bf16.msra.mxu0 0
  %306 = vmatprep.subr.bf16.mxu0 0
  %307 = vmatpush1.bf16.msra.mxu0 0
  %308 = vmatprep.subr.bf16.mxu0 0
  %309 = vmatpush1.bf16.msra.mxu0 0
  %310 = vmatprep.subr.bf16.mxu0 0
  %311 = vmatpush1.bf16.msra.mxu0 0
  %312 = vmatprep.subr.bf16.mxu0 0
  %313 = vmatpush1.bf16.msra.mxu0 0
  %314 = vmatprep.subr.bf16.mxu0 0
  %315 = vmatpush1.bf16.msra.mxu0 0
  %316 = vmatprep.subr.bf16.mxu0 0
  %317 = vmatpush1.bf16.msra.mxu0 0
  %318 = vmatprep.subr.bf16.mxu0 0
  %319 = vmatpush1.bf16.msra.mxu0 0
  %320 = vmatprep.subr.bf16.mxu0 0
  %321 = vmatpush1.bf16.msra.mxu0 0
  %322 = vmatprep.subr.bf16.mxu0 0
  %323 = vmatpush1.bf16.msra.mxu0 0
  %324 = vmatprep.subr.bf16.mxu0 0
  %325 = vmatpush1.bf16.msra.mxu0 0
  %326 = vmatprep.subr.bf16.mxu0 0
  %327 = vmatpush1.bf16.msra.mxu0 0
  %328 = vmatprep.mubr.bf16.mxu0 0
  %329 = vmatmul.mubr.bf16.gmra.mrb[0].mxu0 %v285
  %v330 = vpop.f32.mrb[0].mxu0
  %v331 = vadd.f32 %v271, %v330
  %v332 = vpop.f32.mrb[0].mxu0
  %v333 = vpop.f32.mrb[0].mxu0
  %v334 = vadd.f32 %v271, %v333
  %v335 = vpop.f32.mrb[0].mxu0
  %336 = vmatprep.mubr.bf16.mxu0 0
  %337 = vmatmul.mubr.bf16.gmra.mrb[0].mxu0 %v288
  %v338 = vpop.f32.mrb[0].mxu0
  %v339 = vadd.f32 %v271, %v338
  %v340 = vpop.f32.mrb[0].mxu0
  %v341 = vpop.f32.mrb[0].mxu0
  %v342 = vadd.f32 %v271, %v341
  %v343 = vpop.f32.mrb[0].mxu0
  %344 = vmatprep.mubr.bf16.mxu0 0
  %345 = vmatmul.mubr.bf16.gmra.mrb[0].mxu0 %v291
  %v346 = vpop.f32.mrb[0].mxu0
  %v347 = vadd.f32 %v271, %v346
  %v348 = vpop.f32.mrb[0].mxu0
  %v349 = vpop.f32.mrb[0].mxu0
  %v350 = vadd.f32 %v271, %v349
  %v351 = vpop.f32.mrb[0].mxu0
  %352 = vmatprep.mubr.bf16.mxu0 0
  %353 = vmatmul.mubr.bf16.gmra.mrb[0].mxu0 %v294
  %v354 = vpop.f32.mrb[0].mxu0
  %v355 = vadd.f32 %v271, %v354
  %v356 = vpop.f32.mrb[0].mxu0
  %v357 = vpop.f32.mrb[0].mxu0
  %v358 = vadd.f32 %v271, %v357
  %v359 = vpop.f32.mrb[0].mxu0
  %360 = vdwg.mxu0
  %v361 = vpack.c.bf16 %v331, %v331
  %v362 = vpack.c.bf16 %v334, %v334
  %v363 = vpack.c.bf16 %v339, %v339
  %v364 = vpack.c.bf16 %v342, %v342
  %v365 = vpack.c.bf16 %v347, %v347
  %v366 = vpack.c.bf16 %v350, %v350
  %v367 = vpack.c.bf16 %v355, %v355
  %v368 = vpack.c.bf16 %v358, %v358
  %370 = vrot.lane.b32.xlu0 %v361, 96
  %v371 = vpop.permute.xlu0 %370
  %vm372 = vcmask 130048
  %v374 = vsel %vm372, %v361, 0
  %v377 = vsel %vm372, %v371, 0
  %379 = vmatprep.subr.bf16.mxu0 0
  %380 = vmatpush1.bf16.xpose.msra.mxu0 %v377
  %381 = vmatprep.subr.bf16.mxu0 0
  %382 = vmatpush1.bf16.xpose.msra.mxu0 0
  %383 = vmatprep.subr.bf16.mxu0 0
  %384 = vmatpush1.bf16.xpose.msra.mxu0 0
  %385 = vmatprep.subr.bf16.mxu0 0
  %386 = vmatpush1.bf16.xpose.msra.mxu0 0
  %387 = vmatprep.subr.bf16.mxu0 0
  %388 = vmatpush1.bf16.xpose.msra.mxu0 0
  %389 = vmatprep.subr.bf16.mxu0 0
  %390 = vmatpush1.bf16.xpose.msra.mxu0 0
  %391 = vmatprep.subr.bf16.mxu0 0
  %392 = vmatpush1.bf16.xpose.msra.mxu0 0
  %393 = vmatprep.subr.bf16.mxu0 0
  %394 = vmatpush1.bf16.xpose.msra.mxu0 0
  %395 = vmatprep.subr.bf16.mxu0 0
  %396 = vmatpush1.bf16.xpose.msra.mxu0 0
  %397 = vmatprep.subr.bf16.mxu0 0
  %398 = vmatpush1.bf16.xpose.msra.mxu0 0
  %399 = vmatprep.subr.bf16.mxu0 0
  %400 = vmatpush1.bf16.xpose.msra.mxu0 0
  %401 = vmatprep.subr.bf16.mxu0 0
  %402 = vmatpush1.bf16.xpose.msra.mxu0 0
  %403 = vmatprep.subr.bf16.mxu0 0
  %404 = vmatpush1.bf16.xpose.msra.mxu0 0
  %405 = vmatprep.subr.bf16.mxu0 0
  %406 = vmatpush1.bf16.xpose.msra.mxu0 0
  %407 = vmatprep.subr.bf16.mxu0 0
  %408 = vmatpush1.bf16.xpose.msra.mxu0 0
  %409 = vmatprep.subr.bf16.mxu0 0
  %410 = vmatpush1.bf16.xpose.msra.mxu0 0
  %411 = vmatprep.mubr.bf16.mxu0 0
  %412 = vmatmul.mubr.bf16.gmra.mrb[0].mxu0 %v374
  %v413 = vpop.f32.mrb[0].mxu0
  %v414 = vadd.f32 %v222, %v413
  %v415 = vpop.f32.mrb[0].mxu0
  %v416 = vpop.f32.mrb[0].mxu0
  %v417 = vpop.f32.mrb[0].mxu0
  %418 = vdwg.mxu0
  %420 = vrot.lane.b32.xlu0 %v362, 96
  %v421 = vpop.permute.xlu0 %420
  %v423 = vsel %vm372, %v362, 0
  %v426 = vsel %vm372, %v421, 0
  %428 = vmatprep.subr.bf16.mxu0 0
  %429 = vmatpush1.bf16.xpose.msra.mxu0 %v426
  %430 = vmatprep.subr.bf16.mxu0 0
  %431 = vmatpush1.bf16.xpose.msra.mxu0 0
  %432 = vmatprep.subr.bf16.mxu0 0
  %433 = vmatpush1.bf16.xpose.msra.mxu0 0
  %434 = vmatprep.subr.bf16.mxu0 0
  %435 = vmatpush1.bf16.xpose.msra.mxu0 0
  %436 = vmatprep.subr.bf16.mxu0 0
  %437 = vmatpush1.bf16.xpose.msra.mxu0 0
  %438 = vmatprep.subr.bf16.mxu0 0
  %439 = vmatpush1.bf16.xpose.msra.mxu0 0
  %440 = vmatprep.subr.bf16.mxu0 0
  %441 = vmatpush1.bf16.xpose.msra.mxu0 0
  %442 = vmatprep.subr.bf16.mxu0 0
  %443 = vmatpush1.bf16.xpose.msra.mxu0 0
  %444 = vmatprep.subr.bf16.mxu0 0
  %445 = vmatpush1.bf16.xpose.msra.mxu0 0
  %446 = vmatprep.subr.bf16.mxu0 0
  %447 = vmatpush1.bf16.xpose.msra.mxu0 0
  %448 = vmatprep.subr.bf16.mxu0 0
  %449 = vmatpush1.bf16.xpose.msra.mxu0 0
  %450 = vmatprep.subr.bf16.mxu0 0
  %451 = vmatpush1.bf16.xpose.msra.mxu0 0
  %452 = vmatprep.subr.bf16.mxu0 0
  %453 = vmatpush1.bf16.xpose.msra.mxu0 0
  %454 = vmatprep.subr.bf16.mxu0 0
  %455 = vmatpush1.bf16.xpose.msra.mxu0 0
  %456 = vmatprep.subr.bf16.mxu0 0
  %457 = vmatpush1.bf16.xpose.msra.mxu0 0
  %458 = vmatprep.subr.bf16.mxu0 0
  %459 = vmatpush1.bf16.xpose.msra.mxu0 0
  %460 = vmatprep.mubr.bf16.mxu0 0
  %461 = vmatmul.mubr.bf16.gmra.mrb[0].mxu0 %v423
  %v462 = vpop.f32.mrb[0].mxu0
  %v463 = vadd.f32 %v226, %v462
  %v464 = vpop.f32.mrb[0].mxu0
  %v465 = vpop.f32.mrb[0].mxu0
  %v466 = vpop.f32.mrb[0].mxu0
  %467 = vdwg.mxu0
  %469 = vrot.lane.b32.xlu0 %v363, 96
  %v470 = vpop.permute.xlu0 %469
  %v472 = vsel %vm372, %v363, 0
  %v475 = vsel %vm372, %v470, 0
  %477 = vmatprep.subr.bf16.mxu0 0
  %478 = vmatpush1.bf16.xpose.msra.mxu0 %v475
  %479 = vmatprep.subr.bf16.mxu0 0
  %480 = vmatpush1.bf16.xpose.msra.mxu0 0
  %481 = vmatprep.subr.bf16.mxu0 0
  %482 = vmatpush1.bf16.xpose.msra.mxu0 0
  %483 = vmatprep.subr.bf16.mxu0 0
  %484 = vmatpush1.bf16.xpose.msra.mxu0 0
  %485 = vmatprep.subr.bf16.mxu0 0
  %486 = vmatpush1.bf16.xpose.msra.mxu0 0
  %487 = vmatprep.subr.bf16.mxu0 0
  %488 = vmatpush1.bf16.xpose.msra.mxu0 0
  %489 = vmatprep.subr.bf16.mxu0 0
  %490 = vmatpush1.bf16.xpose.msra.mxu0 0
  %491 = vmatprep.subr.bf16.mxu0 0
  %492 = vmatpush1.bf16.xpose.msra.mxu0 0
  %493 = vmatprep.subr.bf16.mxu0 0
  %494 = vmatpush1.bf16.xpose.msra.mxu0 0
  %495 = vmatprep.subr.bf16.mxu0 0
  %496 = vmatpush1.bf16.xpose.msra.mxu0 0
  %497 = vmatprep.subr.bf16.mxu0 0
  %498 = vmatpush1.bf16.xpose.msra.mxu0 0
  %499 = vmatprep.subr.bf16.mxu0 0
  %500 = vmatpush1.bf16.xpose.msra.mxu0 0
  %501 = vmatprep.subr.bf16.mxu0 0
  %502 = vmatpush1.bf16.xpose.msra.mxu0 0
  %503 = vmatprep.subr.bf16.mxu0 0
  %504 = vmatpush1.bf16.xpose.msra.mxu0 0
  %505 = vmatprep.subr.bf16.mxu0 0
  %506 = vmatpush1.bf16.xpose.msra.mxu0 0
  %507 = vmatprep.subr.bf16.mxu0 0
  %508 = vmatpush1.bf16.xpose.msra.mxu0 0
  %509 = vmatprep.mubr.bf16.mxu0 0
  %510 = vmatmul.mubr.bf16.gmra.mrb[0].mxu0 %v472
  %v511 = vpop.f32.mrb[0].mxu0
  %v512 = vadd.f32 %v230, %v511
  %v513 = vpop.f32.mrb[0].mxu0
  %v514 = vpop.f32.mrb[0].mxu0
  %v515 = vpop.f32.mrb[0].mxu0
  %516 = vdwg.mxu0
  %518 = vrot.lane.b32.xlu0 %v364, 96
  %v519 = vpop.permute.xlu0 %518
  %v521 = vsel %vm372, %v364, 0
  %v524 = vsel %vm372, %v519, 0
  %526 = vmatprep.subr.bf16.mxu0 0
  %527 = vmatpush1.bf16.xpose.msra.mxu0 %v524
  %528 = vmatprep.subr.bf16.mxu0 0
  %529 = vmatpush1.bf16.xpose.msra.mxu0 0
  %530 = vmatprep.subr.bf16.mxu0 0
  %531 = vmatpush1.bf16.xpose.msra.mxu0 0
  %532 = vmatprep.subr.bf16.mxu0 0
  %533 = vmatpush1.bf16.xpose.msra.mxu0 0
  %534 = vmatprep.subr.bf16.mxu0 0
  %535 = vmatpush1.bf16.xpose.msra.mxu0 0
  %536 = vmatprep.subr.bf16.mxu0 0
  %537 = vmatpush1.bf16.xpose.msra.mxu0 0
  %538 = vmatprep.subr.bf16.mxu0 0
  %539 = vmatpush1.bf16.xpose.msra.mxu0 0
  %540 = vmatprep.subr.bf16.mxu0 0
  %541 = vmatpush1.bf16.xpose.msra.mxu0 0
  %542 = vmatprep.subr.bf16.mxu0 0
  %543 = vmatpush1.bf16.xpose.msra.mxu0 0
  %544 = vmatprep.subr.bf16.mxu0 0
  %545 = vmatpush1.bf16.xpose.msra.mxu0 0
  %546 = vmatprep.subr.bf16.mxu0 0
  %547 = vmatpush1.bf16.xpose.msra.mxu0 0
  %548 = vmatprep.subr.bf16.mxu0 0
  %549 = vmatpush1.bf16.xpose.msra.mxu0 0
  %550 = vmatprep.subr.bf16.mxu0 0
  %551 = vmatpush1.bf16.xpose.msra.mxu0 0
  %552 = vmatprep.subr.bf16.mxu0 0
  %553 = vmatpush1.bf16.xpose.msra.mxu0 0
  %554 = vmatprep.subr.bf16.mxu0 0
  %555 = vmatpush1.bf16.xpose.msra.mxu0 0
  %556 = vmatprep.subr.bf16.mxu0 0
  %557 = vmatpush1.bf16.xpose.msra.mxu0 0
  %558 = vmatprep.mubr.bf16.mxu0 0
  %559 = vmatmul.mubr.bf16.gmra.mrb[0].mxu0 %v521
  %v560 = vpop.f32.mrb[0].mxu0
  %v561 = vadd.f32 %v234, %v560
  %v562 = vpop.f32.mrb[0].mxu0
  %v563 = vpop.f32.mrb[0].mxu0
  %v564 = vpop.f32.mrb[0].mxu0
  %565 = vdwg.mxu0
  %567 = vrot.lane.b32.xlu0 %v365, 96
  %v568 = vpop.permute.xlu0 %567
  %v570 = vsel %vm372, %v365, 0
  %v573 = vsel %vm372, %v568, 0
  %575 = vmatprep.subr.bf16.mxu0 0
  %576 = vmatpush1.bf16.xpose.msra.mxu0 %v573
  %577 = vmatprep.subr.bf16.mxu0 0
  %578 = vmatpush1.bf16.xpose.msra.mxu0 0
  %579 = vmatprep.subr.bf16.mxu0 0
  %580 = vmatpush1.bf16.xpose.msra.mxu0 0
  %581 = vmatprep.subr.bf16.mxu0 0
  %582 = vmatpush1.bf16.xpose.msra.mxu0 0
  %583 = vmatprep.subr.bf16.mxu0 0
  %584 = vmatpush1.bf16.xpose.msra.mxu0 0
  %585 = vmatprep.subr.bf16.mxu0 0
  %586 = vmatpush1.bf16.xpose.msra.mxu0 0
  %587 = vmatprep.subr.bf16.mxu0 0
  %588 = vmatpush1.bf16.xpose.msra.mxu0 0
  %589 = vmatprep.subr.bf16.mxu0 0
  %590 = vmatpush1.bf16.xpose.msra.mxu0 0
  %591 = vmatprep.subr.bf16.mxu0 0
  %592 = vmatpush1.bf16.xpose.msra.mxu0 0
  %593 = vmatprep.subr.bf16.mxu0 0
  %594 = vmatpush1.bf16.xpose.msra.mxu0 0
  %595 = vmatprep.subr.bf16.mxu0 0
  %596 = vmatpush1.bf16.xpose.msra.mxu0 0
  %597 = vmatprep.subr.bf16.mxu0 0
  %598 = vmatpush1.bf16.xpose.msra.mxu0 0
  %599 = vmatprep.subr.bf16.mxu0 0
  %600 = vmatpush1.bf16.xpose.msra.mxu0 0
  %601 = vmatprep.subr.bf16.mxu0 0
  %602 = vmatpush1.bf16.xpose.msra.mxu0 0
  %603 = vmatprep.subr.bf16.mxu0 0
  %604 = vmatpush1.bf16.xpose.msra.mxu0 0
  %605 = vmatprep.subr.bf16.mxu0 0
  %606 = vmatpush1.bf16.xpose.msra.mxu0 0
  %607 = vmatprep.mubr.bf16.mxu0 0
  %608 = vmatmul.mubr.bf16.gmra.mrb[0].mxu0 %v570
  %v609 = vpop.f32.mrb[0].mxu0
  %v610 = vadd.f32 %v238, %v609
  %v611 = vpop.f32.mrb[0].mxu0
  %v612 = vpop.f32.mrb[0].mxu0
  %v613 = vpop.f32.mrb[0].mxu0
  %614 = vdwg.mxu0
  %616 = vrot.lane.b32.xlu0 %v366, 96
  %v617 = vpop.permute.xlu0 %616
  %v619 = vsel %vm372, %v366, 0
  %v622 = vsel %vm372, %v617, 0
  %624 = vmatprep.subr.bf16.mxu0 0
  %625 = vmatpush1.bf16.xpose.msra.mxu0 %v622
  %626 = vmatprep.subr.bf16.mxu0 0
  %627 = vmatpush1.bf16.xpose.msra.mxu0 0
  %628 = vmatprep.subr.bf16.mxu0 0
  %629 = vmatpush1.bf16.xpose.msra.mxu0 0
  %630 = vmatprep.subr.bf16.mxu0 0
  %631 = vmatpush1.bf16.xpose.msra.mxu0 0
  %632 = vmatprep.subr.bf16.mxu0 0
  %633 = vmatpush1.bf16.xpose.msra.mxu0 0
  %634 = vmatprep.subr.bf16.mxu0 0
  %635 = vmatpush1.bf16.xpose.msra.mxu0 0
  %636 = vmatprep.subr.bf16.mxu0 0
  %637 = vmatpush1.bf16.xpose.msra.mxu0 0
  %638 = vmatprep.subr.bf16.mxu0 0
  %639 = vmatpush1.bf16.xpose.msra.mxu0 0
  %640 = vmatprep.subr.bf16.mxu0 0
  %641 = vmatpush1.bf16.xpose.msra.mxu0 0
  %642 = vmatprep.subr.bf16.mxu0 0
  %643 = vmatpush1.bf16.xpose.msra.mxu0 0
  %644 = vmatprep.subr.bf16.mxu0 0
  %645 = vmatpush1.bf16.xpose.msra.mxu0 0
  %646 = vmatprep.subr.bf16.mxu0 0
  %647 = vmatpush1.bf16.xpose.msra.mxu0 0
  %648 = vmatprep.subr.bf16.mxu0 0
  %649 = vmatpush1.bf16.xpose.msra.mxu0 0
  %650 = vmatprep.subr.bf16.mxu0 0
  %651 = vmatpush1.bf16.xpose.msra.mxu0 0
  %652 = vmatprep.subr.bf16.mxu0 0
  %653 = vmatpush1.bf16.xpose.msra.mxu0 0
  %654 = vmatprep.subr.bf16.mxu0 0
  %655 = vmatpush1.bf16.xpose.msra.mxu0 0
  %656 = vmatprep.mubr.bf16.mxu0 0
  %657 = vmatmul.mubr.bf16.gmra.mrb[0].mxu0 %v619
  %v658 = vpop.f32.mrb[0].mxu0
  %v659 = vadd.f32 %v242, %v658
  %v660 = vpop.f32.mrb[0].mxu0
  %v661 = vpop.f32.mrb[0].mxu0
  %v662 = vpop.f32.mrb[0].mxu0
  %663 = vdwg.mxu0
  %665 = vrot.lane.b32.xlu0 %v367, 96
  %v666 = vpop.permute.xlu0 %665
  %v668 = vsel %vm372, %v367, 0
  %v671 = vsel %vm372, %v666, 0
  %673 = vmatprep.subr.bf16.mxu0 0
  %674 = vmatpush1.bf16.xpose.msra.mxu0 %v671
  %675 = vmatprep.subr.bf16.mxu0 0
  %676 = vmatpush1.bf16.xpose.msra.mxu0 0
  %677 = vmatprep.subr.bf16.mxu0 0
  %678 = vmatpush1.bf16.xpose.msra.mxu0 0
  %679 = vmatprep.subr.bf16.mxu0 0
  %680 = vmatpush1.bf16.xpose.msra.mxu0 0
  %681 = vmatprep.subr.bf16.mxu0 0
  %682 = vmatpush1.bf16.xpose.msra.mxu0 0
  %683 = vmatprep.subr.bf16.mxu0 0
  %684 = vmatpush1.bf16.xpose.msra.mxu0 0
  %685 = vmatprep.subr.bf16.mxu0 0
  %686 = vmatpush1.bf16.xpose.msra.mxu0 0
  %687 = vmatprep.subr.bf16.mxu0 0
  %688 = vmatpush1.bf16.xpose.msra.mxu0 0
  %689 = vmatprep.subr.bf16.mxu0 0
  %690 = vmatpush1.bf16.xpose.msra.mxu0 0
  %691 = vmatprep.subr.bf16.mxu0 0
  %692 = vmatpush1.bf16.xpose.msra.mxu0 0
  %693 = vmatprep.subr.bf16.mxu0 0
  %694 = vmatpush1.bf16.xpose.msra.mxu0 0
  %695 = vmatprep.subr.bf16.mxu0 0
  %696 = vmatpush1.bf16.xpose.msra.mxu0 0
  %697 = vmatprep.subr.bf16.mxu0 0
  %698 = vmatpush1.bf16.xpose.msra.mxu0 0
  %699 = vmatprep.subr.bf16.mxu0 0
  %700 = vmatpush1.bf16.xpose.msra.mxu0 0
  %701 = vmatprep.subr.bf16.mxu0 0
  %702 = vmatpush1.bf16.xpose.msra.mxu0 0
  %703 = vmatprep.subr.bf16.mxu0 0
  %704 = vmatpush1.bf16.xpose.msra.mxu0 0
  %705 = vmatprep.mubr.bf16.mxu0 0
  %706 = vmatmul.mubr.bf16.gmra.mrb[0].mxu0 %v668
  %v707 = vpop.f32.mrb[0].mxu0
  %v708 = vadd.f32 %v246, %v707
  %v709 = vpop.f32.mrb[0].mxu0
  %v710 = vpop.f32.mrb[0].mxu0
  %v711 = vpop.f32.mrb[0].mxu0
  %712 = vdwg.mxu0
  %714 = vrot.lane.b32.xlu0 %v368, 96
  %v715 = vpop.permute.xlu0 %714
  %v717 = vsel %vm372, %v368, 0
  %v720 = vsel %vm372, %v715, 0
  %722 = vmatprep.subr.bf16.mxu0 0
  %723 = vmatpush1.bf16.xpose.msra.mxu0 %v720
  %724 = vmatprep.subr.bf16.mxu0 0
  %725 = vmatpush1.bf16.xpose.msra.mxu0 0
  %726 = vmatprep.subr.bf16.mxu0 0
  %727 = vmatpush1.bf16.xpose.msra.mxu0 0
  %728 = vmatprep.subr.bf16.mxu0 0
  %729 = vmatpush1.bf16.xpose.msra.mxu0 0
  %730 = vmatprep.subr.bf16.mxu0 0
  %731 = vmatpush1.bf16.xpose.msra.mxu0 0
  %732 = vmatprep.subr.bf16.mxu0 0
  %733 = vmatpush1.bf16.xpose.msra.mxu0 0
  %734 = vmatprep.subr.bf16.mxu0 0
  %735 = vmatpush1.bf16.xpose.msra.mxu0 0
  %736 = vmatprep.subr.bf16.mxu0 0
  %737 = vmatpush1.bf16.xpose.msra.mxu0 0
  %738 = vmatprep.subr.bf16.mxu0 0
  %739 = vmatpush1.bf16.xpose.msra.mxu0 0
  %740 = vmatprep.subr.bf16.mxu0 0
  %741 = vmatpush1.bf16.xpose.msra.mxu0 0
  %742 = vmatprep.subr.bf16.mxu0 0
  %743 = vmatpush1.bf16.xpose.msra.mxu0 0
  %744 = vmatprep.subr.bf16.mxu0 0
  %745 = vmatpush1.bf16.xpose.msra.mxu0 0
  %746 = vmatprep.subr.bf16.mxu0 0
  %747 = vmatpush1.bf16.xpose.msra.mxu0 0
  %748 = vmatprep.subr.bf16.mxu0 0
  %749 = vmatpush1.bf16.xpose.msra.mxu0 0
  %750 = vmatprep.subr.bf16.mxu0 0
  %751 = vmatpush1.bf16.xpose.msra.mxu0 0
  %752 = vmatprep.subr.bf16.mxu0 0
  %753 = vmatpush1.bf16.xpose.msra.mxu0 0
  %754 = vmatprep.mubr.bf16.mxu0 0
  %755 = vmatmul.mubr.bf16.gmra.mrb[0].mxu0 %v717
  %v756 = vpop.f32.mrb[0].mxu0
  %v757 = vadd.f32 %v250, %v756
  %v758 = vpop.f32.mrb[0].mxu0
  %v759 = vpop.f32.mrb[0].mxu0
  %v760 = vpop.f32.mrb[0].mxu0
  %761 = vdwg.mxu0
  %vm762 = vcmask 64512
  %v763 = vsel %vm762, %v414, -inf
  %764 = vmax.xlane.f32.xlu0 %v763
  %v765 = vpop.xlane.xlu0 %764
  %v766 = vsel %vm762, %v463, -inf
  %767 = vmax.xlane.f32.xlu0 %v766
  %v768 = vpop.xlane.xlu0 %767
  %v769 = vsel %vm762, %v512, -inf
  %770 = vmax.xlane.f32.xlu0 %v769
  %v771 = vpop.xlane.xlu0 %770
  %v772 = vsel %vm762, %v561, -inf
  %773 = vmax.xlane.f32.xlu0 %v772
  %v774 = vpop.xlane.xlu0 %773
  %v775 = vsel %vm762, %v610, -inf
  %776 = vmax.xlane.f32.xlu0 %v775
  %v777 = vpop.xlane.xlu0 %776
  %v778 = vsel %vm762, %v659, -inf
  %779 = vmax.xlane.f32.xlu0 %v778
  %v780 = vpop.xlane.xlu0 %779
  %v781 = vsel %vm762, %v708, -inf
  %782 = vmax.xlane.f32.xlu0 %v781
  %v783 = vpop.xlane.xlu0 %782
  %v784 = vsel %vm762, %v757, -inf
  %785 = vmax.xlane.f32.xlu0 %v784
  %v786 = vpop.xlane.xlu0 %785
  %v787 = vsub.f32 %v414, %v765
  %v788 = vsub.f32 %v463, %v768
  %v789 = vsub.f32 %v512, %v771
  %v790 = vsub.f32 %v561, %v774
  %v791 = vsub.f32 %v610, %v777
  %v792 = vsub.f32 %v659, %v780
  %v793 = vsub.f32 %v708, %v783
  %v794 = vsub.f32 %v757, %v786
  %v795 = vmul.f32 %v787, 1.442695
  %v796 = vpow.pop %v795
  %v797 = vmul.f32 %v788, 1.442695
  %v798 = vpow.pop %v797
  %v799 = vmul.f32 %v789, 1.442695
  %v800 = vpow.pop %v799
  %v801 = vmul.f32 %v790, 1.442695
  %v802 = vpow.pop %v801
  %v803 = vmul.f32 %v791, 1.442695
  %v804 = vpow.pop %v803
  %v805 = vmul.f32 %v792, 1.442695
  %v806 = vpow.pop %v805
  %v807 = vmul.f32 %v793, 1.442695
  %v808 = vpow.pop %v807
  %v809 = vmul.f32 %v794, 1.442695
  %v810 = vpow.pop %v809
  %v811 = vsel %vm762, %v796, 0.0
  %812 = vadd.xlane.f32.xlu0 %v811
  %v813 = vpop.xlane.xlu0 %812
  %v814 = vsel %vm762, %v798, 0.0
  %815 = vadd.xlane.f32.xlu0 %v814
  %v816 = vpop.xlane.xlu0 %815
  %v817 = vsel %vm762, %v800, 0.0
  %818 = vadd.xlane.f32.xlu0 %v817
  %v819 = vpop.xlane.xlu0 %818
  %v820 = vsel %vm762, %v802, 0.0
  %821 = vadd.xlane.f32.xlu0 %v820
  %v822 = vpop.xlane.xlu0 %821
  %v823 = vsel %vm762, %v804, 0.0
  %824 = vadd.xlane.f32.xlu0 %v823
  %v825 = vpop.xlane.xlu0 %824
  %v826 = vsel %vm762, %v806, 0.0
  %827 = vadd.xlane.f32.xlu0 %v826
  %v828 = vpop.xlane.xlu0 %827
  %v829 = vsel %vm762, %v808, 0.0
  %830 = vadd.xlane.f32.xlu0 %v829
  %v831 = vpop.xlane.xlu0 %830
  %v832 = vsel %vm762, %v810, 0.0
  %833 = vadd.xlane.f32.xlu0 %v832
  %v834 = vpop.xlane.xlu0 %833
  %v835 = vrcp.pop %v813
  %v836 = vmul.f32 %v796, %v835
  %v837 = vrcp.pop %v816
  %v838 = vmul.f32 %v798, %v837
  %v839 = vrcp.pop %v819
  %v840 = vmul.f32 %v800, %v839
  %v841 = vrcp.pop %v822
  %v842 = vmul.f32 %v802, %v841
  %v843 = vrcp.pop %v825
  %v844 = vmul.f32 %v804, %v843
  %v845 = vrcp.pop %v828
  %v846 = vmul.f32 %v806, %v845
  %v847 = vrcp.pop %v831
  %v848 = vmul.f32 %v808, %v847
  %v849 = vrcp.pop %v834
  %v850 = vmul.f32 %v810, %v849
  %v851 = vpack.c.bf16 %v836, %v836
  %v852 = vpack.c.bf16 %v838, %v838
  %v853 = vpack.c.bf16 %v840, %v840
  %v854 = vpack.c.bf16 %v842, %v842
  %v855 = vpack.c.bf16 %v844, %v844
  %v856 = vpack.c.bf16 %v846, %v846
  %v857 = vpack.c.bf16 %v848, %v848
  %v858 = vpack.c.bf16 %v850, %v850
  %859 = vrot.lane.b32.xlu0 %v361, 64
  %v860 = vpop.permute.xlu0 %859
  %v862 = vsel %vm762, %v851, 0
  %vm864 = vcmask 1043456
  %v866 = vsel %vm864, %v860, 0
  %868 = vmatprep.subr.bf16.mxu0 0
  %869 = vmatpush1.bf16.msra.mxu0 %v866
  %870 = vmatprep.subr.bf16.mxu0 0
  %871 = vmatpush1.bf16.msra.mxu0 0
  %872 = vmatprep.subr.bf16.mxu0 0
  %873 = vmatpush1.bf16.msra.mxu0 0
  %874 = vmatprep.subr.bf16.mxu0 0
  %875 = vmatpush1.bf16.msra.mxu0 0
  %876 = vmatprep.subr.bf16.mxu0 0
  %877 = vmatpush1.bf16.msra.mxu0 0
  %878 = vmatprep.subr.bf16.mxu0 0
  %879 = vmatpush1.bf16.msra.mxu0 0
  %880 = vmatprep.subr.bf16.mxu0 0
  %881 = vmatpush1.bf16.msra.mxu0 0
  %882 = vmatprep.subr.bf16.mxu0 0
  %883 = vmatpush1.bf16.msra.mxu0 0
  %884 = vmatprep.subr.bf16.mxu0 0
  %885 = vmatpush1.bf16.msra.mxu0 0
  %886 = vmatprep.subr.bf16.mxu0 0
  %887 = vmatpush1.bf16.msra.mxu0 0
  %888 = vmatprep.subr.bf16.mxu0 0
  %889 = vmatpush1.bf16.msra.mxu0 0
  %890 = vmatprep.subr.bf16.mxu0 0
  %891 = vmatpush1.bf16.msra.mxu0 0
  %892 = vmatprep.subr.bf16.mxu0 0
  %893 = vmatpush1.bf16.msra.mxu0 0
  %894 = vmatprep.subr.bf16.mxu0 0
  %895 = vmatpush1.bf16.msra.mxu0 0
  %896 = vmatprep.subr.bf16.mxu0 0
  %897 = vmatpush1.bf16.msra.mxu0 0
  %898 = vmatprep.subr.bf16.mxu0 0
  %899 = vmatpush1.bf16.msra.mxu0 0
  %900 = vmatprep.mubr.bf16.mxu0 0
  %901 = vmatmul.mubr.bf16.gmra.mrb[0].mxu0 %v862
  %v902 = vpop.f32.mrb[0].mxu0
  %v903 = vadd.f32 0.0, %v902
  %v904 = vpop.f32.mrb[0].mxu0
  %v905 = vpop.f32.mrb[0].mxu0
  %v906 = vpop.f32.mrb[0].mxu0
  %907 = vdwg.mxu0
  %908 = vrot.lane.b32.xlu0 %v362, 64
  %v909 = vpop.permute.xlu0 %908
  %v911 = vsel %vm762, %v852, 0
  %v914 = vsel %vm864, %v909, 0
  %916 = vmatprep.subr.bf16.mxu0 0
  %917 = vmatpush1.bf16.msra.mxu0 %v914
  %918 = vmatprep.subr.bf16.mxu0 0
  %919 = vmatpush1.bf16.msra.mxu0 0
  %920 = vmatprep.subr.bf16.mxu0 0
  %921 = vmatpush1.bf16.msra.mxu0 0
  %922 = vmatprep.subr.bf16.mxu0 0
  %923 = vmatpush1.bf16.msra.mxu0 0
  %924 = vmatprep.subr.bf16.mxu0 0
  %925 = vmatpush1.bf16.msra.mxu0 0
  %926 = vmatprep.subr.bf16.mxu0 0
  %927 = vmatpush1.bf16.msra.mxu0 0
  %928 = vmatprep.subr.bf16.mxu0 0
  %929 = vmatpush1.bf16.msra.mxu0 0
  %930 = vmatprep.subr.bf16.mxu0 0
  %931 = vmatpush1.bf16.msra.mxu0 0
  %932 = vmatprep.subr.bf16.mxu0 0
  %933 = vmatpush1.bf16.msra.mxu0 0
  %934 = vmatprep.subr.bf16.mxu0 0
  %935 = vmatpush1.bf16.msra.mxu0 0
  %936 = vmatprep.subr.bf16.mxu0 0
  %937 = vmatpush1.bf16.msra.mxu0 0
  %938 = vmatprep.subr.bf16.mxu0 0
  %939 = vmatpush1.bf16.msra.mxu0 0
  %940 = vmatprep.subr.bf16.mxu0 0
  %941 = vmatpush1.bf16.msra.mxu0 0
  %942 = vmatprep.subr.bf16.mxu0 0
  %943 = vmatpush1.bf16.msra.mxu0 0
  %944 = vmatprep.subr.bf16.mxu0 0
  %945 = vmatpush1.bf16.msra.mxu0 0
  %946 = vmatprep.subr.bf16.mxu0 0
  %947 = vmatpush1.bf16.msra.mxu0 0
  %948 = vmatprep.mubr.bf16.mxu0 0
  %949 = vmatmul.mubr.bf16.gmra.mrb[0].mxu0 %v911
  %v950 = vpop.f32.mrb[0].mxu0
  %v951 = vadd.f32 0.0, %v950
  %v952 = vpop.f32.mrb[0].mxu0
  %v953 = vpop.f32.mrb[0].mxu0
  %v954 = vpop.f32.mrb[0].mxu0
  %955 = vdwg.mxu0
  %956 = vrot.lane.b32.xlu0 %v363, 64
  %v957 = vpop.permute.xlu0 %956
  %v959 = vsel %vm762, %v853, 0
  %v962 = vsel %vm864, %v957, 0
  %964 = vmatprep.subr.bf16.mxu0 0
  %965 = vmatpush1.bf16.msra.mxu0 %v962
  %966 = vmatprep.subr.bf16.mxu0 0
  %967 = vmatpush1.bf16.msra.mxu0 0
  %968 = vmatprep.subr.bf16.mxu0 0
  %969 = vmatpush1.bf16.msra.mxu0 0
  %970 = vmatprep.subr.bf16.mxu0 0
  %971 = vmatpush1.bf16.msra.mxu0 0
  %972 = vmatprep.subr.bf16.mxu0 0
  %973 = vmatpush1.bf16.msra.mxu0 0
  %974 = vmatprep.subr.bf16.mxu0 0
  %975 = vmatpush1.bf16.msra.mxu0 0
  %976 = vmatprep.subr.bf16.mxu0 0
  %977 = vmatpush1.bf16.msra.mxu0 0
  %978 = vmatprep.subr.bf16.mxu0 0
  %979 = vmatpush1.bf16.msra.mxu0 0
  %980 = vmatprep.subr.bf16.mxu0 0
  %981 = vmatpush1.bf16.msra.mxu0 0
  %982 = vmatprep.subr.bf16.mxu0 0
  %983 = vmatpush1.bf16.msra.mxu0 0
  %984 = vmatprep.subr.bf16.mxu0 0
  %985 = vmatpush1.bf16.msra.mxu0 0
  %986 = vmatprep.subr.bf16.mxu0 0
  %987 = vmatpush1.bf16.msra.mxu0 0
  %988 = vmatprep.subr.bf16.mxu0 0
  %989 = vmatpush1.bf16.msra.mxu0 0
  %990 = vmatprep.subr.bf16.mxu0 0
  %991 = vmatpush1.bf16.msra.mxu0 0
  %992 = vmatprep.subr.bf16.mxu0 0
  %993 = vmatpush1.bf16.msra.mxu0 0
  %994 = vmatprep.subr.bf16.mxu0 0
  %995 = vmatpush1.bf16.msra.mxu0 0
  %996 = vmatprep.mubr.bf16.mxu0 0
  %997 = vmatmul.mubr.bf16.gmra.mrb[0].mxu0 %v959
  %v998 = vpop.f32.mrb[0].mxu0
  %v999 = vadd.f32 0.0, %v998
  %v1000 = vpop.f32.mrb[0].mxu0
  %v1001 = vpop.f32.mrb[0].mxu0
  %v1002 = vpop.f32.mrb[0].mxu0
  %1003 = vdwg.mxu0
  %1004 = vrot.lane.b32.xlu0 %v364, 64
  %v1005 = vpop.permute.xlu0 %1004
  %v1007 = vsel %vm762, %v854, 0
  %v1010 = vsel %vm864, %v1005, 0
  %1012 = vmatprep.subr.bf16.mxu0 0
  %1013 = vmatpush1.bf16.msra.mxu0 %v1010
  %1014 = vmatprep.subr.bf16.mxu0 0
  %1015 = vmatpush1.bf16.msra.mxu0 0
  %1016 = vmatprep.subr.bf16.mxu0 0
  %1017 = vmatpush1.bf16.msra.mxu0 0
  %1018 = vmatprep.subr.bf16.mxu0 0
  %1019 = vmatpush1.bf16.msra.mxu0 0
  %1020 = vmatprep.subr.bf16.mxu0 0
  %1021 = vmatpush1.bf16.msra.mxu0 0
  %1022 = vmatprep.subr.bf16.mxu0 0
  %1023 = vmatpush1.bf16.msra.mxu0 0
  %1024 = vmatprep.subr.bf16.mxu0 0
  %1025 = vmatpush1.bf16.msra.mxu0 0
  %1026 = vmatprep.subr.bf16.mxu0 0
  %1027 = vmatpush1.bf16.msra.mxu0 0
  %1028 = vmatprep.subr.bf16.mxu0 0
  %1029 = vmatpush1.bf16.msra.mxu0 0
  %1030 = vmatprep.subr.bf16.mxu0 0
  %1031 = vmatpush1.bf16.msra.mxu0 0
  %1032 = vmatprep.subr.bf16.mxu0 0
  %1033 = vmatpush1.bf16.msra.mxu0 0
  %1034 = vmatprep.subr.bf16.mxu0 0
  %1035 = vmatpush1.bf16.msra.mxu0 0
  %1036 = vmatprep.subr.bf16.mxu0 0
  %1037 = vmatpush1.bf16.msra.mxu0 0
  %1038 = vmatprep.subr.bf16.mxu0 0
  %1039 = vmatpush1.bf16.msra.mxu0 0
  %1040 = vmatprep.subr.bf16.mxu0 0
  %1041 = vmatpush1.bf16.msra.mxu0 0
  %1042 = vmatprep.subr.bf16.mxu0 0
  %1043 = vmatpush1.bf16.msra.mxu0 0
  %1044 = vmatprep.mubr.bf16.mxu0 0
  %1045 = vmatmul.mubr.bf16.gmra.mrb[0].mxu0 %v1007
  %v1046 = vpop.f32.mrb[0].mxu0
  %v1047 = vadd.f32 0.0, %v1046
  %v1048 = vpop.f32.mrb[0].mxu0
  %v1049 = vpop.f32.mrb[0].mxu0
  %v1050 = vpop.f32.mrb[0].mxu0
  %1051 = vdwg.mxu0
  %1052 = vrot.lane.b32.xlu0 %v365, 64
  %v1053 = vpop.permute.xlu0 %1052
  %v1055 = vsel %vm762, %v855, 0
  %v1058 = vsel %vm864, %v1053, 0
  %1060 = vmatprep.subr.bf16.mxu0 0
  %1061 = vmatpush1.bf16.msra.mxu0 %v1058
  %1062 = vmatprep.subr.bf16.mxu0 0
  %1063 = vmatpush1.bf16.msra.mxu0 0
  %1064 = vmatprep.subr.bf16.mxu0 0
  %1065 = vmatpush1.bf16.msra.mxu0 0
  %1066 = vmatprep.subr.bf16.mxu0 0
  %1067 = vmatpush1.bf16.msra.mxu0 0
  %1068 = vmatprep.subr.bf16.mxu0 0
  %1069 = vmatpush1.bf16.msra.mxu0 0
  %1070 = vmatprep.subr.bf16.mxu0 0
  %1071 = vmatpush1.bf16.msra.mxu0 0
  %1072 = vmatprep.subr.bf16.mxu0 0
  %1073 = vmatpush1.bf16.msra.mxu0 0
  %1074 = vmatprep.subr.bf16.mxu0 0
  %1075 = vmatpush1.bf16.msra.mxu0 0
  %1076 = vmatprep.subr.bf16.mxu0 0
  %1077 = vmatpush1.bf16.msra.mxu0 0
  %1078 = vmatprep.subr.bf16.mxu0 0
  %1079 = vmatpush1.bf16.msra.mxu0 0
  %1080 = vmatprep.subr.bf16.mxu0 0
  %1081 = vmatpush1.bf16.msra.mxu0 0
  %1082 = vmatprep.subr.bf16.mxu0 0
  %1083 = vmatpush1.bf16.msra.mxu0 0
  %1084 = vmatprep.subr.bf16.mxu0 0
  %1085 = vmatpush1.bf16.msra.mxu0 0
  %1086 = vmatprep.subr.bf16.mxu0 0
  %1087 = vmatpush1.bf16.msra.mxu0 0
  %1088 = vmatprep.subr.bf16.mxu0 0
  %1089 = vmatpush1.bf16.msra.mxu0 0
  %1090 = vmatprep.subr.bf16.mxu0 0
  %1091 = vmatpush1.bf16.msra.mxu0 0
  %1092 = vmatprep.mubr.bf16.mxu0 0
  %1093 = vmatmul.mubr.bf16.gmra.mrb[0].mxu0 %v1055
  %v1094 = vpop.f32.mrb[0].mxu0
  %v1095 = vadd.f32 0.0, %v1094
  %v1096 = vpop.f32.mrb[0].mxu0
  %v1097 = vpop.f32.mrb[0].mxu0
  %v1098 = vpop.f32.mrb[0].mxu0
  %1099 = vdwg.mxu0
  %1100 = vrot.lane.b32.xlu0 %v366, 64
  %v1101 = vpop.permute.xlu0 %1100
  %v1103 = vsel %vm762, %v856, 0
  %v1106 = vsel %vm864, %v1101, 0
  %1108 = vmatprep.subr.bf16.mxu0 0
  %1109 = vmatpush1.bf16.msra.mxu0 %v1106
  %1110 = vmatprep.subr.bf16.mxu0 0
  %1111 = vmatpush1.bf16.msra.mxu0 0
  %1112 = vmatprep.subr.bf16.mxu0 0
  %1113 = vmatpush1.bf16.msra.mxu0 0
  %1114 = vmatprep.subr.bf16.mxu0 0
  %1115 = vmatpush1.bf16.msra.mxu0 0
  %1116 = vmatprep.subr.bf16.mxu0 0
  %1117 = vmatpush1.bf16.msra.mxu0 0
  %1118 = vmatprep.subr.bf16.mxu0 0
  %1119 = vmatpush1.bf16.msra.mxu0 0
  %1120 = vmatprep.subr.bf16.mxu0 0
  %1121 = vmatpush1.bf16.msra.mxu0 0
  %1122 = vmatprep.subr.bf16.mxu0 0
  %1123 = vmatpush1.bf16.msra.mxu0 0
  %1124 = vmatprep.subr.bf16.mxu0 0
  %1125 = vmatpush1.bf16.msra.mxu0 0
  %1126 = vmatprep.subr.bf16.mxu0 0
  %1127 = vmatpush1.bf16.msra.mxu0 0
  %1128 = vmatprep.subr.bf16.mxu0 0
  %1129 = vmatpush1.bf16.msra.mxu0 0
  %1130 = vmatprep.subr.bf16.mxu0 0
  %1131 = vmatpush1.bf16.msra.mxu0 0
  %1132 = vmatprep.subr.bf16.mxu0 0
  %1133 = vmatpush1.bf16.msra.mxu0 0
  %1134 = vmatprep.subr.bf16.mxu0 0
  %1135 = vmatpush1.bf16.msra.mxu0 0
  %1136 = vmatprep.subr.bf16.mxu0 0
  %1137 = vmatpush1.bf16.msra.mxu0 0
  %1138 = vmatprep.subr.bf16.mxu0 0
  %1139 = vmatpush1.bf16.msra.mxu0 0
  %1140 = vmatprep.mubr.bf16.mxu0 0
  %1141 = vmatmul.mubr.bf16.gmra.mrb[0].mxu0 %v1103
  %v1142 = vpop.f32.mrb[0].mxu0
  %v1143 = vadd.f32 0.0, %v1142
  %v1144 = vpop.f32.mrb[0].mxu0
  %v1145 = vpop.f32.mrb[0].mxu0
  %v1146 = vpop.f32.mrb[0].mxu0
  %1147 = vdwg.mxu0
  %1148 = vrot.lane.b32.xlu0 %v367, 64
  %v1149 = vpop.permute.xlu0 %1148
  %v1151 = vsel %vm762, %v857, 0
  %v1154 = vsel %vm864, %v1149, 0
  %1156 = vmatprep.subr.bf16.mxu0 0
  %1157 = vmatpush1.bf16.msra.mxu0 %v1154
  %1158 = vmatprep.subr.bf16.mxu0 0
  %1159 = vmatpush1.bf16.msra.mxu0 0
  %1160 = vmatprep.subr.bf16.mxu0 0
  %1161 = vmatpush1.bf16.msra.mxu0 0
  %1162 = vmatprep.subr.bf16.mxu0 0
  %1163 = vmatpush1.bf16.msra.mxu0 0
  %1164 = vmatprep.subr.bf16.mxu0 0
  %1165 = vmatpush1.bf16.msra.mxu0 0
  %1166 = vmatprep.subr.bf16.mxu0 0
  %1167 = vmatpush1.bf16.msra.mxu0 0
  %1168 = vmatprep.subr.bf16.mxu0 0
  %1169 = vmatpush1.bf16.msra.mxu0 0
  %1170 = vmatprep.subr.bf16.mxu0 0
  %1171 = vmatpush1.bf16.msra.mxu0 0
  %1172 = vmatprep.subr.bf16.mxu0 0
  %1173 = vmatpush1.bf16.msra.mxu0 0
  %1174 = vmatprep.subr.bf16.mxu0 0
  %1175 = vmatpush1.bf16.msra.mxu0 0
  %1176 = vmatprep.subr.bf16.mxu0 0
  %1177 = vmatpush1.bf16.msra.mxu0 0
  %1178 = vmatprep.subr.bf16.mxu0 0
  %1179 = vmatpush1.bf16.msra.mxu0 0
  %1180 = vmatprep.subr.bf16.mxu0 0
  %1181 = vmatpush1.bf16.msra.mxu0 0
  %1182 = vmatprep.subr.bf16.mxu0 0
  %1183 = vmatpush1.bf16.msra.mxu0 0
  %1184 = vmatprep.subr.bf16.mxu0 0
  %1185 = vmatpush1.bf16.msra.mxu0 0
  %1186 = vmatprep.subr.bf16.mxu0 0
  %1187 = vmatpush1.bf16.msra.mxu0 0
  %1188 = vmatprep.mubr.bf16.mxu0 0
  %1189 = vmatmul.mubr.bf16.gmra.mrb[0].mxu0 %v1151
  %v1190 = vpop.f32.mrb[0].mxu0
  %v1191 = vadd.f32 0.0, %v1190
  %v1192 = vpop.f32.mrb[0].mxu0
  %v1193 = vpop.f32.mrb[0].mxu0
  %v1194 = vpop.f32.mrb[0].mxu0
  %1195 = vdwg.mxu0
  %1196 = vrot.lane.b32.xlu0 %v368, 64
  %v1197 = vpop.permute.xlu0 %1196
  %v1199 = vsel %vm762, %v858, 0
  %v1202 = vsel %vm864, %v1197, 0
  %1204 = vmatprep.subr.bf16.mxu0 0
  %1205 = vmatpush1.bf16.msra.mxu0 %v1202
  %1206 = vmatprep.subr.bf16.mxu0 0
  %1207 = vmatpush1.bf16.msra.mxu0 0
  %1208 = vmatprep.subr.bf16.mxu0 0
  %1209 = vmatpush1.bf16.msra.mxu0 0
  %1210 = vmatprep.subr.bf16.mxu0 0
  %1211 = vmatpush1.bf16.msra.mxu0 0
  %1212 = vmatprep.subr.bf16.mxu0 0
  %1213 = vmatpush1.bf16.msra.mxu0 0
  %1214 = vmatprep.subr.bf16.mxu0 0
  %1215 = vmatpush1.bf16.msra.mxu0 0
  %1216 = vmatprep.subr.bf16.mxu0 0
  %1217 = vmatpush1.bf16.msra.mxu0 0
  %1218 = vmatprep.subr.bf16.mxu0 0
  %1219 = vmatpush1.bf16.msra.mxu0 0
  %1220 = vmatprep.subr.bf16.mxu0 0
  %1221 = vmatpush1.bf16.msra.mxu0 0
  %1222 = vmatprep.subr.bf16.mxu0 0
  %1223 = vmatpush1.bf16.msra.mxu0 0
  %1224 = vmatprep.subr.bf16.mxu0 0
  %1225 = vmatpush1.bf16.msra.mxu0 0
  %1226 = vmatprep.subr.bf16.mxu0 0
  %1227 = vmatpush1.bf16.msra.mxu0 0
  %1228 = vmatprep.subr.bf16.mxu0 0
  %1229 = vmatpush1.bf16.msra.mxu0 0
  %1230 = vmatprep.subr.bf16.mxu0 0
  %1231 = vmatpush1.bf16.msra.mxu0 0
  %1232 = vmatprep.subr.bf16.mxu0 0
  %1233 = vmatpush1.bf16.msra.mxu0 0
  %1234 = vmatprep.subr.bf16.mxu0 0
  %1235 = vmatpush1.bf16.msra.mxu0 0
  %1236 = vmatprep.mubr.bf16.mxu0 0
  %1237 = vmatmul.mubr.bf16.gmra.mrb[0].mxu0 %v1199
  %v1238 = vpop.f32.mrb[0].mxu0
  %v1239 = vadd.f32 0.0, %v1238
  %v1240 = vpop.f32.mrb[0].mxu0
  %v1241 = vpop.f32.mrb[0].mxu0
  %v1242 = vpop.f32.mrb[0].mxu0
  %1243 = vdwg.mxu0
  %1244 = vrot.lane.b32.xlu0 %v361, 112
  %v1245 = vpop.permute.xlu0 %1244
  %1246 = vrot.lane.b32.xlu0 %v361, 80
  %v1247 = vpop.permute.xlu0 %1246
  %v1249 = vsel %vm372, %v1245, 0
  %v1252 = vsel %vm372, %v1247, 0
  %1254 = vmatprep.subr.bf16.mxu0 0
  %1255 = vmatpush1.bf16.xpose.msra.mxu0 %v1252
  %1256 = vmatprep.subr.bf16.mxu0 0
  %1257 = vmatpush1.bf16.xpose.msra.mxu0 0
  %1258 = vmatprep.subr.bf16.mxu0 0
  %1259 = vmatpush1.bf16.xpose.msra.mxu0 0
  %1260 = vmatprep.subr.bf16.mxu0 0
  %1261 = vmatpush1.bf16.xpose.msra.mxu0 0
  %1262 = vmatprep.subr.bf16.mxu0 0
  %1263 = vmatpush1.bf16.xpose.msra.mxu0 0
  %1264 = vmatprep.subr.bf16.mxu0 0
  %1265 = vmatpush1.bf16.xpose.msra.mxu0 0
  %1266 = vmatprep.subr.bf16.mxu0 0
  %1267 = vmatpush1.bf16.xpose.msra.mxu0 0
  %1268 = vmatprep.subr.bf16.mxu0 0
  %1269 = vmatpush1.bf16.xpose.msra.mxu0 0
  %1270 = vmatprep.subr.bf16.mxu0 0
  %1271 = vmatpush1.bf16.xpose.msra.mxu0 0
  %1272 = vmatprep.subr.bf16.mxu0 0
  %1273 = vmatpush1.bf16.xpose.msra.mxu0 0
  %1274 = vmatprep.subr.bf16.mxu0 0
  %1275 = vmatpush1.bf16.xpose.msra.mxu0 0
  %1276 = vmatprep.subr.bf16.mxu0 0
  %1277 = vmatpush1.bf16.xpose.msra.mxu0 0
  %1278 = vmatprep.subr.bf16.mxu0 0
  %1279 = vmatpush1.bf16.xpose.msra.mxu0 0
  %1280 = vmatprep.subr.bf16.mxu0 0
  %1281 = vmatpush1.bf16.xpose.msra.mxu0 0
  %1282 = vmatprep.subr.bf16.mxu0 0
  %1283 = vmatpush1.bf16.xpose.msra.mxu0 0
  %1284 = vmatprep.subr.bf16.mxu0 0
  %1285 = vmatpush1.bf16.xpose.msra.mxu0 0
  %1286 = vmatprep.mubr.bf16.mxu0 0
  %1287 = vmatmul.mubr.bf16.gmra.mrb[0].mxu0 %v1249
  %v1288 = vpop.f32.mrb[0].mxu0
  %v1289 = vadd.f32 %v222, %v1288
  %v1290 = vpop.f32.mrb[0].mxu0
  %v1291 = vpop.f32.mrb[0].mxu0
  %v1292 = vpop.f32.mrb[0].mxu0
  %1293 = vdwg.mxu0
  %1294 = vrot.lane.b32.xlu0 %v362, 112
  %v1295 = vpop.permute.xlu0 %1294
  %1296 = vrot.lane.b32.xlu0 %v362, 80
  %v1297 = vpop.permute.xlu0 %1296
  %v1299 = vsel %vm372, %v1295, 0
  %v1302 = vsel %vm372, %v1297, 0
  %1304 = vmatprep.subr.bf16.mxu0 0
  %1305 = vmatpush1.bf16.xpose.msra.mxu0 %v1302
  %1306 = vmatprep.subr.bf16.mxu0 0
  %1307 = vmatpush1.bf16.xpose.msra.mxu0 0
  %1308 = vmatprep.subr.bf16.mxu0 0
  %1309 = vmatpush1.bf16.xpose.msra.mxu0 0
  %1310 = vmatprep.subr.bf16.mxu0 0
  %1311 = vmatpush1.bf16.xpose.msra.mxu0 0
  %1312 = vmatprep.subr.bf16.mxu0 0
  %1313 = vmatpush1.bf16.xpose.msra.mxu0 0
  %1314 = vmatprep.subr.bf16.mxu0 0
  %1315 = vmatpush1.bf16.xpose.msra.mxu0 0
  %1316 = vmatprep.subr.bf16.mxu0 0
  %1317 = vmatpush1.bf16.xpose.msra.mxu0 0
  %1318 = vmatprep.subr.bf16.mxu0 0
  %1319 = vmatpush1.bf16.xpose.msra.mxu0 0
  %1320 = vmatprep.subr.bf16.mxu0 0
  %1321 = vmatpush1.bf16.xpose.msra.mxu0 0
  %1322 = vmatprep.subr.bf16.mxu0 0
  %1323 = vmatpush1.bf16.xpose.msra.mxu0 0
  %1324 = vmatprep.subr.bf16.mxu0 0
  %1325 = vmatpush1.bf16.xpose.msra.mxu0 0
  %1326 = vmatprep.subr.bf16.mxu0 0
  %1327 = vmatpush1.bf16.xpose.msra.mxu0 0
  %1328 = vmatprep.subr.bf16.mxu0 0
  %1329 = vmatpush1.bf16.xpose.msra.mxu0 0
  %1330 = vmatprep.subr.bf16.mxu0 0
  %1331 = vmatpush1.bf16.xpose.msra.mxu0 0
  %1332 = vmatprep.subr.bf16.mxu0 0
  %1333 = vmatpush1.bf16.xpose.msra.mxu0 0
  %1334 = vmatprep.subr.bf16.mxu0 0
  %1335 = vmatpush1.bf16.xpose.msra.mxu0 0
  %1336 = vmatprep.mubr.bf16.mxu0 0
  %1337 = vmatmul.mubr.bf16.gmra.mrb[0].mxu0 %v1299
  %v1338 = vpop.f32.mrb[0].mxu0
  %v1339 = vadd.f32 %v226, %v1338
  %v1340 = vpop.f32.mrb[0].mxu0
  %v1341 = vpop.f32.mrb[0].mxu0
  %v1342 = vpop.f32.mrb[0].mxu0
  %1343 = vdwg.mxu0
  %1344 = vrot.lane.b32.xlu0 %v363, 112
  %v1345 = vpop.permute.xlu0 %1344
  %1346 = vrot.lane.b32.xlu0 %v363, 80
  %v1347 = vpop.permute.xlu0 %1346
  %v1349 = vsel %vm372, %v1345, 0
  %v1352 = vsel %vm372, %v1347, 0
  %1354 = vmatprep.subr.bf16.mxu0 0
  %1355 = vmatpush1.bf16.xpose.msra.mxu0 %v1352
  %1356 = vmatprep.subr.bf16.mxu0 0
  %1357 = vmatpush1.bf16.xpose.msra.mxu0 0
  %1358 = vmatprep.subr.bf16.mxu0 0
  %1359 = vmatpush1.bf16.xpose.msra.mxu0 0
  %1360 = vmatprep.subr.bf16.mxu0 0
  %1361 = vmatpush1.bf16.xpose.msra.mxu0 0
  %1362 = vmatprep.subr.bf16.mxu0 0
  %1363 = vmatpush1.bf16.xpose.msra.mxu0 0
  %1364 = vmatprep.subr.bf16.mxu0 0
  %1365 = vmatpush1.bf16.xpose.msra.mxu0 0
  %1366 = vmatprep.subr.bf16.mxu0 0
  %1367 = vmatpush1.bf16.xpose.msra.mxu0 0
  %1368 = vmatprep.subr.bf16.mxu0 0
  %1369 = vmatpush1.bf16.xpose.msra.mxu0 0
  %1370 = vmatprep.subr.bf16.mxu0 0
  %1371 = vmatpush1.bf16.xpose.msra.mxu0 0
  %1372 = vmatprep.subr.bf16.mxu0 0
  %1373 = vmatpush1.bf16.xpose.msra.mxu0 0
  %1374 = vmatprep.subr.bf16.mxu0 0
  %1375 = vmatpush1.bf16.xpose.msra.mxu0 0
  %1376 = vmatprep.subr.bf16.mxu0 0
  %1377 = vmatpush1.bf16.xpose.msra.mxu0 0
  %1378 = vmatprep.subr.bf16.mxu0 0
  %1379 = vmatpush1.bf16.xpose.msra.mxu0 0
  %1380 = vmatprep.subr.bf16.mxu0 0
  %1381 = vmatpush1.bf16.xpose.msra.mxu0 0
  %1382 = vmatprep.subr.bf16.mxu0 0
  %1383 = vmatpush1.bf16.xpose.msra.mxu0 0
  %1384 = vmatprep.subr.bf16.mxu0 0
  %1385 = vmatpush1.bf16.xpose.msra.mxu0 0
  %1386 = vmatprep.mubr.bf16.mxu0 0
  %1387 = vmatmul.mubr.bf16.gmra.mrb[0].mxu0 %v1349
  %v1388 = vpop.f32.mrb[0].mxu0
  %v1389 = vadd.f32 %v230, %v1388
  %v1390 = vpop.f32.mrb[0].mxu0
  %v1391 = vpop.f32.mrb[0].mxu0
  %v1392 = vpop.f32.mrb[0].mxu0
  %1393 = vdwg.mxu0
  %1394 = vrot.lane.b32.xlu0 %v364, 112
  %v1395 = vpop.permute.xlu0 %1394
  %1396 = vrot.lane.b32.xlu0 %v364, 80
  %v1397 = vpop.permute.xlu0 %1396
  %v1399 = vsel %vm372, %v1395, 0
  %v1402 = vsel %vm372, %v1397, 0
  %1404 = vmatprep.subr.bf16.mxu0 0
  %1405 = vmatpush1.bf16.xpose.msra.mxu0 %v1402
  %1406 = vmatprep.subr.bf16.mxu0 0
  %1407 = vmatpush1.bf16.xpose.msra.mxu0 0
  %1408 = vmatprep.subr.bf16.mxu0 0
  %1409 = vmatpush1.bf16.xpose.msra.mxu0 0
  %1410 = vmatprep.subr.bf16.mxu0 0
  %1411 = vmatpush1.bf16.xpose.msra.mxu0 0
  %1412 = vmatprep.subr.bf16.mxu0 0
  %1413 = vmatpush1.bf16.xpose.msra.mxu0 0
  %1414 = vmatprep.subr.bf16.mxu0 0
  %1415 = vmatpush1.bf16.xpose.msra.mxu0 0
  %1416 = vmatprep.subr.bf16.mxu0 0
  %1417 = vmatpush1.bf16.xpose.msra.mxu0 0
  %1418 = vmatprep.subr.bf16.mxu0 0
  %1419 = vmatpush1.bf16.xpose.msra.mxu0 0
  %1420 = vmatprep.subr.bf16.mxu0 0
  %1421 = vmatpush1.bf16.xpose.msra.mxu0 0
  %1422 = vmatprep.subr.bf16.mxu0 0
  %1423 = vmatpush1.bf16.xpose.msra.mxu0 0
  %1424 = vmatprep.subr.bf16.mxu0 0
  %1425 = vmatpush1.bf16.xpose.msra.mxu0 0
  %1426 = vmatprep.subr.bf16.mxu0 0
  %1427 = vmatpush1.bf16.xpose.msra.mxu0 0
  %1428 = vmatprep.subr.bf16.mxu0 0
  %1429 = vmatpush1.bf16.xpose.msra.mxu0 0
  %1430 = vmatprep.subr.bf16.mxu0 0
  %1431 = vmatpush1.bf16.xpose.msra.mxu0 0
  %1432 = vmatprep.subr.bf16.mxu0 0
  %1433 = vmatpush1.bf16.xpose.msra.mxu0 0
  %1434 = vmatprep.subr.bf16.mxu0 0
  %1435 = vmatpush1.bf16.xpose.msra.mxu0 0
  %1436 = vmatprep.mubr.bf16.mxu0 0
  %1437 = vmatmul.mubr.bf16.gmra.mrb[0].mxu0 %v1399
  %v1438 = vpop.f32.mrb[0].mxu0
  %v1439 = vadd.f32 %v234, %v1438
  %v1440 = vpop.f32.mrb[0].mxu0
  %v1441 = vpop.f32.mrb[0].mxu0
  %v1442 = vpop.f32.mrb[0].mxu0
  %1443 = vdwg.mxu0
  %1444 = vrot.lane.b32.xlu0 %v365, 112
  %v1445 = vpop.permute.xlu0 %1444
  %1446 = vrot.lane.b32.xlu0 %v365, 80
  %v1447 = vpop.permute.xlu0 %1446
  %v1449 = vsel %vm372, %v1445, 0
  %v1452 = vsel %vm372, %v1447, 0
  %1454 = vmatprep.subr.bf16.mxu0 0
  %1455 = vmatpush1.bf16.xpose.msra.mxu0 %v1452
  %1456 = vmatprep.subr.bf16.mxu0 0
  %1457 = vmatpush1.bf16.xpose.msra.mxu0 0
  %1458 = vmatprep.subr.bf16.mxu0 0
  %1459 = vmatpush1.bf16.xpose.msra.mxu0 0
  %1460 = vmatprep.subr.bf16.mxu0 0
  %1461 = vmatpush1.bf16.xpose.msra.mxu0 0
  %1462 = vmatprep.subr.bf16.mxu0 0
  %1463 = vmatpush1.bf16.xpose.msra.mxu0 0
  %1464 = vmatprep.subr.bf16.mxu0 0
  %1465 = vmatpush1.bf16.xpose.msra.mxu0 0
  %1466 = vmatprep.subr.bf16.mxu0 0
  %1467 = vmatpush1.bf16.xpose.msra.mxu0 0
  %1468 = vmatprep.subr.bf16.mxu0 0
  %1469 = vmatpush1.bf16.xpose.msra.mxu0 0
  %1470 = vmatprep.subr.bf16.mxu0 0
  %1471 = vmatpush1.bf16.xpose.msra.mxu0 0
  %1472 = vmatprep.subr.bf16.mxu0 0
  %1473 = vmatpush1.bf16.xpose.msra.mxu0 0
  %1474 = vmatprep.subr.bf16.mxu0 0
  %1475 = vmatpush1.bf16.xpose.msra.mxu0 0
  %1476 = vmatprep.subr.bf16.mxu0 0
  %1477 = vmatpush1.bf16.xpose.msra.mxu0 0
  %1478 = vmatprep.subr.bf16.mxu0 0
  %1479 = vmatpush1.bf16.xpose.msra.mxu0 0
  %1480 = vmatprep.subr.bf16.mxu0 0
  %1481 = vmatpush1.bf16.xpose.msra.mxu0 0
  %1482 = vmatprep.subr.bf16.mxu0 0
  %1483 = vmatpush1.bf16.xpose.msra.mxu0 0
  %1484 = vmatprep.subr.bf16.mxu0 0
  %1485 = vmatpush1.bf16.xpose.msra.mxu0 0
  %1486 = vmatprep.mubr.bf16.mxu0 0
  %1487 = vmatmul.mubr.bf16.gmra.mrb[0].mxu0 %v1449
  %v1488 = vpop.f32.mrb[0].mxu0
  %v1489 = vadd.f32 %v238, %v1488
  %v1490 = vpop.f32.mrb[0].mxu0
  %v1491 = vpop.f32.mrb[0].mxu0
  %v1492 = vpop.f32.mrb[0].mxu0
  %1493 = vdwg.mxu0
  %1494 = vrot.lane.b32.xlu0 %v366, 112
  %v1495 = vpop.permute.xlu0 %1494
  %1496 = vrot.lane.b32.xlu0 %v366, 80
  %v1497 = vpop.permute.xlu0 %1496
  %v1499 = vsel %vm372, %v1495, 0
  %v1502 = vsel %vm372, %v1497, 0
  %1504 = vmatprep.subr.bf16.mxu0 0
  %1505 = vmatpush1.bf16.xpose.msra.mxu0 %v1502
  %1506 = vmatprep.subr.bf16.mxu0 0
  %1507 = vmatpush1.bf16.xpose.msra.mxu0 0
  %1508 = vmatprep.subr.bf16.mxu0 0
  %1509 = vmatpush1.bf16.xpose.msra.mxu0 0
  %1510 = vmatprep.subr.bf16.mxu0 0
  %1511 = vmatpush1.bf16.xpose.msra.mxu0 0
  %1512 = vmatprep.subr.bf16.mxu0 0
  %1513 = vmatpush1.bf16.xpose.msra.mxu0 0
  %1514 = vmatprep.subr.bf16.mxu0 0
  %1515 = vmatpush1.bf16.xpose.msra.mxu0 0
  %1516 = vmatprep.subr.bf16.mxu0 0
  %1517 = vmatpush1.bf16.xpose.msra.mxu0 0
  %1518 = vmatprep.subr.bf16.mxu0 0
  %1519 = vmatpush1.bf16.xpose.msra.mxu0 0
  %1520 = vmatprep.subr.bf16.mxu0 0
  %1521 = vmatpush1.bf16.xpose.msra.mxu0 0
  %1522 = vmatprep.subr.bf16.mxu0 0
  %1523 = vmatpush1.bf16.xpose.msra.mxu0 0
  %1524 = vmatprep.subr.bf16.mxu0 0
  %1525 = vmatpush1.bf16.xpose.msra.mxu0 0
  %1526 = vmatprep.subr.bf16.mxu0 0
  %1527 = vmatpush1.bf16.xpose.msra.mxu0 0
  %1528 = vmatprep.subr.bf16.mxu0 0
  %1529 = vmatpush1.bf16.xpose.msra.mxu0 0
  %1530 = vmatprep.subr.bf16.mxu0 0
  %1531 = vmatpush1.bf16.xpose.msra.mxu0 0
  %1532 = vmatprep.subr.bf16.mxu0 0
  %1533 = vmatpush1.bf16.xpose.msra.mxu0 0
  %1534 = vmatprep.subr.bf16.mxu0 0
  %1535 = vmatpush1.bf16.xpose.msra.mxu0 0
  %1536 = vmatprep.mubr.bf16.mxu0 0
  %1537 = vmatmul.mubr.bf16.gmra.mrb[0].mxu0 %v1499
  %v1538 = vpop.f32.mrb[0].mxu0
  %v1539 = vadd.f32 %v242, %v1538
  %v1540 = vpop.f32.mrb[0].mxu0
  %v1541 = vpop.f32.mrb[0].mxu0
  %v1542 = vpop.f32.mrb[0].mxu0
  %1543 = vdwg.mxu0
  %1544 = vrot.lane.b32.xlu0 %v367, 112
  %v1545 = vpop.permute.xlu0 %1544
  %1546 = vrot.lane.b32.xlu0 %v367, 80
  %v1547 = vpop.permute.xlu0 %1546
  %v1549 = vsel %vm372, %v1545, 0
  %v1552 = vsel %vm372, %v1547, 0
  %1554 = vmatprep.subr.bf16.mxu0 0
  %1555 = vmatpush1.bf16.xpose.msra.mxu0 %v1552
  %1556 = vmatprep.subr.bf16.mxu0 0
  %1557 = vmatpush1.bf16.xpose.msra.mxu0 0
  %1558 = vmatprep.subr.bf16.mxu0 0
  %1559 = vmatpush1.bf16.xpose.msra.mxu0 0
  %1560 = vmatprep.subr.bf16.mxu0 0
  %1561 = vmatpush1.bf16.xpose.msra.mxu0 0
  %1562 = vmatprep.subr.bf16.mxu0 0
  %1563 = vmatpush1.bf16.xpose.msra.mxu0 0
  %1564 = vmatprep.subr.bf16.mxu0 0
  %1565 = vmatpush1.bf16.xpose.msra.mxu0 0
  %1566 = vmatprep.subr.bf16.mxu0 0
  %1567 = vmatpush1.bf16.xpose.msra.mxu0 0
  %1568 = vmatprep.subr.bf16.mxu0 0
  %1569 = vmatpush1.bf16.xpose.msra.mxu0 0
  %1570 = vmatprep.subr.bf16.mxu0 0
  %1571 = vmatpush1.bf16.xpose.msra.mxu0 0
  %1572 = vmatprep.subr.bf16.mxu0 0
  %1573 = vmatpush1.bf16.xpose.msra.mxu0 0
  %1574 = vmatprep.subr.bf16.mxu0 0
  %1575 = vmatpush1.bf16.xpose.msra.mxu0 0
  %1576 = vmatprep.subr.bf16.mxu0 0
  %1577 = vmatpush1.bf16.xpose.msra.mxu0 0
  %1578 = vmatprep.subr.bf16.mxu0 0
  %1579 = vmatpush1.bf16.xpose.msra.mxu0 0
  %1580 = vmatprep.subr.bf16.mxu0 0
  %1581 = vmatpush1.bf16.xpose.msra.mxu0 0
  %1582 = vmatprep.subr.bf16.mxu0 0
  %1583 = vmatpush1.bf16.xpose.msra.mxu0 0
  %1584 = vmatprep.subr.bf16.mxu0 0
  %1585 = vmatpush1.bf16.xpose.msra.mxu0 0
  %1586 = vmatprep.mubr.bf16.mxu0 0
  %1587 = vmatmul.mubr.bf16.gmra.mrb[0].mxu0 %v1549
  %v1588 = vpop.f32.mrb[0].mxu0
  %v1589 = vadd.f32 %v246, %v1588
  %v1590 = vpop.f32.mrb[0].mxu0
  %v1591 = vpop.f32.mrb[0].mxu0
  %v1592 = vpop.f32.mrb[0].mxu0
  %1593 = vdwg.mxu0
  %1594 = vrot.lane.b32.xlu0 %v368, 112
  %v1595 = vpop.permute.xlu0 %1594
  %1596 = vrot.lane.b32.xlu0 %v368, 80
  %v1597 = vpop.permute.xlu0 %1596
  %v1599 = vsel %vm372, %v1595, 0
  %v1602 = vsel %vm372, %v1597, 0
  %1604 = vmatprep.subr.bf16.mxu0 0
  %1605 = vmatpush1.bf16.xpose.msra.mxu0 %v1602
  %1606 = vmatprep.subr.bf16.mxu0 0
  %1607 = vmatpush1.bf16.xpose.msra.mxu0 0
  %1608 = vmatprep.subr.bf16.mxu0 0
  %1609 = vmatpush1.bf16.xpose.msra.mxu0 0
  %1610 = vmatprep.subr.bf16.mxu0 0
  %1611 = vmatpush1.bf16.xpose.msra.mxu0 0
  %1612 = vmatprep.subr.bf16.mxu0 0
  %1613 = vmatpush1.bf16.xpose.msra.mxu0 0
  %1614 = vmatprep.subr.bf16.mxu0 0
  %1615 = vmatpush1.bf16.xpose.msra.mxu0 0
  %1616 = vmatprep.subr.bf16.mxu0 0
  %1617 = vmatpush1.bf16.xpose.msra.mxu0 0
  %1618 = vmatprep.subr.bf16.mxu0 0
  %1619 = vmatpush1.bf16.xpose.msra.mxu0 0
  %1620 = vmatprep.subr.bf16.mxu0 0
  %1621 = vmatpush1.bf16.xpose.msra.mxu0 0
  %1622 = vmatprep.subr.bf16.mxu0 0
  %1623 = vmatpush1.bf16.xpose.msra.mxu0 0
  %1624 = vmatprep.subr.bf16.mxu0 0
  %1625 = vmatpush1.bf16.xpose.msra.mxu0 0
  %1626 = vmatprep.subr.bf16.mxu0 0
  %1627 = vmatpush1.bf16.xpose.msra.mxu0 0
  %1628 = vmatprep.subr.bf16.mxu0 0
  %1629 = vmatpush1.bf16.xpose.msra.mxu0 0
  %1630 = vmatprep.subr.bf16.mxu0 0
  %1631 = vmatpush1.bf16.xpose.msra.mxu0 0
  %1632 = vmatprep.subr.bf16.mxu0 0
  %1633 = vmatpush1.bf16.xpose.msra.mxu0 0
  %1634 = vmatprep.subr.bf16.mxu0 0
  %1635 = vmatpush1.bf16.xpose.msra.mxu0 0
  %1636 = vmatprep.mubr.bf16.mxu0 0
  %1637 = vmatmul.mubr.bf16.gmra.mrb[0].mxu0 %v1599
  %v1638 = vpop.f32.mrb[0].mxu0
  %v1639 = vadd.f32 %v250, %v1638
  %v1640 = vpop.f32.mrb[0].mxu0
  %v1641 = vpop.f32.mrb[0].mxu0
  %v1642 = vpop.f32.mrb[0].mxu0
  %1643 = vdwg.mxu0
  %v1644 = vsel %vm762, %v1289, -inf
  %1645 = vmax.xlane.f32.xlu0 %v1644
  %v1646 = vpop.xlane.xlu0 %1645
  %v1647 = vsel %vm762, %v1339, -inf
  %1648 = vmax.xlane.f32.xlu0 %v1647
  %v1649 = vpop.xlane.xlu0 %1648
  %v1650 = vsel %vm762, %v1389, -inf
  %1651 = vmax.xlane.f32.xlu0 %v1650
  %v1652 = vpop.xlane.xlu0 %1651
  %v1653 = vsel %vm762, %v1439, -inf
  %1654 = vmax.xlane.f32.xlu0 %v1653
  %v1655 = vpop.xlane.xlu0 %1654
  %v1656 = vsel %vm762, %v1489, -inf
  %1657 = vmax.xlane.f32.xlu0 %v1656
  %v1658 = vpop.xlane.xlu0 %1657
  %v1659 = vsel %vm762, %v1539, -inf
  %1660 = vmax.xlane.f32.xlu0 %v1659
  %v1661 = vpop.xlane.xlu0 %1660
  %v1662 = vsel %vm762, %v1589, -inf
  %1663 = vmax.xlane.f32.xlu0 %v1662
  %v1664 = vpop.xlane.xlu0 %1663
  %v1665 = vsel %vm762, %v1639, -inf
  %1666 = vmax.xlane.f32.xlu0 %v1665
  %v1667 = vpop.xlane.xlu0 %1666
  %v1668 = vsub.f32 %v1289, %v1646
  %v1669 = vsub.f32 %v1339, %v1649
  %v1670 = vsub.f32 %v1389, %v1652
  %v1671 = vsub.f32 %v1439, %v1655
  %v1672 = vsub.f32 %v1489, %v1658
  %v1673 = vsub.f32 %v1539, %v1661
  %v1674 = vsub.f32 %v1589, %v1664
  %v1675 = vsub.f32 %v1639, %v1667
  %v1676 = vmul.f32 %v1668, 1.442695
  %v1677 = vpow.pop %v1676
  %v1678 = vmul.f32 %v1669, 1.442695
  %v1679 = vpow.pop %v1678
  %v1680 = vmul.f32 %v1670, 1.442695
  %v1681 = vpow.pop %v1680
  %v1682 = vmul.f32 %v1671, 1.442695
  %v1683 = vpow.pop %v1682
  %v1684 = vmul.f32 %v1672, 1.442695
  %v1685 = vpow.pop %v1684
  %v1686 = vmul.f32 %v1673, 1.442695
  %v1687 = vpow.pop %v1686
  %v1688 = vmul.f32 %v1674, 1.442695
  %v1689 = vpow.pop %v1688
  %v1690 = vmul.f32 %v1675, 1.442695
  %v1691 = vpow.pop %v1690
  %v1692 = vsel %vm762, %v1677, 0.0
  %1693 = vadd.xlane.f32.xlu0 %v1692
  %v1694 = vpop.xlane.xlu0 %1693
  %v1695 = vsel %vm762, %v1679, 0.0
  %1696 = vadd.xlane.f32.xlu0 %v1695
  %v1697 = vpop.xlane.xlu0 %1696
  %v1698 = vsel %vm762, %v1681, 0.0
  %1699 = vadd.xlane.f32.xlu0 %v1698
  %v1700 = vpop.xlane.xlu0 %1699
  %v1701 = vsel %vm762, %v1683, 0.0
  %1702 = vadd.xlane.f32.xlu0 %v1701
  %v1703 = vpop.xlane.xlu0 %1702
  %v1704 = vsel %vm762, %v1685, 0.0
  %1705 = vadd.xlane.f32.xlu0 %v1704
  %v1706 = vpop.xlane.xlu0 %1705
  %v1707 = vsel %vm762, %v1687, 0.0
  %1708 = vadd.xlane.f32.xlu0 %v1707
  %v1709 = vpop.xlane.xlu0 %1708
  %v1710 = vsel %vm762, %v1689, 0.0
  %1711 = vadd.xlane.f32.xlu0 %v1710
  %v1712 = vpop.xlane.xlu0 %1711
  %v1713 = vsel %vm762, %v1691, 0.0
  %1714 = vadd.xlane.f32.xlu0 %v1713
  %v1715 = vpop.xlane.xlu0 %1714
  %v1716 = vrcp.pop %v1694
  %v1717 = vmul.f32 %v1677, %v1716
  %v1718 = vrcp.pop %v1697
  %v1719 = vmul.f32 %v1679, %v1718
  %v1720 = vrcp.pop %v1700
  %v1721 = vmul.f32 %v1681, %v1720
  %v1722 = vrcp.pop %v1703
  %v1723 = vmul.f32 %v1683, %v1722
  %v1724 = vrcp.pop %v1706
  %v1725 = vmul.f32 %v1685, %v1724
  %v1726 = vrcp.pop %v1709
  %v1727 = vmul.f32 %v1687, %v1726
  %v1728 = vrcp.pop %v1712
  %v1729 = vmul.f32 %v1689, %v1728
  %v1730 = vrcp.pop %v1715
  %v1731 = vmul.f32 %v1691, %v1730
  %v1732 = vpack.c.bf16 %v1717, %v1717
  %v1733 = vpack.c.bf16 %v1719, %v1719
  %v1734 = vpack.c.bf16 %v1721, %v1721
  %v1735 = vpack.c.bf16 %v1723, %v1723
  %v1736 = vpack.c.bf16 %v1725, %v1725
  %v1737 = vpack.c.bf16 %v1727, %v1727
  %v1738 = vpack.c.bf16 %v1729, %v1729
  %v1739 = vpack.c.bf16 %v1731, %v1731
  %1740 = vrot.lane.b32.xlu0 %v361, 48
  %v1741 = vpop.permute.xlu0 %1740
  %v1743 = vsel %vm762, %v1732, 0
  %v1746 = vsel %vm864, %v1741, 0
  %1748 = vmatprep.subr.bf16.mxu0 0
  %1749 = vmatpush1.bf16.msra.mxu0 %v1746
  %1750 = vmatprep.subr.bf16.mxu0 0
  %1751 = vmatpush1.bf16.msra.mxu0 0
  %1752 = vmatprep.subr.bf16.mxu0 0
  %1753 = vmatpush1.bf16.msra.mxu0 0
  %1754 = vmatprep.subr.bf16.mxu0 0
  %1755 = vmatpush1.bf16.msra.mxu0 0
  %1756 = vmatprep.subr.bf16.mxu0 0
  %1757 = vmatpush1.bf16.msra.mxu0 0
  %1758 = vmatprep.subr.bf16.mxu0 0
  %1759 = vmatpush1.bf16.msra.mxu0 0
  %1760 = vmatprep.subr.bf16.mxu0 0
  %1761 = vmatpush1.bf16.msra.mxu0 0
  %1762 = vmatprep.subr.bf16.mxu0 0
  %1763 = vmatpush1.bf16.msra.mxu0 0
  %1764 = vmatprep.subr.bf16.mxu0 0
  %1765 = vmatpush1.bf16.msra.mxu0 0
  %1766 = vmatprep.subr.bf16.mxu0 0
  %1767 = vmatpush1.bf16.msra.mxu0 0
  %1768 = vmatprep.subr.bf16.mxu0 0
  %1769 = vmatpush1.bf16.msra.mxu0 0
  %1770 = vmatprep.subr.bf16.mxu0 0
  %1771 = vmatpush1.bf16.msra.mxu0 0
  %1772 = vmatprep.subr.bf16.mxu0 0
  %1773 = vmatpush1.bf16.msra.mxu0 0
  %1774 = vmatprep.subr.bf16.mxu0 0
  %1775 = vmatpush1.bf16.msra.mxu0 0
  %1776 = vmatprep.subr.bf16.mxu0 0
  %1777 = vmatpush1.bf16.msra.mxu0 0
  %1778 = vmatprep.subr.bf16.mxu0 0
  %1779 = vmatpush1.bf16.msra.mxu0 0
  %1780 = vmatprep.mubr.bf16.mxu0 0
  %1781 = vmatmul.mubr.bf16.gmra.mrb[0].mxu0 %v1743
  %v1782 = vpop.f32.mrb[0].mxu0
  %v1783 = vadd.f32 0.0, %v1782
  %v1784 = vpop.f32.mrb[0].mxu0
  %v1785 = vpop.f32.mrb[0].mxu0
  %v1786 = vpop.f32.mrb[0].mxu0
  %1787 = vdwg.mxu0
  %1788 = vrot.lane.b32.xlu0 %v362, 48
  %v1789 = vpop.permute.xlu0 %1788
  %v1791 = vsel %vm762, %v1733, 0
  %v1794 = vsel %vm864, %v1789, 0
  %1796 = vmatprep.subr.bf16.mxu0 0
  %1797 = vmatpush1.bf16.msra.mxu0 %v1794
  %1798 = vmatprep.subr.bf16.mxu0 0
  %1799 = vmatpush1.bf16.msra.mxu0 0
  %1800 = vmatprep.subr.bf16.mxu0 0
  %1801 = vmatpush1.bf16.msra.mxu0 0
  %1802 = vmatprep.subr.bf16.mxu0 0
  %1803 = vmatpush1.bf16.msra.mxu0 0
  %1804 = vmatprep.subr.bf16.mxu0 0
  %1805 = vmatpush1.bf16.msra.mxu0 0
  %1806 = vmatprep.subr.bf16.mxu0 0
  %1807 = vmatpush1.bf16.msra.mxu0 0
  %1808 = vmatprep.subr.bf16.mxu0 0
  %1809 = vmatpush1.bf16.msra.mxu0 0
  %1810 = vmatprep.subr.bf16.mxu0 0
  %1811 = vmatpush1.bf16.msra.mxu0 0
  %1812 = vmatprep.subr.bf16.mxu0 0
  %1813 = vmatpush1.bf16.msra.mxu0 0
  %1814 = vmatprep.subr.bf16.mxu0 0
  %1815 = vmatpush1.bf16.msra.mxu0 0
  %1816 = vmatprep.subr.bf16.mxu0 0
  %1817 = vmatpush1.bf16.msra.mxu0 0
  %1818 = vmatprep.subr.bf16.mxu0 0
  %1819 = vmatpush1.bf16.msra.mxu0 0
  %1820 = vmatprep.subr.bf16.mxu0 0
  %1821 = vmatpush1.bf16.msra.mxu0 0
  %1822 = vmatprep.subr.bf16.mxu0 0
  %1823 = vmatpush1.bf16.msra.mxu0 0
  %1824 = vmatprep.subr.bf16.mxu0 0
  %1825 = vmatpush1.bf16.msra.mxu0 0
  %1826 = vmatprep.subr.bf16.mxu0 0
  %1827 = vmatpush1.bf16.msra.mxu0 0
  %1828 = vmatprep.mubr.bf16.mxu0 0
  %1829 = vmatmul.mubr.bf16.gmra.mrb[0].mxu0 %v1791
  %v1830 = vpop.f32.mrb[0].mxu0
  %v1831 = vadd.f32 0.0, %v1830
  %v1832 = vpop.f32.mrb[0].mxu0
  %v1833 = vpop.f32.mrb[0].mxu0
  %v1834 = vpop.f32.mrb[0].mxu0
  %1835 = vdwg.mxu0
  %1836 = vrot.lane.b32.xlu0 %v363, 48
  %v1837 = vpop.permute.xlu0 %1836
  %v1839 = vsel %vm762, %v1734, 0
  %v1842 = vsel %vm864, %v1837, 0
  %1844 = vmatprep.subr.bf16.mxu0 0
  %1845 = vmatpush1.bf16.msra.mxu0 %v1842
  %1846 = vmatprep.subr.bf16.mxu0 0
  %1847 = vmatpush1.bf16.msra.mxu0 0
  %1848 = vmatprep.subr.bf16.mxu0 0
  %1849 = vmatpush1.bf16.msra.mxu0 0
  %1850 = vmatprep.subr.bf16.mxu0 0
  %1851 = vmatpush1.bf16.msra.mxu0 0
  %1852 = vmatprep.subr.bf16.mxu0 0
  %1853 = vmatpush1.bf16.msra.mxu0 0
  %1854 = vmatprep.subr.bf16.mxu0 0
  %1855 = vmatpush1.bf16.msra.mxu0 0
  %1856 = vmatprep.subr.bf16.mxu0 0
  %1857 = vmatpush1.bf16.msra.mxu0 0
  %1858 = vmatprep.subr.bf16.mxu0 0
  %1859 = vmatpush1.bf16.msra.mxu0 0
  %1860 = vmatprep.subr.bf16.mxu0 0
  %1861 = vmatpush1.bf16.msra.mxu0 0
  %1862 = vmatprep.subr.bf16.mxu0 0
  %1863 = vmatpush1.bf16.msra.mxu0 0
  %1864 = vmatprep.subr.bf16.mxu0 0
  %1865 = vmatpush1.bf16.msra.mxu0 0
  %1866 = vmatprep.subr.bf16.mxu0 0
  %1867 = vmatpush1.bf16.msra.mxu0 0
  %1868 = vmatprep.subr.bf16.mxu0 0
  %1869 = vmatpush1.bf16.msra.mxu0 0
  %1870 = vmatprep.subr.bf16.mxu0 0
  %1871 = vmatpush1.bf16.msra.mxu0 0
  %1872 = vmatprep.subr.bf16.mxu0 0
  %1873 = vmatpush1.bf16.msra.mxu0 0
  %1874 = vmatprep.subr.bf16.mxu0 0
  %1875 = vmatpush1.bf16.msra.mxu0 0
  %1876 = vmatprep.mubr.bf16.mxu0 0
  %1877 = vmatmul.mubr.bf16.gmra.mrb[0].mxu0 %v1839
  %v1878 = vpop.f32.mrb[0].mxu0
  %v1879 = vadd.f32 0.0, %v1878
  %v1880 = vpop.f32.mrb[0].mxu0
  %v1881 = vpop.f32.mrb[0].mxu0
  %v1882 = vpop.f32.mrb[0].mxu0
  %1883 = vdwg.mxu0
  %1884 = vrot.lane.b32.xlu0 %v364, 48
  %v1885 = vpop.permute.xlu0 %1884
  %v1887 = vsel %vm762, %v1735, 0
  %v1890 = vsel %vm864, %v1885, 0
  %1892 = vmatprep.subr.bf16.mxu0 0
  %1893 = vmatpush1.bf16.msra.mxu0 %v1890
  %1894 = vmatprep.subr.bf16.mxu0 0
  %1895 = vmatpush1.bf16.msra.mxu0 0
  %1896 = vmatprep.subr.bf16.mxu0 0
  %1897 = vmatpush1.bf16.msra.mxu0 0
  %1898 = vmatprep.subr.bf16.mxu0 0
  %1899 = vmatpush1.bf16.msra.mxu0 0
  %1900 = vmatprep.subr.bf16.mxu0 0
  %1901 = vmatpush1.bf16.msra.mxu0 0
  %1902 = vmatprep.subr.bf16.mxu0 0
  %1903 = vmatpush1.bf16.msra.mxu0 0
  %1904 = vmatprep.subr.bf16.mxu0 0
  %1905 = vmatpush1.bf16.msra.mxu0 0
  %1906 = vmatprep.subr.bf16.mxu0 0
  %1907 = vmatpush1.bf16.msra.mxu0 0
  %1908 = vmatprep.subr.bf16.mxu0 0
  %1909 = vmatpush1.bf16.msra.mxu0 0
  %1910 = vmatprep.subr.bf16.mxu0 0
  %1911 = vmatpush1.bf16.msra.mxu0 0
  %1912 = vmatprep.subr.bf16.mxu0 0
  %1913 = vmatpush1.bf16.msra.mxu0 0
  %1914 = vmatprep.subr.bf16.mxu0 0
  %1915 = vmatpush1.bf16.msra.mxu0 0
  %1916 = vmatprep.subr.bf16.mxu0 0
  %1917 = vmatpush1.bf16.msra.mxu0 0
  %1918 = vmatprep.subr.bf16.mxu0 0
  %1919 = vmatpush1.bf16.msra.mxu0 0
  %1920 = vmatprep.subr.bf16.mxu0 0
  %1921 = vmatpush1.bf16.msra.mxu0 0
  %1922 = vmatprep.subr.bf16.mxu0 0
  %1923 = vmatpush1.bf16.msra.mxu0 0
  %1924 = vmatprep.mubr.bf16.mxu0 0
  %1925 = vmatmul.mubr.bf16.gmra.mrb[0].mxu0 %v1887
  %v1926 = vpop.f32.mrb[0].mxu0
  %v1927 = vadd.f32 0.0, %v1926
  %v1928 = vpop.f32.mrb[0].mxu0
  %v1929 = vpop.f32.mrb[0].mxu0
  %v1930 = vpop.f32.mrb[0].mxu0
  %1931 = vdwg.mxu0
  %1932 = vrot.lane.b32.xlu0 %v365, 48
  %v1933 = vpop.permute.xlu0 %1932
  %v1935 = vsel %vm762, %v1736, 0
  %v1938 = vsel %vm864, %v1933, 0
  %1940 = vmatprep.subr.bf16.mxu0 0
  %1941 = vmatpush1.bf16.msra.mxu0 %v1938
  %1942 = vmatprep.subr.bf16.mxu0 0
  %1943 = vmatpush1.bf16.msra.mxu0 0
  %1944 = vmatprep.subr.bf16.mxu0 0
  %1945 = vmatpush1.bf16.msra.mxu0 0
  %1946 = vmatprep.subr.bf16.mxu0 0
  %1947 = vmatpush1.bf16.msra.mxu0 0
  %1948 = vmatprep.subr.bf16.mxu0 0
  %1949 = vmatpush1.bf16.msra.mxu0 0
  %1950 = vmatprep.subr.bf16.mxu0 0
  %1951 = vmatpush1.bf16.msra.mxu0 0
  %1952 = vmatprep.subr.bf16.mxu0 0
  %1953 = vmatpush1.bf16.msra.mxu0 0
  %1954 = vmatprep.subr.bf16.mxu0 0
  %1955 = vmatpush1.bf16.msra.mxu0 0
  %1956 = vmatprep.subr.bf16.mxu0 0
  %1957 = vmatpush1.bf16.msra.mxu0 0
  %1958 = vmatprep.subr.bf16.mxu0 0
  %1959 = vmatpush1.bf16.msra.mxu0 0
  %1960 = vmatprep.subr.bf16.mxu0 0
  %1961 = vmatpush1.bf16.msra.mxu0 0
  %1962 = vmatprep.subr.bf16.mxu0 0
  %1963 = vmatpush1.bf16.msra.mxu0 0
  %1964 = vmatprep.subr.bf16.mxu0 0
  %1965 = vmatpush1.bf16.msra.mxu0 0
  %1966 = vmatprep.subr.bf16.mxu0 0
  %1967 = vmatpush1.bf16.msra.mxu0 0
  %1968 = vmatprep.subr.bf16.mxu0 0
  %1969 = vmatpush1.bf16.msra.mxu0 0
  %1970 = vmatprep.subr.bf16.mxu0 0
  %1971 = vmatpush1.bf16.msra.mxu0 0
  %1972 = vmatprep.mubr.bf16.mxu0 0
  %1973 = vmatmul.mubr.bf16.gmra.mrb[0].mxu0 %v1935
  %v1974 = vpop.f32.mrb[0].mxu0
  %v1975 = vadd.f32 0.0, %v1974
  %v1976 = vpop.f32.mrb[0].mxu0
  %v1977 = vpop.f32.mrb[0].mxu0
  %v1978 = vpop.f32.mrb[0].mxu0
  %1979 = vdwg.mxu0
  %1980 = vrot.lane.b32.xlu0 %v366, 48
  %v1981 = vpop.permute.xlu0 %1980
  %v1983 = vsel %vm762, %v1737, 0
  %v1986 = vsel %vm864, %v1981, 0
  %1988 = vmatprep.subr.bf16.mxu0 0
  %1989 = vmatpush1.bf16.msra.mxu0 %v1986
  %1990 = vmatprep.subr.bf16.mxu0 0
  %1991 = vmatpush1.bf16.msra.mxu0 0
  %1992 = vmatprep.subr.bf16.mxu0 0
  %1993 = vmatpush1.bf16.msra.mxu0 0
  %1994 = vmatprep.subr.bf16.mxu0 0
  %1995 = vmatpush1.bf16.msra.mxu0 0
  %1996 = vmatprep.subr.bf16.mxu0 0
  %1997 = vmatpush1.bf16.msra.mxu0 0
  %1998 = vmatprep.subr.bf16.mxu0 0
  %1999 = vmatpush1.bf16.msra.mxu0 0
  %2000 = vmatprep.subr.bf16.mxu0 0
  %2001 = vmatpush1.bf16.msra.mxu0 0
  %2002 = vmatprep.subr.bf16.mxu0 0
  %2003 = vmatpush1.bf16.msra.mxu0 0
  %2004 = vmatprep.subr.bf16.mxu0 0
  %2005 = vmatpush1.bf16.msra.mxu0 0
  %2006 = vmatprep.subr.bf16.mxu0 0
  %2007 = vmatpush1.bf16.msra.mxu0 0
  %2008 = vmatprep.subr.bf16.mxu0 0
  %2009 = vmatpush1.bf16.msra.mxu0 0
  %2010 = vmatprep.subr.bf16.mxu0 0
  %2011 = vmatpush1.bf16.msra.mxu0 0
  %2012 = vmatprep.subr.bf16.mxu0 0
  %2013 = vmatpush1.bf16.msra.mxu0 0
  %2014 = vmatprep.subr.bf16.mxu0 0
  %2015 = vmatpush1.bf16.msra.mxu0 0
  %2016 = vmatprep.subr.bf16.mxu0 0
  %2017 = vmatpush1.bf16.msra.mxu0 0
  %2018 = vmatprep.subr.bf16.mxu0 0
  %2019 = vmatpush1.bf16.msra.mxu0 0
  %2020 = vmatprep.mubr.bf16.mxu0 0
  %2021 = vmatmul.mubr.bf16.gmra.mrb[0].mxu0 %v1983
  %v2022 = vpop.f32.mrb[0].mxu0
  %v2023 = vadd.f32 0.0, %v2022
  %v2024 = vpop.f32.mrb[0].mxu0
  %v2025 = vpop.f32.mrb[0].mxu0
  %v2026 = vpop.f32.mrb[0].mxu0
  %2027 = vdwg.mxu0
  %2028 = vrot.lane.b32.xlu0 %v367, 48
  %v2029 = vpop.permute.xlu0 %2028
  %v2031 = vsel %vm762, %v1738, 0
  %v2034 = vsel %vm864, %v2029, 0
  %2036 = vmatprep.subr.bf16.mxu0 0
  %2037 = vmatpush1.bf16.msra.mxu0 %v2034
  %2038 = vmatprep.subr.bf16.mxu0 0
  %2039 = vmatpush1.bf16.msra.mxu0 0
  %2040 = vmatprep.subr.bf16.mxu0 0
  %2041 = vmatpush1.bf16.msra.mxu0 0
  %2042 = vmatprep.subr.bf16.mxu0 0
  %2043 = vmatpush1.bf16.msra.mxu0 0
  %2044 = vmatprep.subr.bf16.mxu0 0
  %2045 = vmatpush1.bf16.msra.mxu0 0
  %2046 = vmatprep.subr.bf16.mxu0 0
  %2047 = vmatpush1.bf16.msra.mxu0 0
  %2048 = vmatprep.subr.bf16.mxu0 0
  %2049 = vmatpush1.bf16.msra.mxu0 0
  %2050 = vmatprep.subr.bf16.mxu0 0
  %2051 = vmatpush1.bf16.msra.mxu0 0
  %2052 = vmatprep.subr.bf16.mxu0 0
  %2053 = vmatpush1.bf16.msra.mxu0 0
  %2054 = vmatprep.subr.bf16.mxu0 0
  %2055 = vmatpush1.bf16.msra.mxu0 0
  %2056 = vmatprep.subr.bf16.mxu0 0
  %2057 = vmatpush1.bf16.msra.mxu0 0
  %2058 = vmatprep.subr.bf16.mxu0 0
  %2059 = vmatpush1.bf16.msra.mxu0 0
  %2060 = vmatprep.subr.bf16.mxu0 0
  %2061 = vmatpush1.bf16.msra.mxu0 0
  %2062 = vmatprep.subr.bf16.mxu0 0
  %2063 = vmatpush1.bf16.msra.mxu0 0
  %2064 = vmatprep.subr.bf16.mxu0 0
  %2065 = vmatpush1.bf16.msra.mxu0 0
  %2066 = vmatprep.subr.bf16.mxu0 0
  %2067 = vmatpush1.bf16.msra.mxu0 0
  %2068 = vmatprep.mubr.bf16.mxu0 0
  %2069 = vmatmul.mubr.bf16.gmra.mrb[0].mxu0 %v2031
  %v2070 = vpop.f32.mrb[0].mxu0
  %v2071 = vadd.f32 0.0, %v2070
  %v2072 = vpop.f32.mrb[0].mxu0
  %v2073 = vpop.f32.mrb[0].mxu0
  %v2074 = vpop.f32.mrb[0].mxu0
  %2075 = vdwg.mxu0
  %2076 = vrot.lane.b32.xlu0 %v368, 48
  %v2077 = vpop.permute.xlu0 %2076
  %v2079 = vsel %vm762, %v1739, 0
  %v2082 = vsel %vm864, %v2077, 0
  %2084 = vmatprep.subr.bf16.mxu0 0
  %2085 = vmatpush1.bf16.msra.mxu0 %v2082
  %2086 = vmatprep.subr.bf16.mxu0 0
  %2087 = vmatpush1.bf16.msra.mxu0 0
  %2088 = vmatprep.subr.bf16.mxu0 0
  %2089 = vmatpush1.bf16.msra.mxu0 0
  %2090 = vmatprep.subr.bf16.mxu0 0
  %2091 = vmatpush1.bf16.msra.mxu0 0
  %2092 = vmatprep.subr.bf16.mxu0 0
  %2093 = vmatpush1.bf16.msra.mxu0 0
  %2094 = vmatprep.subr.bf16.mxu0 0
  %2095 = vmatpush1.bf16.msra.mxu0 0
  %2096 = vmatprep.subr.bf16.mxu0 0
  %2097 = vmatpush1.bf16.msra.mxu0 0
  %2098 = vmatprep.subr.bf16.mxu0 0
  %2099 = vmatpush1.bf16.msra.mxu0 0
  %2100 = vmatprep.subr.bf16.mxu0 0
  %2101 = vmatpush1.bf16.msra.mxu0 0
  %2102 = vmatprep.subr.bf16.mxu0 0
  %2103 = vmatpush1.bf16.msra.mxu0 0
  %2104 = vmatprep.subr.bf16.mxu0 0
  %2105 = vmatpush1.bf16.msra.mxu0 0
  %2106 = vmatprep.subr.bf16.mxu0 0
  %2107 = vmatpush1.bf16.msra.mxu0 0
  %2108 = vmatprep.subr.bf16.mxu0 0
  %2109 = vmatpush1.bf16.msra.mxu0 0
  %2110 = vmatprep.subr.bf16.mxu0 0
  %2111 = vmatpush1.bf16.msra.mxu0 0
  %2112 = vmatprep.subr.bf16.mxu0 0
  %2113 = vmatpush1.bf16.msra.mxu0 0
  %2114 = vmatprep.subr.bf16.mxu0 0
  %2115 = vmatpush1.bf16.msra.mxu0 0
  %2116 = vmatprep.mubr.bf16.mxu0 0
  %2117 = vmatmul.mubr.bf16.gmra.mrb[0].mxu0 %v2079
  %v2118 = vpop.f32.mrb[0].mxu0
  %v2119 = vadd.f32 0.0, %v2118
  %v2120 = vpop.f32.mrb[0].mxu0
  %v2121 = vpop.f32.mrb[0].mxu0
  %v2122 = vpop.f32.mrb[0].mxu0
  %2123 = vdwg.mxu0
  %2132 = vrot.lane.b32.xlu0 %v1783, 16
  %v2133 = vpop.permute.xlu0 %2132
  %2134 = vrot.lane.b32.xlu0 %v1831, 16
  %v2135 = vpop.permute.xlu0 %2134
  %2136 = vrot.lane.b32.xlu0 %v1879, 16
  %v2137 = vpop.permute.xlu0 %2136
  %2138 = vrot.lane.b32.xlu0 %v1927, 16
  %v2139 = vpop.permute.xlu0 %2138
  %2140 = vrot.lane.b32.xlu0 %v1975, 16
  %v2141 = vpop.permute.xlu0 %2140
  %2142 = vrot.lane.b32.xlu0 %v2023, 16
  %v2143 = vpop.permute.xlu0 %2142
  %2144 = vrot.lane.b32.xlu0 %v2071, 16
  %v2145 = vpop.permute.xlu0 %2144
  %2146 = vrot.lane.b32.xlu0 %v2119, 16
  %v2147 = vpop.permute.xlu0 %2146
  %v2156 = vsel %vm372, %v903, %v2133
  %v2157 = vsel %vm372, %v951, %v2135
  %v2158 = vsel %vm372, %v999, %v2137
  %v2159 = vsel %vm372, %v1047, %v2139
  %v2160 = vsel %vm372, %v1095, %v2141
  %v2161 = vsel %vm372, %v1143, %v2143
  %v2162 = vsel %vm372, %v1191, %v2145
  %v2163 = vsel %vm372, %v1239, %v2147
  %v2164 = vpack.c.bf16 %v2157, %v2156
  %v2165 = vpack.c.bf16 %v2159, %v2158
  %v2166 = vpack.c.bf16 %v2161, %v2160
  %v2167 = vpack.c.bf16 %v2163, %v2162
  %v2168 = vld [vmem:[%s2 + $0x4] sm:$0xf]
  %v2169 = vld [vmem:[%s2 + $0x10] sm:$0xf]
  %v2170 = vld [vmem:[%s2 + $0x1c] sm:$0xf]
  %v2171 = vld [vmem:[%s2 + $0x28] sm:$0xf]
  %v2172 = vlaneseq
  %v2173 = vshrl.u32 %v2172, 7
  %v2174 = vsub.s32 1, %v2173
  %v2175 = vrot.slane %v259, %v2174
  %v2180 = vunpack.c.l.b16 %v2168
  %v2181 = vunpack.c.l.b16 %v2169
  %v2182 = vunpack.c.l.b16 %v2170
  %v2183 = vunpack.c.l.b16 %v2171
  %v2184 = vpack.c.b16 %v2181, %v2180
  %v2185 = vpack.c.b16 %v2183, %v2182
  %v2189 = vsel %vm36, %v2164, 0
  %v2192 = vsel %vm36, %v2165, 0
  %v2195 = vsel %vm36, %v2166, 0
  %v2198 = vsel %vm36, %v2167, 0
  %2200 = vmatprep.subr.bf16.mxu0 0
  %2201 = vmatpush1.bf16.msra.mxu0 %v2184
  %2202 = vmatprep.subr.bf16.mxu0 0
  %2203 = vmatpush1.bf16.msra.mxu0 %v2185
  %2204 = vmatprep.subr.bf16.mxu0 0
  %2205 = vmatpush1.bf16.msra.mxu0 0
  %2206 = vmatprep.subr.bf16.mxu0 0
  %2207 = vmatpush1.bf16.msra.mxu0 0
  %2208 = vmatprep.subr.bf16.mxu0 0
  %2209 = vmatpush1.bf16.msra.mxu0 0
  %2210 = vmatprep.subr.bf16.mxu0 0
  %2211 = vmatpush1.bf16.msra.mxu0 0
  %2212 = vmatprep.subr.bf16.mxu0 0
  %2213 = vmatpush1.bf16.msra.mxu0 0
  %2214 = vmatprep.subr.bf16.mxu0 0
  %2215 = vmatpush1.bf16.msra.mxu0 0
  %2216 = vmatprep.subr.bf16.mxu0 0
  %2217 = vmatpush1.bf16.msra.mxu0 0
  %2218 = vmatprep.subr.bf16.mxu0 0
  %2219 = vmatpush1.bf16.msra.mxu0 0
  %2220 = vmatprep.subr.bf16.mxu0 0
  %2221 = vmatpush1.bf16.msra.mxu0 0
  %2222 = vmatprep.subr.bf16.mxu0 0
  %2223 = vmatpush1.bf16.msra.mxu0 0
  %2224 = vmatprep.subr.bf16.mxu0 0
  %2225 = vmatpush1.bf16.msra.mxu0 0
  %2226 = vmatprep.subr.bf16.mxu0 0
  %2227 = vmatpush1.bf16.msra.mxu0 0
  %2228 = vmatprep.subr.bf16.mxu0 0
  %2229 = vmatpush1.bf16.msra.mxu0 0
  %2230 = vmatprep.subr.bf16.mxu0 0
  %2231 = vmatpush1.bf16.msra.mxu0 0
  %2232 = vmatprep.mubr.bf16.mxu0 0
  %2233 = vmatmul.mubr.bf16.gmra.mrb[0].mxu0 %v2189
  %v2234 = vpop.f32.mrb[0].mxu0
  %v2235 = vadd.f32 %v2175, %v2234
  %v2236 = vpop.f32.mrb[0].mxu0
  %v2237 = vpop.f32.mrb[0].mxu0
  %v2238 = vadd.f32 %v2175, %v2237
  %v2239 = vpop.f32.mrb[0].mxu0
  %2240 = vmatprep.mubr.bf16.mxu0 0
  %2241 = vmatmul.mubr.bf16.gmra.mrb[0].mxu0 %v2192
  %v2242 = vpop.f32.mrb[0].mxu0
  %v2243 = vadd.f32 %v2175, %v2242
  %v2244 = vpop.f32.mrb[0].mxu0
  %v2245 = vpop.f32.mrb[0].mxu0
  %v2246 = vadd.f32 %v2175, %v2245
  %v2247 = vpop.f32.mrb[0].mxu0
  %2248 = vmatprep.mubr.bf16.mxu0 0
  %2249 = vmatmul.mubr.bf16.gmra.mrb[0].mxu0 %v2195
  %v2250 = vpop.f32.mrb[0].mxu0
  %v2251 = vadd.f32 %v2175, %v2250
  %v2252 = vpop.f32.mrb[0].mxu0
  %v2253 = vpop.f32.mrb[0].mxu0
  %v2254 = vadd.f32 %v2175, %v2253
  %v2255 = vpop.f32.mrb[0].mxu0
  %2256 = vmatprep.mubr.bf16.mxu0 0
  %2257 = vmatmul.mubr.bf16.gmra.mrb[0].mxu0 %v2198
  %v2258 = vpop.f32.mrb[0].mxu0
  %v2259 = vadd.f32 %v2175, %v2258
  %v2260 = vpop.f32.mrb[0].mxu0
  %v2261 = vpop.f32.mrb[0].mxu0
  %v2262 = vadd.f32 %v2175, %v2261
  %v2263 = vpop.f32.mrb[0].mxu0
  %2264 = vdwg.mxu0
  %v2265 = vadd.f32 %v158, %v2235
  %v2266 = vadd.f32 %v159, %v2238
  %v2267 = vadd.f32 %v160, %v2243
  %v2268 = vadd.f32 %v161, %v2246
  %v2269 = vadd.f32 %v162, %v2251
  %v2270 = vadd.f32 %v163, %v2254
  %v2271 = vadd.f32 %v164, %v2259
  %v2272 = vadd.f32 %v165, %v2262
  %v2273 = vsel %vm36, %v2265, 0.0
  %2274 = vadd.xlane.f32.xlu0 %v2273
  %v2275 = vpop.xlane.xlu0 %2274
  %v2276 = vsel %vm36, %v2266, 0.0
  %2277 = vadd.xlane.f32.xlu0 %v2276
  %v2278 = vpop.xlane.xlu0 %2277
  %v2279 = vsel %vm36, %v2267, 0.0
  %2280 = vadd.xlane.f32.xlu0 %v2279
  %v2281 = vpop.xlane.xlu0 %2280
  %v2282 = vsel %vm36, %v2268, 0.0
  %2283 = vadd.xlane.f32.xlu0 %v2282
  %v2284 = vpop.xlane.xlu0 %2283
  %v2285 = vsel %vm36, %v2269, 0.0
  %2286 = vadd.xlane.f32.xlu0 %v2285
  %v2287 = vpop.xlane.xlu0 %2286
  %v2288 = vsel %vm36, %v2270, 0.0
  %2289 = vadd.xlane.f32.xlu0 %v2288
  %v2290 = vpop.xlane.xlu0 %2289
  %v2291 = vsel %vm36, %v2271, 0.0
  %2292 = vadd.xlane.f32.xlu0 %v2291
  %v2293 = vpop.xlane.xlu0 %2292
  %v2294 = vsel %vm36, %v2272, 0.0
  %2295 = vadd.xlane.f32.xlu0 %v2294
  %v2296 = vpop.xlane.xlu0 %2295
  %v2297 = vmul.f32 %v2275, %v61
  %v2298 = vmul.f32 %v2278, %v61
  %v2299 = vmul.f32 %v2281, %v61
  %v2300 = vmul.f32 %v2284, %v61
  %v2301 = vmul.f32 %v2287, %v61
  %v2302 = vmul.f32 %v2290, %v61
  %v2303 = vmul.f32 %v2293, %v61
  %v2304 = vmul.f32 %v2296, %v61
  %v2305 = vsub.f32 %v2265, %v2297
  %v2306 = vsub.f32 %v2266, %v2298
  %v2307 = vsub.f32 %v2267, %v2299
  %v2308 = vsub.f32 %v2268, %v2300
  %v2309 = vsub.f32 %v2269, %v2301
  %v2310 = vsub.f32 %v2270, %v2302
  %v2311 = vsub.f32 %v2271, %v2303
  %v2312 = vsub.f32 %v2272, %v2304
  %v2313 = vmul.f32 %v2305, %v2305
  %v2314 = vmul.f32 %v2306, %v2306
  %v2315 = vmul.f32 %v2307, %v2307
  %v2316 = vmul.f32 %v2308, %v2308
  %v2317 = vmul.f32 %v2309, %v2309
  %v2318 = vmul.f32 %v2310, %v2310
  %v2319 = vmul.f32 %v2311, %v2311
  %v2320 = vmul.f32 %v2312, %v2312
  %v2321 = vsel %vm36, %v2313, 0.0
  %2322 = vadd.xlane.f32.xlu0 %v2321
  %v2323 = vpop.xlane.xlu0 %2322
  %v2324 = vsel %vm36, %v2314, 0.0
  %2325 = vadd.xlane.f32.xlu0 %v2324
  %v2326 = vpop.xlane.xlu0 %2325
  %v2327 = vsel %vm36, %v2315, 0.0
  %2328 = vadd.xlane.f32.xlu0 %v2327
  %v2329 = vpop.xlane.xlu0 %2328
  %v2330 = vsel %vm36, %v2316, 0.0
  %2331 = vadd.xlane.f32.xlu0 %v2330
  %v2332 = vpop.xlane.xlu0 %2331
  %v2333 = vsel %vm36, %v2317, 0.0
  %2334 = vadd.xlane.f32.xlu0 %v2333
  %v2335 = vpop.xlane.xlu0 %2334
  %v2336 = vsel %vm36, %v2318, 0.0
  %2337 = vadd.xlane.f32.xlu0 %v2336
  %v2338 = vpop.xlane.xlu0 %2337
  %v2339 = vsel %vm36, %v2319, 0.0
  %2340 = vadd.xlane.f32.xlu0 %v2339
  %v2341 = vpop.xlane.xlu0 %2340
  %v2342 = vsel %vm36, %v2320, 0.0
  %2343 = vadd.xlane.f32.xlu0 %v2342
  %v2344 = vpop.xlane.xlu0 %2343
  %v2345 = vmul.f32 %v2323, %v61
  %v2346 = vmul.f32 %v2326, %v61
  %v2347 = vmul.f32 %v2329, %v61
  %v2348 = vmul.f32 %v2332, %v61
  %v2349 = vmul.f32 %v2335, %v61
  %v2350 = vmul.f32 %v2338, %v61
  %v2351 = vmul.f32 %v2341, %v61
  %v2352 = vmul.f32 %v2344, %v61
  %v2353 = vadd.f32 %v2345, 1e-12
  %v2354 = vadd.f32 %v2346, 1e-12
  %v2355 = vadd.f32 %v2347, 1e-12
  %v2356 = vadd.f32 %v2348, 1e-12
  %v2357 = vadd.f32 %v2349, 1e-12
  %v2358 = vadd.f32 %v2350, 1e-12
  %v2359 = vadd.f32 %v2351, 1e-12
  %v2360 = vadd.f32 %v2352, 1e-12
  %v2361 = vrsqrt.pop %v2353
  %v2362 = vrsqrt.pop %v2354
  %v2363 = vrsqrt.pop %v2355
  %v2364 = vrsqrt.pop %v2356
  %v2365 = vrsqrt.pop %v2357
  %v2366 = vrsqrt.pop %v2358
  %v2367 = vrsqrt.pop %v2359
  %v2368 = vrsqrt.pop %v2360
  %v2369 = vmul.f32 %v2305, %v2361
  %v2370 = vmul.f32 %v2306, %v2362
  %v2371 = vmul.f32 %v2307, %v2363
  %v2372 = vmul.f32 %v2308, %v2364
  %v2373 = vmul.f32 %v2309, %v2365
  %v2374 = vmul.f32 %v2310, %v2366
  %v2375 = vmul.f32 %v2311, %v2367
  %v2376 = vmul.f32 %v2312, %v2368
  %v2377 = vlaneseq
  %v2378 = vshrl.u32 %v2377, 7
  %v2379 = vsub.s32 2, %v2378
  %v2380 = vrot.slane %v259, %v2379
  %v2381 = vmul.f32 %v2369, %v2380
  %v2382 = vmul.f32 %v2370, %v2380
  %v2383 = vmul.f32 %v2371, %v2380
  %v2384 = vmul.f32 %v2372, %v2380
  %v2385 = vmul.f32 %v2373, %v2380
  %v2386 = vmul.f32 %v2374, %v2380
  %v2387 = vmul.f32 %v2375, %v2380
  %v2388 = vmul.f32 %v2376, %v2380
  %v2389 = vlaneseq
  %v2390 = vshrl.u32 %v2389, 7
  %v2391 = vsub.s32 3, %v2390
  %v2392 = vrot.slane %v259, %v2391
  %v2393 = vadd.f32 %v2381, %v2392
  %v2394 = vadd.f32 %v2382, %v2392
  %v2395 = vadd.f32 %v2383, %v2392
  %v2396 = vadd.f32 %v2384, %v2392
  %v2397 = vadd.f32 %v2385, %v2392
  %v2398 = vadd.f32 %v2386, %v2392
  %v2399 = vadd.f32 %v2387, %v2392
  %v2400 = vadd.f32 %v2388, %v2392
  %v2401 = vpack.c.bf16 %v2394, %v2393
  %v2402 = vpack.c.bf16 %v2396, %v2395
  %v2403 = vpack.c.bf16 %v2398, %v2397
  %v2404 = vpack.c.bf16 %v2400, %v2399
  %v2405 = vld [vmem:[%s2 + $0x8] sm:$0xf]
  %v2406 = vld [vmem:[%s2 + $0x14] sm:$0xf]
  %v2407 = vld [vmem:[%s2 + $0x20] sm:$0xf]
  %v2408 = vld [vmem:[%s2 + $0x2c] sm:$0xf]
  %v2409 = vlaneseq
  %v2410 = vshrl.u32 %v2409, 7
  %v2411 = vsub.s32 4, %v2410
  %v2412 = vrot.slane %v259, %v2411
  %v2417 = vunpack.c.l.b16 %v2405
  %v2418 = vunpack.c.l.b16 %v2406
  %v2419 = vunpack.c.l.b16 %v2407
  %v2420 = vunpack.c.l.b16 %v2408
  %v2421 = vpack.c.b16 %v2418, %v2417
  %v2422 = vpack.c.b16 %v2420, %v2419
  %v2426 = vsel %vm36, %v2401, 0
  %v2429 = vsel %vm36, %v2402, 0
  %v2432 = vsel %vm36, %v2403, 0
  %v2435 = vsel %vm36, %v2404, 0
  %2437 = vmatprep.subr.bf16.mxu0 0
  %2438 = vmatpush1.bf16.msra.mxu0 %v2421
  %2439 = vmatprep.subr.bf16.mxu0 0
  %2440 = vmatpush1.bf16.msra.mxu0 %v2422
  %2441 = vmatprep.subr.bf16.mxu0 0
  %2442 = vmatpush1.bf16.msra.mxu0 0
  %2443 = vmatprep.subr.bf16.mxu0 0
  %2444 = vmatpush1.bf16.msra.mxu0 0
  %2445 = vmatprep.subr.bf16.mxu0 0
  %2446 = vmatpush1.bf16.msra.mxu0 0
  %2447 = vmatprep.subr.bf16.mxu0 0
  %2448 = vmatpush1.bf16.msra.mxu0 0
  %2449 = vmatprep.subr.bf16.mxu0 0
  %2450 = vmatpush1.bf16.msra.mxu0 0
  %2451 = vmatprep.subr.bf16.mxu0 0
  %2452 = vmatpush1.bf16.msra.mxu0 0
  %2453 = vmatprep.subr.bf16.mxu0 0
  %2454 = vmatpush1.bf16.msra.mxu0 0
  %2455 = vmatprep.subr.bf16.mxu0 0
  %2456 = vmatpush1.bf16.msra.mxu0 0
  %2457 = vmatprep.subr.bf16.mxu0 0
  %2458 = vmatpush1.bf16.msra.mxu0 0
  %2459 = vmatprep.subr.bf16.mxu0 0
  %2460 = vmatpush1.bf16.msra.mxu0 0
  %2461 = vmatprep.subr.bf16.mxu0 0
  %2462 = vmatpush1.bf16.msra.mxu0 0
  %2463 = vmatprep.subr.bf16.mxu0 0
  %2464 = vmatpush1.bf16.msra.mxu0 0
  %2465 = vmatprep.subr.bf16.mxu0 0
  %2466 = vmatpush1.bf16.msra.mxu0 0
  %2467 = vmatprep.subr.bf16.mxu0 0
  %2468 = vmatpush1.bf16.msra.mxu0 0
  %2469 = vmatprep.mubr.bf16.mxu0 0
  %2470 = vmatmul.mubr.bf16.gmra.mrb[0].mxu0 %v2426
  %v2471 = vpop.f32.mrb[0].mxu0
  %v2472 = vadd.f32 %v2412, %v2471
  %v2473 = vpop.f32.mrb[0].mxu0
  %v2474 = vpop.f32.mrb[0].mxu0
  %v2475 = vadd.f32 %v2412, %v2474
  %v2476 = vpop.f32.mrb[0].mxu0
  %2477 = vmatprep.mubr.bf16.mxu0 0
  %2478 = vmatmul.mubr.bf16.gmra.mrb[0].mxu0 %v2429
  %v2479 = vpop.f32.mrb[0].mxu0
  %v2480 = vadd.f32 %v2412, %v2479
  %v2481 = vpop.f32.mrb[0].mxu0
  %v2482 = vpop.f32.mrb[0].mxu0
  %v2483 = vadd.f32 %v2412, %v2482
  %v2484 = vpop.f32.mrb[0].mxu0
  %2485 = vmatprep.mubr.bf16.mxu0 0
  %2486 = vmatmul.mubr.bf16.gmra.mrb[0].mxu0 %v2432
  %v2487 = vpop.f32.mrb[0].mxu0
  %v2488 = vadd.f32 %v2412, %v2487
  %v2489 = vpop.f32.mrb[0].mxu0
  %v2490 = vpop.f32.mrb[0].mxu0
  %v2491 = vadd.f32 %v2412, %v2490
  %v2492 = vpop.f32.mrb[0].mxu0
  %2493 = vmatprep.mubr.bf16.mxu0 0
  %2494 = vmatmul.mubr.bf16.gmra.mrb[0].mxu0 %v2435
  %v2495 = vpop.f32.mrb[0].mxu0
  %v2496 = vadd.f32 %v2412, %v2495
  %v2497 = vpop.f32.mrb[0].mxu0
  %v2498 = vpop.f32.mrb[0].mxu0
  %v2499 = vadd.f32 %v2412, %v2498
  %v2500 = vpop.f32.mrb[0].mxu0
  %2501 = vdwg.mxu0
  %v2502 = vmul.f32 %v2472, %v2472
  %v2503 = vmul.f32 %v2475, %v2475
  %v2504 = vmul.f32 %v2480, %v2480
  %v2505 = vmul.f32 %v2483, %v2483
  %v2506 = vmul.f32 %v2488, %v2488
  %v2507 = vmul.f32 %v2491, %v2491
  %v2508 = vmul.f32 %v2496, %v2496
  %v2509 = vmul.f32 %v2499, %v2499
  %v2510 = vmul.f32 %v2472, %v2502
  %v2511 = vmul.f32 %v2475, %v2503
  %v2512 = vmul.f32 %v2480, %v2504
  %v2513 = vmul.f32 %v2483, %v2505
  %v2514 = vmul.f32 %v2488, %v2506
  %v2515 = vmul.f32 %v2491, %v2507
  %v2516 = vmul.f32 %v2496, %v2508
  %v2517 = vmul.f32 %v2499, %v2509
  %v2518 = vmul.f32 %v2510, 0.044715
  %v2519 = vmul.f32 %v2511, 0.044715
  %v2520 = vmul.f32 %v2512, 0.044715
  %v2521 = vmul.f32 %v2513, 0.044715
  %v2522 = vmul.f32 %v2514, 0.044715
  %v2523 = vmul.f32 %v2515, 0.044715
  %v2524 = vmul.f32 %v2516, 0.044715
  %v2525 = vmul.f32 %v2517, 0.044715
  %v2526 = vadd.f32 %v2472, %v2518
  %v2527 = vadd.f32 %v2475, %v2519
  %v2528 = vadd.f32 %v2480, %v2520
  %v2529 = vadd.f32 %v2483, %v2521
  %v2530 = vadd.f32 %v2488, %v2522
  %v2531 = vadd.f32 %v2491, %v2523
  %v2532 = vadd.f32 %v2496, %v2524
  %v2533 = vadd.f32 %v2499, %v2525
  %v2534 = vmul.f32 %v2526, 0.7978846
  %v2535 = vmul.f32 %v2527, 0.7978846
  %v2536 = vmul.f32 %v2528, 0.7978846
  %v2537 = vmul.f32 %v2529, 0.7978846
  %v2538 = vmul.f32 %v2530, 0.7978846
  %v2539 = vmul.f32 %v2531, 0.7978846
  %v2540 = vmul.f32 %v2532, 0.7978846
  %v2541 = vmul.f32 %v2533, 0.7978846
  %v2542 = vtanh.pop %v2534
  %v2543 = vtanh.pop %v2535
  %v2544 = vtanh.pop %v2536
  %v2545 = vtanh.pop %v2537
  %v2546 = vtanh.pop %v2538
  %v2547 = vtanh.pop %v2539
  %v2548 = vtanh.pop %v2540
  %v2549 = vtanh.pop %v2541
  %v2550 = vadd.f32 %v2542, 1.0
  %v2551 = vadd.f32 %v2543, 1.0
  %v2552 = vadd.f32 %v2544, 1.0
  %v2553 = vadd.f32 %v2545, 1.0
  %v2554 = vadd.f32 %v2546, 1.0
  %v2555 = vadd.f32 %v2547, 1.0
  %v2556 = vadd.f32 %v2548, 1.0
  %v2557 = vadd.f32 %v2549, 1.0
  %v2558 = vmul.f32 %v2550, 0.5
  %v2559 = vmul.f32 %v2551, 0.5
  %v2560 = vmul.f32 %v2552, 0.5
  %v2561 = vmul.f32 %v2553, 0.5
  %v2562 = vmul.f32 %v2554, 0.5
  %v2563 = vmul.f32 %v2555, 0.5
  %v2564 = vmul.f32 %v2556, 0.5
  %v2565 = vmul.f32 %v2557, 0.5
  %v2566 = vmul.f32 %v2472, %v2558
  %v2567 = vmul.f32 %v2475, %v2559
  %v2568 = vmul.f32 %v2480, %v2560
  %v2569 = vmul.f32 %v2483, %v2561
  %v2570 = vmul.f32 %v2488, %v2562
  %v2571 = vmul.f32 %v2491, %v2563
  %v2572 = vmul.f32 %v2496, %v2564
  %v2573 = vmul.f32 %v2499, %v2565
  %v2574 = vpack.c.bf16 %v2567, %v2566
  %v2575 = vpack.c.bf16 %v2569, %v2568
  %v2576 = vpack.c.bf16 %v2571, %v2570
  %v2577 = vpack.c.bf16 %v2573, %v2572
  %v2578 = vld [vmem:[%s3] sm:$0xf]
  %v2579 = vld [vmem:[%s3 + $0x4] sm:$0xf]
  %v2580 = vld [vmem:[%s3 + $0x8] sm:$0xf]
  %v2581 = vld [vmem:[%s3 + $0xc] sm:$0xf]
  %v2582 = vld [vmem:[%s3 + $0x10] sm:$0xf]
  %v2583 = vld [vmem:[%s3 + $0x14] sm:$0xf]
  %v2584 = vld [vmem:[%s3 + $0x18] sm:$0xf]
  %v2585 = vld [vmem:[%s3 + $0x1c] sm:$0xf]
  %v2586 = vlaneseq
  %v2587 = vshrl.u32 %v2586, 7
  %v2588 = vsub.s32 5, %v2587
  %v2589 = vrot.slane %v259, %v2588
  %v2598 = vunpack.c.l.b16 %v2578
  %v2599 = vunpack.c.l.b16 %v2579
  %v2600 = vunpack.c.l.b16 %v2580
  %v2601 = vunpack.c.l.b16 %v2581
  %v2602 = vunpack.c.l.b16 %v2582
  %v2603 = vunpack.c.l.b16 %v2583
  %v2604 = vunpack.c.l.b16 %v2584
  %v2605 = vunpack.c.l.b16 %v2585
  %v2606 = vpack.c.b16 %v2599, %v2598
  %v2607 = vpack.c.b16 %v2601, %v2600
  %v2608 = vpack.c.b16 %v2603, %v2602
  %v2609 = vpack.c.b16 %v2605, %v2604
  %vm2614 = vcmask 523264
  %v2616 = vsel %vm2614, %v2574, 0
  %v2619 = vsel %vm2614, %v2575, 0
  %v2622 = vsel %vm2614, %v2576, 0
  %v2625 = vsel %vm2614, %v2577, 0
  %2627 = vmatprep.subr.bf16.mxu0 0
  %2628 = vmatpush1.bf16.msra.mxu0 %v2606
  %2629 = vmatprep.subr.bf16.mxu0 0
  %2630 = vmatpush1.bf16.msra.mxu0 %v2607
  %2631 = vmatprep.subr.bf16.mxu0 0
  %2632 = vmatpush1.bf16.msra.mxu0 %v2608
  %2633 = vmatprep.subr.bf16.mxu0 0
  %2634 = vmatpush1.bf16.msra.mxu0 %v2609
  %2635 = vmatprep.subr.bf16.mxu0 0
  %2636 = vmatpush1.bf16.msra.mxu0 0
  %2637 = vmatprep.subr.bf16.mxu0 0
  %2638 = vmatpush1.bf16.msra.mxu0 0
  %2639 = vmatprep.subr.bf16.mxu0 0
  %2640 = vmatpush1.bf16.msra.mxu0 0
  %2641 = vmatprep.subr.bf16.mxu0 0
  %2642 = vmatpush1.bf16.msra.mxu0 0
  %2643 = vmatprep.subr.bf16.mxu0 0
  %2644 = vmatpush1.bf16.msra.mxu0 0
  %2645 = vmatprep.subr.bf16.mxu0 0
  %2646 = vmatpush1.bf16.msra.mxu0 0
  %2647 = vmatprep.subr.bf16.mxu0 0
  %2648 = vmatpush1.bf16.msra.mxu0 0
  %2649 = vmatprep.subr.bf16.mxu0 0
  %2650 = vmatpush1.bf16.msra.mxu0 0
  %2651 = vmatprep.subr.bf16.mxu0 0
  %2652 = vmatpush1.bf16.msra.mxu0 0
  %2653 = vmatprep.subr.bf16.mxu0 0
  %2654 = vmatpush1.bf16.msra.mxu0 0
  %2655 = vmatprep.subr.bf16.mxu0 0
  %2656 = vmatpush1.bf16.msra.mxu0 0
  %2657 = vmatprep.subr.bf16.mxu0 0
  %2658 = vmatpush1.bf16.msra.mxu0 0
  %2659 = vmatprep.mubr.bf16.mxu0 0
  %2660 = vmatmul.mubr.bf16.gmra.mrb[0].mxu0 %v2616
  %v2661 = vpop.f32.mrb[0].mxu0
  %v2662 = vadd.f32 %v2589, %v2661
  %v2663 = vpop.f32.mrb[0].mxu0
  %v2664 = vpop.f32.mrb[0].mxu0
  %v2665 = vadd.f32 %v2589, %v2664
  %v2666 = vpop.f32.mrb[0].mxu0
  %2667 = vmatprep.mubr.bf16.mxu0 0
  %2668 = vmatmul.mubr.bf16.gmra.mrb[0].mxu0 %v2619
  %v2669 = vpop.f32.mrb[0].mxu0
  %v2670 = vadd.f32 %v2589, %v2669
  %v2671 = vpop.f32.mrb[0].mxu0
  %v2672 = vpop.f32.mrb[0].mxu0
  %v2673 = vadd.f32 %v2589, %v2672
  %v2674 = vpop.f32.mrb[0].mxu0
  %2675 = vmatprep.mubr.bf16.mxu0 0
  %2676 = vmatmul.mubr.bf16.gmra.mrb[0].mxu0 %v2622
  %v2677 = vpop.f32.mrb[0].mxu0
  %v2678 = vadd.f32 %v2589, %v2677
  %v2679 = vpop.f32.mrb[0].mxu0
  %v2680 = vpop.f32.mrb[0].mxu0
  %v2681 = vadd.f32 %v2589, %v2680
  %v2682 = vpop.f32.mrb[0].mxu0
  %2683 = vmatprep.mubr.bf16.mxu0 0
  %2684 = vmatmul.mubr.bf16.gmra.mrb[0].mxu0 %v2625
  %v2685 = vpop.f32.mrb[0].mxu0
  %v2686 = vadd.f32 %v2589, %v2685
  %v2687 = vpop.f32.mrb[0].mxu0
  %v2688 = vpop.f32.mrb[0].mxu0
  %v2689 = vadd.f32 %v2589, %v2688
  %v2690 = vpop.f32.mrb[0].mxu0
  %2691 = vdwg.mxu0
  %v2692 = vadd.f32 %v2393, %v2662
  %v2693 = vadd.f32 %v2394, %v2665
  %v2694 = vadd.f32 %v2395, %v2670
  %v2695 = vadd.f32 %v2396, %v2673
  %v2696 = vadd.f32 %v2397, %v2678
  %v2697 = vadd.f32 %v2398, %v2681
  %v2698 = vadd.f32 %v2399, %v2686
  %v2699 = vadd.f32 %v2400, %v2689
  %v2700 = vsel %vm36, %v2692, 0.0
  %2701 = vadd.xlane.f32.xlu0 %v2700
  %v2702 = vpop.xlane.xlu0 %2701
  %v2703 = vsel %vm36, %v2693, 0.0
  %2704 = vadd.xlane.f32.xlu0 %v2703
  %v2705 = vpop.xlane.xlu0 %2704
  %v2706 = vsel %vm36, %v2694, 0.0
  %2707 = vadd.xlane.f32.xlu0 %v2706
  %v2708 = vpop.xlane.xlu0 %2707
  %v2709 = vsel %vm36, %v2695, 0.0
  %2710 = vadd.xlane.f32.xlu0 %v2709
  %v2711 = vpop.xlane.xlu0 %2710
  %v2712 = vsel %vm36, %v2696, 0.0
  %2713 = vadd.xlane.f32.xlu0 %v2712
  %v2714 = vpop.xlane.xlu0 %2713
  %v2715 = vsel %vm36, %v2697, 0.0
  %2716 = vadd.xlane.f32.xlu0 %v2715
  %v2717 = vpop.xlane.xlu0 %2716
  %v2718 = vsel %vm36, %v2698, 0.0
  %2719 = vadd.xlane.f32.xlu0 %v2718
  %v2720 = vpop.xlane.xlu0 %2719
  %v2721 = vsel %vm36, %v2699, 0.0
  %2722 = vadd.xlane.f32.xlu0 %v2721
  %v2723 = vpop.xlane.xlu0 %2722
  %v2724 = vmul.f32 %v2702, %v61
  %v2725 = vmul.f32 %v2705, %v61
  %v2726 = vmul.f32 %v2708, %v61
  %v2727 = vmul.f32 %v2711, %v61
  %v2728 = vmul.f32 %v2714, %v61
  %v2729 = vmul.f32 %v2717, %v61
  %v2730 = vmul.f32 %v2720, %v61
  %v2731 = vmul.f32 %v2723, %v61
  %v2732 = vsub.f32 %v2692, %v2724
  %v2733 = vsub.f32 %v2693, %v2725
  %v2734 = vsub.f32 %v2694, %v2726
  %v2735 = vsub.f32 %v2695, %v2727
  %v2736 = vsub.f32 %v2696, %v2728
  %v2737 = vsub.f32 %v2697, %v2729
  %v2738 = vsub.f32 %v2698, %v2730
  %v2739 = vsub.f32 %v2699, %v2731
  %v2740 = vmul.f32 %v2732, %v2732
  %v2741 = vmul.f32 %v2733, %v2733
  %v2742 = vmul.f32 %v2734, %v2734
  %v2743 = vmul.f32 %v2735, %v2735
  %v2744 = vmul.f32 %v2736, %v2736
  %v2745 = vmul.f32 %v2737, %v2737
  %v2746 = vmul.f32 %v2738, %v2738
  %v2747 = vmul.f32 %v2739, %v2739
  %v2748 = vsel %vm36, %v2740, 0.0
  %2749 = vadd.xlane.f32.xlu0 %v2748
  %v2750 = vpop.xlane.xlu0 %2749
  %v2751 = vsel %vm36, %v2741, 0.0
  %2752 = vadd.xlane.f32.xlu0 %v2751
  %v2753 = vpop.xlane.xlu0 %2752
  %v2754 = vsel %vm36, %v2742, 0.0
  %2755 = vadd.xlane.f32.xlu0 %v2754
  %v2756 = vpop.xlane.xlu0 %2755
  %v2757 = vsel %vm36, %v2743, 0.0
  %2758 = vadd.xlane.f32.xlu0 %v2757
  %v2759 = vpop.xlane.xlu0 %2758
  %v2760 = vsel %vm36, %v2744, 0.0
  %2761 = vadd.xlane.f32.xlu0 %v2760
  %v2762 = vpop.xlane.xlu0 %2761
  %v2763 = vsel %vm36, %v2745, 0.0
  %2764 = vadd.xlane.f32.xlu0 %v2763
  %v2765 = vpop.xlane.xlu0 %2764
  %v2766 = vsel %vm36, %v2746, 0.0
  %2767 = vadd.xlane.f32.xlu0 %v2766
  %v2768 = vpop.xlane.xlu0 %2767
  %v2769 = vsel %vm36, %v2747, 0.0
  %2770 = vadd.xlane.f32.xlu0 %v2769
  %v2771 = vpop.xlane.xlu0 %2770
  %v2772 = vmul.f32 %v2750, %v61
  %v2773 = vmul.f32 %v2753, %v61
  %v2774 = vmul.f32 %v2756, %v61
  %v2775 = vmul.f32 %v2759, %v61
  %v2776 = vmul.f32 %v2762, %v61
  %v2777 = vmul.f32 %v2765, %v61
  %v2778 = vmul.f32 %v2768, %v61
  %v2779 = vmul.f32 %v2771, %v61
  %v2780 = vadd.f32 %v2772, 1e-12
  %v2781 = vadd.f32 %v2773, 1e-12
  %v2782 = vadd.f32 %v2774, 1e-12
  %v2783 = vadd.f32 %v2775, 1e-12
  %v2784 = vadd.f32 %v2776, 1e-12
  %v2785 = vadd.f32 %v2777, 1e-12
  %v2786 = vadd.f32 %v2778, 1e-12
  %v2787 = vadd.f32 %v2779, 1e-12
  %v2788 = vrsqrt.pop %v2780
  %v2789 = vrsqrt.pop %v2781
  %v2790 = vrsqrt.pop %v2782
  %v2791 = vrsqrt.pop %v2783
  %v2792 = vrsqrt.pop %v2784
  %v2793 = vrsqrt.pop %v2785
  %v2794 = vrsqrt.pop %v2786
  %v2795 = vrsqrt.pop %v2787
  %v2796 = vmul.f32 %v2732, %v2788
  %v2797 = vmul.f32 %v2733, %v2789
  %v2798 = vmul.f32 %v2734, %v2790
  %v2799 = vmul.f32 %v2735, %v2791
  %v2800 = vmul.f32 %v2736, %v2792
  %v2801 = vmul.f32 %v2737, %v2793
  %v2802 = vmul.f32 %v2738, %v2794
  %v2803 = vmul.f32 %v2739, %v2795
  %v2804 = vlaneseq
  %v2805 = vshrl.u32 %v2804, 7
  %v2806 = vsub.s32 6, %v2805
  %v2807 = vrot.slane %v259, %v2806
  %v2808 = vmul.f32 %v2796, %v2807
  %v2809 = vmul.f32 %v2797, %v2807
  %v2810 = vmul.f32 %v2798, %v2807
  %v2811 = vmul.f32 %v2799, %v2807
  %v2812 = vmul.f32 %v2800, %v2807
  %v2813 = vmul.f32 %v2801, %v2807
  %v2814 = vmul.f32 %v2802, %v2807
  %v2815 = vmul.f32 %v2803, %v2807
  %v2816 = vlaneseq
  %v2817 = vshrl.u32 %v2816, 7
  %v2818 = vsub.s32 7, %v2817
  %v2819 = vrot.slane %v259, %v2818
  %v2820 = vadd.f32 %v2808, %v2819
  %v2821 = vadd.f32 %v2809, %v2819
  %v2822 = vadd.f32 %v2810, %v2819
  %v2823 = vadd.f32 %v2811, %v2819
  %v2824 = vadd.f32 %v2812, %v2819
  %v2825 = vadd.f32 %v2813, %v2819
  %v2826 = vadd.f32 %v2814, %v2819
  %v2827 = vadd.f32 %v2815, %v2819
  %s2828 = scalar_lea.vmem %s5, 8
  %v2829 = vld [vmem:[%s2828] sm:$0xff]
  %v2830 = vpack.c.bf16 %v2821, %v2820
  %v2831 = vpack.c.bf16 %v2823, %v2822
  %v2832 = vpack.c.bf16 %v2825, %v2824
  %v2833 = vpack.c.bf16 %v2827, %v2826
  %s2834 = scalar_lea.vmem %s2, 48
  %v2835 = vld [vmem:[%s2834] sm:$0xf]
  %v2836 = vld [vmem:[%s2834 + $0xc] sm:$0xf]
  %v2837 = vld [vmem:[%s2834 + $0x18] sm:$0xf]
  %v2838 = vld [vmem:[%s2834 + $0x24] sm:$0xf]
  %v2839 = vlaneseq
  %v2840 = vshrl.u32 %v2839, 7
  %v2841 = vsub.s32 0, %v2840
  %v2842 = vrot.slane %v2829, %v2841
  %v2847 = vunpack.c.l.b16 %v2835
  %v2848 = vunpack.c.l.b16 %v2836
  %v2849 = vunpack.c.l.b16 %v2837
  %v2850 = vunpack.c.l.b16 %v2838
  %v2851 = vpack.c.b16 %v2848, %v2847
  %v2852 = vpack.c.b16 %v2850, %v2849
  %v2856 = vsel %vm36, %v2830, 0
  %v2859 = vsel %vm36, %v2831, 0
  %v2862 = vsel %vm36, %v2832, 0
  %v2865 = vsel %vm36, %v2833, 0
  %2867 = vmatprep.subr.bf16.mxu0 0
  %2868 = vmatpush1.bf16.msra.mxu0 %v2851
  %2869 = vmatprep.subr.bf16.mxu0 0
  %2870 = vmatpush1.bf16.msra.mxu0 %v2852
  %2871 = vmatprep.subr.bf16.mxu0 0
  %2872 = vmatpush1.bf16.msra.mxu0 0
  %2873 = vmatprep.subr.bf16.mxu0 0
  %2874 = vmatpush1.bf16.msra.mxu0 0
  %2875 = vmatprep.subr.bf16.mxu0 0
  %2876 = vmatpush1.bf16.msra.mxu0 0
  %2877 = vmatprep.subr.bf16.mxu0 0
  %2878 = vmatpush1.bf16.msra.mxu0 0
  %2879 = vmatprep.subr.bf16.mxu0 0
  %2880 = vmatpush1.bf16.msra.mxu0 0
  %2881 = vmatprep.subr.bf16.mxu0 0
  %2882 = vmatpush1.bf16.msra.mxu0 0
  %2883 = vmatprep.subr.bf16.mxu0 0
  %2884 = vmatpush1.bf16.msra.mxu0 0
  %2885 = vmatprep.subr.bf16.mxu0 0
  %2886 = vmatpush1.bf16.msra.mxu0 0
  %2887 = vmatprep.subr.bf16.mxu0 0
  %2888 = vmatpush1.bf16.msra.mxu0 0
  %2889 = vmatprep.subr.bf16.mxu0 0
  %2890 = vmatpush1.bf16.msra.mxu0 0
  %2891 = vmatprep.subr.bf16.mxu0 0
  %2892 = vmatpush1.bf16.msra.mxu0 0
  %2893 = vmatprep.subr.bf16.mxu0 0
  %2894 = vmatpush1.bf16.msra.mxu0 0
  %2895 = vmatprep.subr.bf16.mxu0 0
  %2896 = vmatpush1.bf16.msra.mxu0 0
  %2897 = vmatprep.subr.bf16.mxu0 0
  %2898 = vmatpush1.bf16.msra.mxu0 0
  %2899 = vmatprep.mubr.bf16.mxu0 0
  %2900 = vmatmul.mubr.bf16.gmra.mrb[0].mxu0 %v2856
  %v2901 = vpop.f32.mrb[0].mxu0
  %v2902 = vadd.f32 %v2842, %v2901
  %v2903 = vpop.f32.mrb[0].mxu0
  %v2904 = vpop.f32.mrb[0].mxu0
  %v2905 = vadd.f32 %v2842, %v2904
  %v2906 = vpop.f32.mrb[0].mxu0
  %2907 = vmatprep.mubr.bf16.mxu0 0
  %2908 = vmatmul.mubr.bf16.gmra.mrb[0].mxu0 %v2859
  %v2909 = vpop.f32.mrb[0].mxu0
  %v2910 = vadd.f32 %v2842, %v2909
  %v2911 = vpop.f32.mrb[0].mxu0
  %v2912 = vpop.f32.mrb[0].mxu0
  %v2913 = vadd.f32 %v2842, %v2912
  %v2914 = vpop.f32.mrb[0].mxu0
  %2915 = vmatprep.mubr.bf16.mxu0 0
  %2916 = vmatmul.mubr.bf16.gmra.mrb[0].mxu0 %v2862
  %v2917 = vpop.f32.mrb[0].mxu0
  %v2918 = vadd.f32 %v2842, %v2917
  %v2919 = vpop.f32.mrb[0].mxu0
  %v2920 = vpop.f32.mrb[0].mxu0
  %v2921 = vadd.f32 %v2842, %v2920
  %v2922 = vpop.f32.mrb[0].mxu0
  %2923 = vmatprep.mubr.bf16.mxu0 0
  %2924 = vmatmul.mubr.bf16.gmra.mrb[0].mxu0 %v2865
  %v2925 = vpop.f32.mrb[0].mxu0
  %v2926 = vadd.f32 %v2842, %v2925
  %v2927 = vpop.f32.mrb[0].mxu0
  %v2928 = vpop.f32.mrb[0].mxu0
  %v2929 = vadd.f32 %v2842, %v2928
  %v2930 = vpop.f32.mrb[0].mxu0
  %2931 = vdwg.mxu0
  %v2932 = vpack.c.bf16 %v2902, %v2902
  %v2933 = vpack.c.bf16 %v2905, %v2905
  %v2934 = vpack.c.bf16 %v2910, %v2910
  %v2935 = vpack.c.bf16 %v2913, %v2913
  %v2936 = vpack.c.bf16 %v2918, %v2918
  %v2937 = vpack.c.bf16 %v2921, %v2921
  %v2938 = vpack.c.bf16 %v2926, %v2926
  %v2939 = vpack.c.bf16 %v2929, %v2929
  %2941 = vrot.lane.b32.xlu0 %v2932, 96
  %v2942 = vpop.permute.xlu0 %2941
  %v2944 = vsel %vm372, %v2932, 0
  %v2947 = vsel %vm372, %v2942, 0
  %2949 = vmatprep.subr.bf16.mxu0 0
  %2950 = vmatpush1.bf16.xpose.msra.mxu0 %v2947
  %2951 = vmatprep.subr.bf16.mxu0 0
  %2952 = vmatpush1.bf16.xpose.msra.mxu0 0
  %2953 = vmatprep.subr.bf16.mxu0 0
  %2954 = vmatpush1.bf16.xpose.msra.mxu0 0
  %2955 = vmatprep.subr.bf16.mxu0 0
  %2956 = vmatpush1.bf16.xpose.msra.mxu0 0
  %2957 = vmatprep.subr.bf16.mxu0 0
  %2958 = vmatpush1.bf16.xpose.msra.mxu0 0
  %2959 = vmatprep.subr.bf16.mxu0 0
  %2960 = vmatpush1.bf16.xpose.msra.mxu0 0
  %2961 = vmatprep.subr.bf16.mxu0 0
  %2962 = vmatpush1.bf16.xpose.msra.mxu0 0
  %2963 = vmatprep.subr.bf16.mxu0 0
  %2964 = vmatpush1.bf16.xpose.msra.mxu0 0
  %2965 = vmatprep.subr.bf16.mxu0 0
  %2966 = vmatpush1.bf16.xpose.msra.mxu0 0
  %2967 = vmatprep.subr.bf16.mxu0 0
  %2968 = vmatpush1.bf16.xpose.msra.mxu0 0
  %2969 = vmatprep.subr.bf16.mxu0 0
  %2970 = vmatpush1.bf16.xpose.msra.mxu0 0
  %2971 = vmatprep.subr.bf16.mxu0 0
  %2972 = vmatpush1.bf16.xpose.msra.mxu0 0
  %2973 = vmatprep.subr.bf16.mxu0 0
  %2974 = vmatpush1.bf16.xpose.msra.mxu0 0
  %2975 = vmatprep.subr.bf16.mxu0 0
  %2976 = vmatpush1.bf16.xpose.msra.mxu0 0
  %2977 = vmatprep.subr.bf16.mxu0 0
  %2978 = vmatpush1.bf16.xpose.msra.mxu0 0
  %2979 = vmatprep.subr.bf16.mxu0 0
  %2980 = vmatpush1.bf16.xpose.msra.mxu0 0
  %2981 = vmatprep.mubr.bf16.mxu0 0
  %2982 = vmatmul.mubr.bf16.gmra.mrb[0].mxu0 %v2944
  %v2983 = vpop.f32.mrb[0].mxu0
  %v2984 = vadd.f32 %v222, %v2983
  %v2985 = vpop.f32.mrb[0].mxu0
  %v2986 = vpop.f32.mrb[0].mxu0
  %v2987 = vpop.f32.mrb[0].mxu0
  %2988 = vdwg.mxu0
  %2990 = vrot.lane.b32.xlu0 %v2933, 96
  %v2991 = vpop.permute.xlu0 %2990
  %v2993 = vsel %vm372, %v2933, 0
  %v2996 = vsel %vm372, %v2991, 0
  %2998 = vmatprep.subr.bf16.mxu0 0
  %2999 = vmatpush1.bf16.xpose.msra.mxu0 %v2996
  %3000 = vmatprep.subr.bf16.mxu0 0
  %3001 = vmatpush1.bf16.xpose.msra.mxu0 0
  %3002 = vmatprep.subr.bf16.mxu0 0
  %3003 = vmatpush1.bf16.xpose.msra.mxu0 0
  %3004 = vmatprep.subr.bf16.mxu0 0
  %3005 = vmatpush1.bf16.xpose.msra.mxu0 0
  %3006 = vmatprep.subr.bf16.mxu0 0
  %3007 = vmatpush1.bf16.xpose.msra.mxu0 0
  %3008 = vmatprep.subr.bf16.mxu0 0
  %3009 = vmatpush1.bf16.xpose.msra.mxu0 0
  %3010 = vmatprep.subr.bf16.mxu0 0
  %3011 = vmatpush1.bf16.xpose.msra.mxu0 0
  %3012 = vmatprep.subr.bf16.mxu0 0
  %3013 = vmatpush1.bf16.xpose.msra.mxu0 0
  %3014 = vmatprep.subr.bf16.mxu0 0
  %3015 = vmatpush1.bf16.xpose.msra.mxu0 0
  %3016 = vmatprep.subr.bf16.mxu0 0
  %3017 = vmatpush1.bf16.xpose.msra.mxu0 0
  %3018 = vmatprep.subr.bf16.mxu0 0
  %3019 = vmatpush1.bf16.xpose.msra.mxu0 0
  %3020 = vmatprep.subr.bf16.mxu0 0
  %3021 = vmatpush1.bf16.xpose.msra.mxu0 0
  %3022 = vmatprep.subr.bf16.mxu0 0
  %3023 = vmatpush1.bf16.xpose.msra.mxu0 0
  %3024 = vmatprep.subr.bf16.mxu0 0
  %3025 = vmatpush1.bf16.xpose.msra.mxu0 0
  %3026 = vmatprep.subr.bf16.mxu0 0
  %3027 = vmatpush1.bf16.xpose.msra.mxu0 0
  %3028 = vmatprep.subr.bf16.mxu0 0
  %3029 = vmatpush1.bf16.xpose.msra.mxu0 0
  %3030 = vmatprep.mubr.bf16.mxu0 0
  %3031 = vmatmul.mubr.bf16.gmra.mrb[0].mxu0 %v2993
  %v3032 = vpop.f32.mrb[0].mxu0
  %v3033 = vadd.f32 %v226, %v3032
  %v3034 = vpop.f32.mrb[0].mxu0
  %v3035 = vpop.f32.mrb[0].mxu0
  %v3036 = vpop.f32.mrb[0].mxu0
  %3037 = vdwg.mxu0
  %3039 = vrot.lane.b32.xlu0 %v2934, 96
  %v3040 = vpop.permute.xlu0 %3039
  %v3042 = vsel %vm372, %v2934, 0
  %v3045 = vsel %vm372, %v3040, 0
  %3047 = vmatprep.subr.bf16.mxu0 0
  %3048 = vmatpush1.bf16.xpose.msra.mxu0 %v3045
  %3049 = vmatprep.subr.bf16.mxu0 0
  %3050 = vmatpush1.bf16.xpose.msra.mxu0 0
  %3051 = vmatprep.subr.bf16.mxu0 0
  %3052 = vmatpush1.bf16.xpose.msra.mxu0 0
  %3053 = vmatprep.subr.bf16.mxu0 0
  %3054 = vmatpush1.bf16.xpose.msra.mxu0 0
  %3055 = vmatprep.subr.bf16.mxu0 0
  %3056 = vmatpush1.bf16.xpose.msra.mxu0 0
  %3057 = vmatprep.subr.bf16.mxu0 0
  %3058 = vmatpush1.bf16.xpose.msra.mxu0 0
  %3059 = vmatprep.subr.bf16.mxu0 0
  %3060 = vmatpush1.bf16.xpose.msra.mxu0 0
  %3061 = vmatprep.subr.bf16.mxu0 0
  %3062 = vmatpush1.bf16.xpose.msra.mxu0 0
  %3063 = vmatprep.subr.bf16.mxu0 0
  %3064 = vmatpush1.bf16.xpose.msra.mxu0 0
  %3065 = vmatprep.subr.bf16.mxu0 0
  %3066 = vmatpush1.bf16.xpose.msra.mxu0 0
  %3067 = vmatprep.subr.bf16.mxu0 0
  %3068 = vmatpush1.bf16.xpose.msra.mxu0 0
  %3069 = vmatprep.subr.bf16.mxu0 0
  %3070 = vmatpush1.bf16.xpose.msra.mxu0 0
  %3071 = vmatprep.subr.bf16.mxu0 0
  %3072 = vmatpush1.bf16.xpose.msra.mxu0 0
  %3073 = vmatprep.subr.bf16.mxu0 0
  %3074 = vmatpush1.bf16.xpose.msra.mxu0 0
  %3075 = vmatprep.subr.bf16.mxu0 0
  %3076 = vmatpush1.bf16.xpose.msra.mxu0 0
  %3077 = vmatprep.subr.bf16.mxu0 0
  %3078 = vmatpush1.bf16.xpose.msra.mxu0 0
  %3079 = vmatprep.mubr.bf16.mxu0 0
  %3080 = vmatmul.mubr.bf16.gmra.mrb[0].mxu0 %v3042
  %v3081 = vpop.f32.mrb[0].mxu0
  %v3082 = vadd.f32 %v230, %v3081
  %v3083 = vpop.f32.mrb[0].mxu0
  %v3084 = vpop.f32.mrb[0].mxu0
  %v3085 = vpop.f32.mrb[0].mxu0
  %3086 = vdwg.mxu0
  %3088 = vrot.lane.b32.xlu0 %v2935, 96
  %v3089 = vpop.permute.xlu0 %3088
  %v3091 = vsel %vm372, %v2935, 0
  %v3094 = vsel %vm372, %v3089, 0
  %3096 = vmatprep.subr.bf16.mxu0 0
  %3097 = vmatpush1.bf16.xpose.msra.mxu0 %v3094
  %3098 = vmatprep.subr.bf16.mxu0 0
  %3099 = vmatpush1.bf16.xpose.msra.mxu0 0
  %3100 = vmatprep.subr.bf16.mxu0 0
  %3101 = vmatpush1.bf16.xpose.msra.mxu0 0
  %3102 = vmatprep.subr.bf16.mxu0 0
  %3103 = vmatpush1.bf16.xpose.msra.mxu0 0
  %3104 = vmatprep.subr.bf16.mxu0 0
  %3105 = vmatpush1.bf16.xpose.msra.mxu0 0
  %3106 = vmatprep.subr.bf16.mxu0 0
  %3107 = vmatpush1.bf16.xpose.msra.mxu0 0
  %3108 = vmatprep.subr.bf16.mxu0 0
  %3109 = vmatpush1.bf16.xpose.msra.mxu0 0
  %3110 = vmatprep.subr.bf16.mxu0 0
  %3111 = vmatpush1.bf16.xpose.msra.mxu0 0
  %3112 = vmatprep.subr.bf16.mxu0 0
  %3113 = vmatpush1.bf16.xpose.msra.mxu0 0
  %3114 = vmatprep.subr.bf16.mxu0 0
  %3115 = vmatpush1.bf16.xpose.msra.mxu0 0
  %3116 = vmatprep.subr.bf16.mxu0 0
  %3117 = vmatpush1.bf16.xpose.msra.mxu0 0
  %3118 = vmatprep.subr.bf16.mxu0 0
  %3119 = vmatpush1.bf16.xpose.msra.mxu0 0
  %3120 = vmatprep.subr.bf16.mxu0 0
  %3121 = vmatpush1.bf16.xpose.msra.mxu0 0
  %3122 = vmatprep.subr.bf16.mxu0 0
  %3123 = vmatpush1.bf16.xpose.msra.mxu0 0
  %3124 = vmatprep.subr.bf16.mxu0 0
  %3125 = vmatpush1.bf16.xpose.msra.mxu0 0
  %3126 = vmatprep.subr.bf16.mxu0 0
  %3127 = vmatpush1.bf16.xpose.msra.mxu0 0
  %3128 = vmatprep.mubr.bf16.mxu0 0
  %3129 = vmatmul.mubr.bf16.gmra.mrb[0].mxu0 %v3091
  %v3130 = vpop.f32.mrb[0].mxu0
  %v3131 = vadd.f32 %v234, %v3130
  %v3132 = vpop.f32.mrb[0].mxu0
  %v3133 = vpop.f32.mrb[0].mxu0
  %v3134 = vpop.f32.mrb[0].mxu0
  %3135 = vdwg.mxu0
  %3137 = vrot.lane.b32.xlu0 %v2936, 96
  %v3138 = vpop.permute.xlu0 %3137
  %v3140 = vsel %vm372, %v2936, 0
  %v3143 = vsel %vm372, %v3138, 0
  %3145 = vmatprep.subr.bf16.mxu0 0
  %3146 = vmatpush1.bf16.xpose.msra.mxu0 %v3143
  %3147 = vmatprep.subr.bf16.mxu0 0
  %3148 = vmatpush1.bf16.xpose.msra.mxu0 0
  %3149 = vmatprep.subr.bf16.mxu0 0
  %3150 = vmatpush1.bf16.xpose.msra.mxu0 0
  %3151 = vmatprep.subr.bf16.mxu0 0
  %3152 = vmatpush1.bf16.xpose.msra.mxu0 0
  %3153 = vmatprep.subr.bf16.mxu0 0
  %3154 = vmatpush1.bf16.xpose.msra.mxu0 0
  %3155 = vmatprep.subr.bf16.mxu0 0
  %3156 = vmatpush1.bf16.xpose.msra.mxu0 0
  %3157 = vmatprep.subr.bf16.mxu0 0
  %3158 = vmatpush1.bf16.xpose.msra.mxu0 0
  %3159 = vmatprep.subr.bf16.mxu0 0
  %3160 = vmatpush1.bf16.xpose.msra.mxu0 0
  %3161 = vmatprep.subr.bf16.mxu0 0
  %3162 = vmatpush1.bf16.xpose.msra.mxu0 0
  %3163 = vmatprep.subr.bf16.mxu0 0
  %3164 = vmatpush1.bf16.xpose.msra.mxu0 0
  %3165 = vmatprep.subr.bf16.mxu0 0
  %3166 = vmatpush1.bf16.xpose.msra.mxu0 0
  %3167 = vmatprep.subr.bf16.mxu0 0
  %3168 = vmatpush1.bf16.xpose.msra.mxu0 0
  %3169 = vmatprep.subr.bf16.mxu0 0
  %3170 = vmatpush1.bf16.xpose.msra.mxu0 0
  %3171 = vmatprep.subr.bf16.mxu0 0
  %3172 = vmatpush1.bf16.xpose.msra.mxu0 0
  %3173 = vmatprep.subr.bf16.mxu0 0
  %3174 = vmatpush1.bf16.xpose.msra.mxu0 0
  %3175 = vmatprep.subr.bf16.mxu0 0
  %3176 = vmatpush1.bf16.xpose.msra.mxu0 0
  %3177 = vmatprep.mubr.bf16.mxu0 0
  %3178 = vmatmul.mubr.bf16.gmra.mrb[0].mxu0 %v3140
  %v3179 = vpop.f32.mrb[0].mxu0
  %v3180 = vadd.f32 %v238, %v3179
  %v3181 = vpop.f32.mrb[0].mxu0
  %v3182 = vpop.f32.mrb[0].mxu0
  %v3183 = vpop.f32.mrb[0].mxu0
  %3184 = vdwg.mxu0
  %3186 = vrot.lane.b32.xlu0 %v2937, 96
  %v3187 = vpop.permute.xlu0 %3186
  %v3189 = vsel %vm372, %v2937, 0
  %v3192 = vsel %vm372, %v3187, 0
  %3194 = vmatprep.subr.bf16.mxu0 0
  %3195 = vmatpush1.bf16.xpose.msra.mxu0 %v3192
  %3196 = vmatprep.subr.bf16.mxu0 0
  %3197 = vmatpush1.bf16.xpose.msra.mxu0 0
  %3198 = vmatprep.subr.bf16.mxu0 0
  %3199 = vmatpush1.bf16.xpose.msra.mxu0 0
  %3200 = vmatprep.subr.bf16.mxu0 0
  %3201 = vmatpush1.bf16.xpose.msra.mxu0 0
  %3202 = vmatprep.subr.bf16.mxu0 0
  %3203 = vmatpush1.bf16.xpose.msra.mxu0 0
  %3204 = vmatprep.subr.bf16.mxu0 0
  %3205 = vmatpush1.bf16.xpose.msra.mxu0 0
  %3206 = vmatprep.subr.bf16.mxu0 0
  %3207 = vmatpush1.bf16.xpose.msra.mxu0 0
  %3208 = vmatprep.subr.bf16.mxu0 0
  %3209 = vmatpush1.bf16.xpose.msra.mxu0 0
  %3210 = vmatprep.subr.bf16.mxu0 0
  %3211 = vmatpush1.bf16.xpose.msra.mxu0 0
  %3212 = vmatprep.subr.bf16.mxu0 0
  %3213 = vmatpush1.bf16.xpose.msra.mxu0 0
  %3214 = vmatprep.subr.bf16.mxu0 0
  %3215 = vmatpush1.bf16.xpose.msra.mxu0 0
  %3216 = vmatprep.subr.bf16.mxu0 0
  %3217 = vmatpush1.bf16.xpose.msra.mxu0 0
  %3218 = vmatprep.subr.bf16.mxu0 0
  %3219 = vmatpush1.bf16.xpose.msra.mxu0 0
  %3220 = vmatprep.subr.bf16.mxu0 0
  %3221 = vmatpush1.bf16.xpose.msra.mxu0 0
  %3222 = vmatprep.subr.bf16.mxu0 0
  %3223 = vmatpush1.bf16.xpose.msra.mxu0 0
  %3224 = vmatprep.subr.bf16.mxu0 0
  %3225 = vmatpush1.bf16.xpose.msra.mxu0 0
  %3226 = vmatprep.mubr.bf16.mxu0 0
  %3227 = vmatmul.mubr.bf16.gmra.mrb[0].mxu0 %v3189
  %v3228 = vpop.f32.mrb[0].mxu0
  %v3229 = vadd.f32 %v242, %v3228
  %v3230 = vpop.f32.mrb[0].mxu0
  %v3231 = vpop.f32.mrb[0].mxu0
  %v3232 = vpop.f32.mrb[0].mxu0
  %3233 = vdwg.mxu0
  %3235 = vrot.lane.b32.xlu0 %v2938, 96
  %v3236 = vpop.permute.xlu0 %3235
  %v3238 = vsel %vm372, %v2938, 0
  %v3241 = vsel %vm372, %v3236, 0
  %3243 = vmatprep.subr.bf16.mxu0 0
  %3244 = vmatpush1.bf16.xpose.msra.mxu0 %v3241
  %3245 = vmatprep.subr.bf16.mxu0 0
  %3246 = vmatpush1.bf16.xpose.msra.mxu0 0
  %3247 = vmatprep.subr.bf16.mxu0 0
  %3248 = vmatpush1.bf16.xpose.msra.mxu0 0
  %3249 = vmatprep.subr.bf16.mxu0 0
  %3250 = vmatpush1.bf16.xpose.msra.mxu0 0
  %3251 = vmatprep.subr.bf16.mxu0 0
  %3252 = vmatpush1.bf16.xpose.msra.mxu0 0
  %3253 = vmatprep.subr.bf16.mxu0 0
  %3254 = vmatpush1.bf16.xpose.msra.mxu0 0
  %3255 = vmatprep.subr.bf16.mxu0 0
  %3256 = vmatpush1.bf16.xpose.msra.mxu0 0
  %3257 = vmatprep.subr.bf16.mxu0 0
  %3258 = vmatpush1.bf16.xpose.msra.mxu0 0
  %3259 = vmatprep.subr.bf16.mxu0 0
  %3260 = vmatpush1.bf16.xpose.msra.mxu0 0
  %3261 = vmatprep.subr.bf16.mxu0 0
  %3262 = vmatpush1.bf16.xpose.msra.mxu0 0
  %3263 = vmatprep.subr.bf16.mxu0 0
  %3264 = vmatpush1.bf16.xpose.msra.mxu0 0
  %3265 = vmatprep.subr.bf16.mxu0 0
  %3266 = vmatpush1.bf16.xpose.msra.mxu0 0
  %3267 = vmatprep.subr.bf16.mxu0 0
  %3268 = vmatpush1.bf16.xpose.msra.mxu0 0
  %3269 = vmatprep.subr.bf16.mxu0 0
  %3270 = vmatpush1.bf16.xpose.msra.mxu0 0
  %3271 = vmatprep.subr.bf16.mxu0 0
  %3272 = vmatpush1.bf16.xpose.msra.mxu0 0
  %3273 = vmatprep.subr.bf16.mxu0 0
  %3274 = vmatpush1.bf16.xpose.msra.mxu0 0
  %3275 = vmatprep.mubr.bf16.mxu0 0
  %3276 = vmatmul.mubr.bf16.gmra.mrb[0].mxu0 %v3238
  %v3277 = vpop.f32.mrb[0].mxu0
  %v3278 = vadd.f32 %v246, %v3277
  %v3279 = vpop.f32.mrb[0].mxu0
  %v3280 = vpop.f32.mrb[0].mxu0
  %v3281 = vpop.f32.mrb[0].mxu0
  %3282 = vdwg.mxu0
  %3284 = vrot.lane.b32.xlu0 %v2939, 96
  %v3285 = vpop.permute.xlu0 %3284
  %v3287 = vsel %vm372, %v2939, 0
  %v3290 = vsel %vm372, %v3285, 0
  %3292 = vmatprep.subr.bf16.mxu0 0
  %3293 = vmatpush1.bf16.xpose.msra.mxu0 %v3290
  %3294 = vmatprep.subr.bf16.mxu0 0
  %3295 = vmatpush1.bf16.xpose.msra.mxu0 0
  %3296 = vmatprep.subr.bf16.mxu0 0
  %3297 = vmatpush1.bf16.xpose.msra.mxu0 0
  %3298 = vmatprep.subr.bf16.mxu0 0
  %3299 = vmatpush1.bf16.xpose.msra.mxu0 0
  %3300 = vmatprep.subr.bf16.mxu0 0
  %3301 = vmatpush1.bf16.xpose.msra.mxu0 0
  %3302 = vmatprep.subr.bf16.mxu0 0
  %3303 = vmatpush1.bf16.xpose.msra.mxu0 0
  %3304 = vmatprep.subr.bf16.mxu0 0
  %3305 = vmatpush1.bf16.xpose.msra.mxu0 0
  %3306 = vmatprep.subr.bf16.mxu0 0
  %3307 = vmatpush1.bf16.xpose.msra.mxu0 0
  %3308 = vmatprep.subr.bf16.mxu0 0
  %3309 = vmatpush1.bf16.xpose.msra.mxu0 0
  %3310 = vmatprep.subr.bf16.mxu0 0
  %3311 = vmatpush1.bf16.xpose.msra.mxu0 0
  %3312 = vmatprep.subr.bf16.mxu0 0
  %3313 = vmatpush1.bf16.xpose.msra.mxu0 0
  %3314 = vmatprep.subr.bf16.mxu0 0
  %3315 = vmatpush1.bf16.xpose.msra.mxu0 0
  %3316 = vmatprep.subr.bf16.mxu0 0
  %3317 = vmatpush1.bf16.xpose.msra.mxu0 0
  %3318 = vmatprep.subr.bf16.mxu0 0
  %3319 = vmatpush1.bf16.xpose.msra.mxu0 0
  %3320 = vmatprep.subr.bf16.mxu0 0
  %3321 = vmatpush1.bf16.xpose.msra.mxu0 0
  %3322 = vmatprep.subr.bf16.mxu0 0
  %3323 = vmatpush1.bf16.xpose.msra.mxu0 0
  %3324 = vmatprep.mubr.bf16.mxu0 0
  %3325 = vmatmul.mubr.bf16.gmra.mrb[0].mxu0 %v3287
  %v3326 = vpop.f32.mrb[0].mxu0
  %v3327 = vadd.f32 %v250, %v3326
  %v3328 = vpop.f32.mrb[0].mxu0
  %v3329 = vpop.f32.mrb[0].mxu0
  %v3330 = vpop.f32.mrb[0].mxu0
  %3331 = vdwg.mxu0
  %v3332 = vsel %vm762, %v2984, -inf
  %3333 = vmax.xlane.f32.xlu0 %v3332
  %v3334 = vpop.xlane.xlu0 %3333
  %v3335 = vsel %vm762, %v3033, -inf
  %3336 = vmax.xlane.f32.xlu0 %v3335
  %v3337 = vpop.xlane.xlu0 %3336
  %v3338 = vsel %vm762, %v3082, -inf
  %3339 = vmax.xlane.f32.xlu0 %v3338
  %v3340 = vpop.xlane.xlu0 %3339
  %v3341 = vsel %vm762, %v3131, -inf
  %3342 = vmax.xlane.f32.xlu0 %v3341
  %v3343 = vpop.xlane.xlu0 %3342
  %v3344 = vsel %vm762, %v3180, -inf
  %3345 = vmax.xlane.f32.xlu0 %v3344
  %v3346 = vpop.xlane.xlu0 %3345
  %v3347 = vsel %vm762, %v3229, -inf
  %3348 = vmax.xlane.f32.xlu0 %v3347
  %v3349 = vpop.xlane.xlu0 %3348
  %v3350 = vsel %vm762, %v3278, -inf
  %3351 = vmax.xlane.f32.xlu0 %v3350
  %v3352 = vpop.xlane.xlu0 %3351
  %v3353 = vsel %vm762, %v3327, -inf
  %3354 = vmax.xlane.f32.xlu0 %v3353
  %v3355 = vpop.xlane.xlu0 %3354
  %v3356 = vsub.f32 %v2984, %v3334
  %v3357 = vsub.f32 %v3033, %v3337
  %v3358 = vsub.f32 %v3082, %v3340
  %v3359 = vsub.f32 %v3131, %v3343
  %v3360 = vsub.f32 %v3180, %v3346
  %v3361 = vsub.f32 %v3229, %v3349
  %v3362 = vsub.f32 %v3278, %v3352
  %v3363 = vsub.f32 %v3327, %v3355
  %v3364 = vmul.f32 %v3356, 1.442695
  %v3365 = vpow.pop %v3364
  %v3366 = vmul.f32 %v3357, 1.442695
  %v3367 = vpow.pop %v3366
  %v3368 = vmul.f32 %v3358, 1.442695
  %v3369 = vpow.pop %v3368
  %v3370 = vmul.f32 %v3359, 1.442695
  %v3371 = vpow.pop %v3370
  %v3372 = vmul.f32 %v3360, 1.442695
  %v3373 = vpow.pop %v3372
  %v3374 = vmul.f32 %v3361, 1.442695
  %v3375 = vpow.pop %v3374
  %v3376 = vmul.f32 %v3362, 1.442695
  %v3377 = vpow.pop %v3376
  %v3378 = vmul.f32 %v3363, 1.442695
  %v3379 = vpow.pop %v3378
  %v3380 = vsel %vm762, %v3365, 0.0
  %3381 = vadd.xlane.f32.xlu0 %v3380
  %v3382 = vpop.xlane.xlu0 %3381
  %v3383 = vsel %vm762, %v3367, 0.0
  %3384 = vadd.xlane.f32.xlu0 %v3383
  %v3385 = vpop.xlane.xlu0 %3384
  %v3386 = vsel %vm762, %v3369, 0.0
  %3387 = vadd.xlane.f32.xlu0 %v3386
  %v3388 = vpop.xlane.xlu0 %3387
  %v3389 = vsel %vm762, %v3371, 0.0
  %3390 = vadd.xlane.f32.xlu0 %v3389
  %v3391 = vpop.xlane.xlu0 %3390
  %v3392 = vsel %vm762, %v3373, 0.0
  %3393 = vadd.xlane.f32.xlu0 %v3392
  %v3394 = vpop.xlane.xlu0 %3393
  %v3395 = vsel %vm762, %v3375, 0.0
  %3396 = vadd.xlane.f32.xlu0 %v3395
  %v3397 = vpop.xlane.xlu0 %3396
  %v3398 = vsel %vm762, %v3377, 0.0
  %3399 = vadd.xlane.f32.xlu0 %v3398
  %v3400 = vpop.xlane.xlu0 %3399
  %v3401 = vsel %vm762, %v3379, 0.0
  %3402 = vadd.xlane.f32.xlu0 %v3401
  %v3403 = vpop.xlane.xlu0 %3402
  %v3404 = vrcp.pop %v3382
  %v3405 = vmul.f32 %v3365, %v3404
  %v3406 = vrcp.pop %v3385
  %v3407 = vmul.f32 %v3367, %v3406
  %v3408 = vrcp.pop %v3388
  %v3409 = vmul.f32 %v3369, %v3408
  %v3410 = vrcp.pop %v3391
  %v3411 = vmul.f32 %v3371, %v3410
  %v3412 = vrcp.pop %v3394
  %v3413 = vmul.f32 %v3373, %v3412
  %v3414 = vrcp.pop %v3397
  %v3415 = vmul.f32 %v3375, %v3414
  %v3416 = vrcp.pop %v3400
  %v3417 = vmul.f32 %v3377, %v3416
  %v3418 = vrcp.pop %v3403
  %v3419 = vmul.f32 %v3379, %v3418
  %v3420 = vpack.c.bf16 %v3405, %v3405
  %v3421 = vpack.c.bf16 %v3407, %v3407
  %v3422 = vpack.c.bf16 %v3409, %v3409
  %v3423 = vpack.c.bf16 %v3411, %v3411
  %v3424 = vpack.c.bf16 %v3413, %v3413
  %v3425 = vpack.c.bf16 %v3415, %v3415
  %v3426 = vpack.c.bf16 %v3417, %v3417
  %v3427 = vpack.c.bf16 %v3419, %v3419
  %3428 = vrot.lane.b32.xlu0 %v2932, 64
  %v3429 = vpop.permute.xlu0 %3428
  %v3431 = vsel %vm762, %v3420, 0
  %v3434 = vsel %vm864, %v3429, 0
  %3436 = vmatprep.subr.bf16.mxu0 0
  %3437 = vmatpush1.bf16.msra.mxu0 %v3434
  %3438 = vmatprep.subr.bf16.mxu0 0
  %3439 = vmatpush1.bf16.msra.mxu0 0
  %3440 = vmatprep.subr.bf16.mxu0 0
  %3441 = vmatpush1.bf16.msra.mxu0 0
  %3442 = vmatprep.subr.bf16.mxu0 0
  %3443 = vmatpush1.bf16.msra.mxu0 0
  %3444 = vmatprep.subr.bf16.mxu0 0
  %3445 = vmatpush1.bf16.msra.mxu0 0
  %3446 = vmatprep.subr.bf16.mxu0 0
  %3447 = vmatpush1.bf16.msra.mxu0 0
  %3448 = vmatprep.subr.bf16.mxu0 0
  %3449 = vmatpush1.bf16.msra.mxu0 0
  %3450 = vmatprep.subr.bf16.mxu0 0
  %3451 = vmatpush1.bf16.msra.mxu0 0
  %3452 = vmatprep.subr.bf16.mxu0 0
  %3453 = vmatpush1.bf16.msra.mxu0 0
  %3454 = vmatprep.subr.bf16.mxu0 0
  %3455 = vmatpush1.bf16.msra.mxu0 0
  %3456 = vmatprep.subr.bf16.mxu0 0
  %3457 = vmatpush1.bf16.msra.mxu0 0
  %3458 = vmatprep.subr.bf16.mxu0 0
  %3459 = vmatpush1.bf16.msra.mxu0 0
  %3460 = vmatprep.subr.bf16.mxu0 0
  %3461 = vmatpush1.bf16.msra.mxu0 0
  %3462 = vmatprep.subr.bf16.mxu0 0
  %3463 = vmatpush1.bf16.msra.mxu0 0
  %3464 = vmatprep.subr.bf16.mxu0 0
  %3465 = vmatpush1.bf16.msra.mxu0 0
  %3466 = vmatprep.subr.bf16.mxu0 0
  %3467 = vmatpush1.bf16.msra.mxu0 0
  %3468 = vmatprep.mubr.bf16.mxu0 0
  %3469 = vmatmul.mubr.bf16.gmra.mrb[0].mxu0 %v3431
  %v3470 = vpop.f32.mrb[0].mxu0
  %v3471 = vadd.f32 0.0, %v3470
  %v3472 = vpop.f32.mrb[0].mxu0
  %v3473 = vpop.f32.mrb[0].mxu0
  %v3474 = vpop.f32.mrb[0].mxu0
  %3475 = vdwg.mxu0
  %3476 = vrot.lane.b32.xlu0 %v2933, 64
  %v3477 = vpop.permute.xlu0 %3476
  %v3479 = vsel %vm762, %v3421, 0
  %v3482 = vsel %vm864, %v3477, 0
  %3484 = vmatprep.subr.bf16.mxu0 0
  %3485 = vmatpush1.bf16.msra.mxu0 %v3482
  %3486 = vmatprep.subr.bf16.mxu0 0
  %3487 = vmatpush1.bf16.msra.mxu0 0
  %3488 = vmatprep.subr.bf16.mxu0 0
  %3489 = vmatpush1.bf16.msra.mxu0 0
  %3490 = vmatprep.subr.bf16.mxu0 0
  %3491 = vmatpush1.bf16.msra.mxu0 0
  %3492 = vmatprep.subr.bf16.mxu0 0
  %3493 = vmatpush1.bf16.msra.mxu0 0
  %3494 = vmatprep.subr.bf16.mxu0 0
  %3495 = vmatpush1.bf16.msra.mxu0 0
  %3496 = vmatprep.subr.bf16.mxu0 0
  %3497 = vmatpush1.bf16.msra.mxu0 0
  %3498 = vmatprep.subr.bf16.mxu0 0
  %3499 = vmatpush1.bf16.msra.mxu0 0
  %3500 = vmatprep.subr.bf16.mxu0 0
  %3501 = vmatpush1.bf16.msra.mxu0 0
  %3502 = vmatprep.subr.bf16.mxu0 0
  %3503 = vmatpush1.bf16.msra.mxu0 0
  %3504 = vmatprep.subr.bf16.mxu0 0
  %3505 = vmatpush1.bf16.msra.mxu0 0
  %3506 = vmatprep.subr.bf16.mxu0 0
  %3507 = vmatpush1.bf16.msra.mxu0 0
  %3508 = vmatprep.subr.bf16.mxu0 0
  %3509 = vmatpush1.bf16.msra.mxu0 0
  %3510 = vmatprep.subr.bf16.mxu0 0
  %3511 = vmatpush1.bf16.msra.mxu0 0
  %3512 = vmatprep.subr.bf16.mxu0 0
  %3513 = vmatpush1.bf16.msra.mxu0 0
  %3514 = vmatprep.subr.bf16.mxu0 0
  %3515 = vmatpush1.bf16.msra.mxu0 0
  %3516 = vmatprep.mubr.bf16.mxu0 0
  %3517 = vmatmul.mubr.bf16.gmra.mrb[0].mxu0 %v3479
  %v3518 = vpop.f32.mrb[0].mxu0
  %v3519 = vadd.f32 0.0, %v3518
  %v3520 = vpop.f32.mrb[0].mxu0
  %v3521 = vpop.f32.mrb[0].mxu0
  %v3522 = vpop.f32.mrb[0].mxu0
  %3523 = vdwg.mxu0
  %3524 = vrot.lane.b32.xlu0 %v2934, 64
  %v3525 = vpop.permute.xlu0 %3524
  %v3527 = vsel %vm762, %v3422, 0
  %v3530 = vsel %vm864, %v3525, 0
  %3532 = vmatprep.subr.bf16.mxu0 0
  %3533 = vmatpush1.bf16.msra.mxu0 %v3530
  %3534 = vmatprep.subr.bf16.mxu0 0
  %3535 = vmatpush1.bf16.msra.mxu0 0
  %3536 = vmatprep.subr.bf16.mxu0 0
  %3537 = vmatpush1.bf16.msra.mxu0 0
  %3538 = vmatprep.subr.bf16.mxu0 0
  %3539 = vmatpush1.bf16.msra.mxu0 0
  %3540 = vmatprep.subr.bf16.mxu0 0
  %3541 = vmatpush1.bf16.msra.mxu0 0
  %3542 = vmatprep.subr.bf16.mxu0 0
  %3543 = vmatpush1.bf16.msra.mxu0 0
  %3544 = vmatprep.subr.bf16.mxu0 0
  %3545 = vmatpush1.bf16.msra.mxu0 0
  %3546 = vmatprep.subr.bf16.mxu0 0
  %3547 = vmatpush1.bf16.msra.mxu0 0
  %3548 = vmatprep.subr.bf16.mxu0 0
  %3549 = vmatpush1.bf16.msra.mxu0 0
  %3550 = vmatprep.subr.bf16.mxu0 0
  %3551 = vmatpush1.bf16.msra.mxu0 0
  %3552 = vmatprep.subr.bf16.mxu0 0
  %3553 = vmatpush1.bf16.msra.mxu0 0
  %3554 = vmatprep.subr.bf16.mxu0 0
  %3555 = vmatpush1.bf16.msra.mxu0 0
  %3556 = vmatprep.subr.bf16.mxu0 0
  %3557 = vmatpush1.bf16.msra.mxu0 0
  %3558 = vmatprep.subr.bf16.mxu0 0
  %3559 = vmatpush1.bf16.msra.mxu0 0
  %3560 = vmatprep.subr.bf16.mxu0 0
  %3561 = vmatpush1.bf16.msra.mxu0 0
  %3562 = vmatprep.subr.bf16.mxu0 0
  %3563 = vmatpush1.bf16.msra.mxu0 0
  %3564 = vmatprep.mubr.bf16.mxu0 0
  %3565 = vmatmul.mubr.bf16.gmra.mrb[0].mxu0 %v3527
  %v3566 = vpop.f32.mrb[0].mxu0
  %v3567 = vadd.f32 0.0, %v3566
  %v3568 = vpop.f32.mrb[0].mxu0
  %v3569 = vpop.f32.mrb[0].mxu0
  %v3570 = vpop.f32.mrb[0].mxu0
  %3571 = vdwg.mxu0
  %3572 = vrot.lane.b32.xlu0 %v2935, 64
  %v3573 = vpop.permute.xlu0 %3572
  %v3575 = vsel %vm762, %v3423, 0
  %v3578 = vsel %vm864, %v3573, 0
  %3580 = vmatprep.subr.bf16.mxu0 0
  %3581 = vmatpush1.bf16.msra.mxu0 %v3578
  %3582 = vmatprep.subr.bf16.mxu0 0
  %3583 = vmatpush1.bf16.msra.mxu0 0
  %3584 = vmatprep.subr.bf16.mxu0 0
  %3585 = vmatpush1.bf16.msra.mxu0 0
  %3586 = vmatprep.subr.bf16.mxu0 0
  %3587 = vmatpush1.bf16.msra.mxu0 0
  %3588 = vmatprep.subr.bf16.mxu0 0
  %3589 = vmatpush1.bf16.msra.mxu0 0
  %3590 = vmatprep.subr.bf16.mxu0 0
  %3591 = vmatpush1.bf16.msra.mxu0 0
  %3592 = vmatprep.subr.bf16.mxu0 0
  %3593 = vmatpush1.bf16.msra.mxu0 0
  %3594 = vmatprep.subr.bf16.mxu0 0
  %3595 = vmatpush1.bf16.msra.mxu0 0
  %3596 = vmatprep.subr.bf16.mxu0 0
  %3597 = vmatpush1.bf16.msra.mxu0 0
  %3598 = vmatprep.subr.bf16.mxu0 0
  %3599 = vmatpush1.bf16.msra.mxu0 0
  %3600 = vmatprep.subr.bf16.mxu0 0
  %3601 = vmatpush1.bf16.msra.mxu0 0
  %3602 = vmatprep.subr.bf16.mxu0 0
  %3603 = vmatpush1.bf16.msra.mxu0 0
  %3604 = vmatprep.subr.bf16.mxu0 0
  %3605 = vmatpush1.bf16.msra.mxu0 0
  %3606 = vmatprep.subr.bf16.mxu0 0
  %3607 = vmatpush1.bf16.msra.mxu0 0
  %3608 = vmatprep.subr.bf16.mxu0 0
  %3609 = vmatpush1.bf16.msra.mxu0 0
  %3610 = vmatprep.subr.bf16.mxu0 0
  %3611 = vmatpush1.bf16.msra.mxu0 0
  %3612 = vmatprep.mubr.bf16.mxu0 0
  %3613 = vmatmul.mubr.bf16.gmra.mrb[0].mxu0 %v3575
  %v3614 = vpop.f32.mrb[0].mxu0
  %v3615 = vadd.f32 0.0, %v3614
  %v3616 = vpop.f32.mrb[0].mxu0
  %v3617 = vpop.f32.mrb[0].mxu0
  %v3618 = vpop.f32.mrb[0].mxu0
  %3619 = vdwg.mxu0
  %3620 = vrot.lane.b32.xlu0 %v2936, 64
  %v3621 = vpop.permute.xlu0 %3620
  %v3623 = vsel %vm762, %v3424, 0
  %v3626 = vsel %vm864, %v3621, 0
  %3628 = vmatprep.subr.bf16.mxu0 0
  %3629 = vmatpush1.bf16.msra.mxu0 %v3626
  %3630 = vmatprep.subr.bf16.mxu0 0
  %3631 = vmatpush1.bf16.msra.mxu0 0
  %3632 = vmatprep.subr.bf16.mxu0 0
  %3633 = vmatpush1.bf16.msra.mxu0 0
  %3634 = vmatprep.subr.bf16.mxu0 0
  %3635 = vmatpush1.bf16.msra.mxu0 0
  %3636 = vmatprep.subr.bf16.mxu0 0
  %3637 = vmatpush1.bf16.msra.mxu0 0
  %3638 = vmatprep.subr.bf16.mxu0 0
  %3639 = vmatpush1.bf16.msra.mxu0 0
  %3640 = vmatprep.subr.bf16.mxu0 0
  %3641 = vmatpush1.bf16.msra.mxu0 0
  %3642 = vmatprep.subr.bf16.mxu0 0
  %3643 = vmatpush1.bf16.msra.mxu0 0
  %3644 = vmatprep.subr.bf16.mxu0 0
  %3645 = vmatpush1.bf16.msra.mxu0 0
  %3646 = vmatprep.subr.bf16.mxu0 0
  %3647 = vmatpush1.bf16.msra.mxu0 0
  %3648 = vmatprep.subr.bf16.mxu0 0
  %3649 = vmatpush1.bf16.msra.mxu0 0
  %3650 = vmatprep.subr.bf16.mxu0 0
  %3651 = vmatpush1.bf16.msra.mxu0 0
  %3652 = vmatprep.subr.bf16.mxu0 0
  %3653 = vmatpush1.bf16.msra.mxu0 0
  %3654 = vmatprep.subr.bf16.mxu0 0
  %3655 = vmatpush1.bf16.msra.mxu0 0
  %3656 = vmatprep.subr.bf16.mxu0 0
  %3657 = vmatpush1.bf16.msra.mxu0 0
  %3658 = vmatprep.subr.bf16.mxu0 0
  %3659 = vmatpush1.bf16.msra.mxu0 0
  %3660 = vmatprep.mubr.bf16.mxu0 0
  %3661 = vmatmul.mubr.bf16.gmra.mrb[0].mxu0 %v3623
  %v3662 = vpop.f32.mrb[0].mxu0
  %v3663 = vadd.f32 0.0, %v3662
  %v3664 = vpop.f32.mrb[0].mxu0
  %v3665 = vpop.f32.mrb[0].mxu0
  %v3666 = vpop.f32.mrb[0].mxu0
  %3667 = vdwg.mxu0
  %3668 = vrot.lane.b32.xlu0 %v2937, 64
  %v3669 = vpop.permute.xlu0 %3668
  %v3671 = vsel %vm762, %v3425, 0
  %v3674 = vsel %vm864, %v3669, 0
  %3676 = vmatprep.subr.bf16.mxu0 0
  %3677 = vmatpush1.bf16.msra.mxu0 %v3674
  %3678 = vmatprep.subr.bf16.mxu0 0
  %3679 = vmatpush1.bf16.msra.mxu0 0
  %3680 = vmatprep.subr.bf16.mxu0 0
  %3681 = vmatpush1.bf16.msra.mxu0 0
  %3682 = vmatprep.subr.bf16.mxu0 0
  %3683 = vmatpush1.bf16.msra.mxu0 0
  %3684 = vmatprep.subr.bf16.mxu0 0
  %3685 = vmatpush1.bf16.msra.mxu0 0
  %3686 = vmatprep.subr.bf16.mxu0 0
  %3687 = vmatpush1.bf16.msra.mxu0 0
  %3688 = vmatprep.subr.bf16.mxu0 0
  %3689 = vmatpush1.bf16.msra.mxu0 0
  %3690 = vmatprep.subr.bf16.mxu0 0
  %3691 = vmatpush1.bf16.msra.mxu0 0
  %3692 = vmatprep.subr.bf16.mxu0 0
  %3693 = vmatpush1.bf16.msra.mxu0 0
  %3694 = vmatprep.subr.bf16.mxu0 0
  %3695 = vmatpush1.bf16.msra.mxu0 0
  %3696 = vmatprep.subr.bf16.mxu0 0
  %3697 = vmatpush1.bf16.msra.mxu0 0
  %3698 = vmatprep.subr.bf16.mxu0 0
  %3699 = vmatpush1.bf16.msra.mxu0 0
  %3700 = vmatprep.subr.bf16.mxu0 0
  %3701 = vmatpush1.bf16.msra.mxu0 0
  %3702 = vmatprep.subr.bf16.mxu0 0
  %3703 = vmatpush1.bf16.msra.mxu0 0
  %3704 = vmatprep.subr.bf16.mxu0 0
  %3705 = vmatpush1.bf16.msra.mxu0 0
  %3706 = vmatprep.subr.bf16.mxu0 0
  %3707 = vmatpush1.bf16.msra.mxu0 0
  %3708 = vmatprep.mubr.bf16.mxu0 0
  %3709 = vmatmul.mubr.bf16.gmra.mrb[0].mxu0 %v3671
  %v3710 = vpop.f32.mrb[0].mxu0
  %v3711 = vadd.f32 0.0, %v3710
  %v3712 = vpop.f32.mrb[0].mxu0
  %v3713 = vpop.f32.mrb[0].mxu0
  %v3714 = vpop.f32.mrb[0].mxu0
  %3715 = vdwg.mxu0
  %3716 = vrot.lane.b32.xlu0 %v2938, 64
  %v3717 = vpop.permute.xlu0 %3716
  %v3719 = vsel %vm762, %v3426, 0
  %v3722 = vsel %vm864, %v3717, 0
  %3724 = vmatprep.subr.bf16.mxu0 0
  %3725 = vmatpush1.bf16.msra.mxu0 %v3722
  %3726 = vmatprep.subr.bf16.mxu0 0
  %3727 = vmatpush1.bf16.msra.mxu0 0
  %3728 = vmatprep.subr.bf16.mxu0 0
  %3729 = vmatpush1.bf16.msra.mxu0 0
  %3730 = vmatprep.subr.bf16.mxu0 0
  %3731 = vmatpush1.bf16.msra.mxu0 0
  %3732 = vmatprep.subr.bf16.mxu0 0
  %3733 = vmatpush1.bf16.msra.mxu0 0
  %3734 = vmatprep.subr.bf16.mxu0 0
  %3735 = vmatpush1.bf16.msra.mxu0 0
  %3736 = vmatprep.subr.bf16.mxu0 0
  %3737 = vmatpush1.bf16.msra.mxu0 0
  %3738 = vmatprep.subr.bf16.mxu0 0
  %3739 = vmatpush1.bf16.msra.mxu0 0
  %3740 = vmatprep.subr.bf16.mxu0 0
  %3741 = vmatpush1.bf16.msra.mxu0 0
  %3742 = vmatprep.subr.bf16.mxu0 0
  %3743 = vmatpush1.bf16.msra.mxu0 0
  %3744 = vmatprep.subr.bf16.mxu0 0
  %3745 = vmatpush1.bf16.msra.mxu0 0
  %3746 = vmatprep.subr.bf16.mxu0 0
  %3747 = vmatpush1.bf16.msra.mxu0 0
  %3748 = vmatprep.subr.bf16.mxu0 0
  %3749 = vmatpush1.bf16.msra.mxu0 0
  %3750 = vmatprep.subr.bf16.mxu0 0
  %3751 = vmatpush1.bf16.msra.mxu0 0
  %3752 = vmatprep.subr.bf16.mxu0 0
  %3753 = vmatpush1.bf16.msra.mxu0 0
  %3754 = vmatprep.subr.bf16.mxu0 0
  %3755 = vmatpush1.bf16.msra.mxu0 0
  %3756 = vmatprep.mubr.bf16.mxu0 0
  %3757 = vmatmul.mubr.bf16.gmra.mrb[0].mxu0 %v3719
  %v3758 = vpop.f32.mrb[0].mxu0
  %v3759 = vadd.f32 0.0, %v3758
  %v3760 = vpop.f32.mrb[0].mxu0
  %v3761 = vpop.f32.mrb[0].mxu0
  %v3762 = vpop.f32.mrb[0].mxu0
  %3763 = vdwg.mxu0
  %3764 = vrot.lane.b32.xlu0 %v2939, 64
  %v3765 = vpop.permute.xlu0 %3764
  %v3767 = vsel %vm762, %v3427, 0
  %v3770 = vsel %vm864, %v3765, 0
  %3772 = vmatprep.subr.bf16.mxu0 0
  %3773 = vmatpush1.bf16.msra.mxu0 %v3770
  %3774 = vmatprep.subr.bf16.mxu0 0
  %3775 = vmatpush1.bf16.msra.mxu0 0
  %3776 = vmatprep.subr.bf16.mxu0 0
  %3777 = vmatpush1.bf16.msra.mxu0 0
  %3778 = vmatprep.subr.bf16.mxu0 0
  %3779 = vmatpush1.bf16.msra.mxu0 0
  %3780 = vmatprep.subr.bf16.mxu0 0
  %3781 = vmatpush1.bf16.msra.mxu0 0
  %3782 = vmatprep.subr.bf16.mxu0 0
  %3783 = vmatpush1.bf16.msra.mxu0 0
  %3784 = vmatprep.subr.bf16.mxu0 0
  %3785 = vmatpush1.bf16.msra.mxu0 0
  %3786 = vmatprep.subr.bf16.mxu0 0
  %3787 = vmatpush1.bf16.msra.mxu0 0
  %3788 = vmatprep.subr.bf16.mxu0 0
  %3789 = vmatpush1.bf16.msra.mxu0 0
  %3790 = vmatprep.subr.bf16.mxu0 0
  %3791 = vmatpush1.bf16.msra.mxu0 0
  %3792 = vmatprep.subr.bf16.mxu0 0
  %3793 = vmatpush1.bf16.msra.mxu0 0
  %3794 = vmatprep.subr.bf16.mxu0 0
  %3795 = vmatpush1.bf16.msra.mxu0 0
  %3796 = vmatprep.subr.bf16.mxu0 0
  %3797 = vmatpush1.bf16.msra.mxu0 0
  %3798 = vmatprep.subr.bf16.mxu0 0
  %3799 = vmatpush1.bf16.msra.mxu0 0
  %3800 = vmatprep.subr.bf16.mxu0 0
  %3801 = vmatpush1.bf16.msra.mxu0 0
  %3802 = vmatprep.subr.bf16.mxu0 0
  %3803 = vmatpush1.bf16.msra.mxu0 0
  %3804 = vmatprep.mubr.bf16.mxu0 0
  %3805 = vmatmul.mubr.bf16.gmra.mrb[0].mxu0 %v3767
  %v3806 = vpop.f32.mrb[0].mxu0
  %v3807 = vadd.f32 0.0, %v3806
  %v3808 = vpop.f32.mrb[0].mxu0
  %v3809 = vpop.f32.mrb[0].mxu0
  %v3810 = vpop.f32.mrb[0].mxu0
  %3811 = vdwg.mxu0
  %3812 = vrot.lane.b32.xlu0 %v2932, 112
  %v3813 = vpop.permute.xlu0 %3812
  %3814 = vrot.lane.b32.xlu0 %v2932, 80
  %v3815 = vpop.permute.xlu0 %3814
  %v3817 = vsel %vm372, %v3813, 0
  %v3820 = vsel %vm372, %v3815, 0
  %3822 = vmatprep.subr.bf16.mxu0 0
  %3823 = vmatpush1.bf16.xpose.msra.mxu0 %v3820
  %3824 = vmatprep.subr.bf16.mxu0 0
  %3825 = vmatpush1.bf16.xpose.msra.mxu0 0
  %3826 = vmatprep.subr.bf16.mxu0 0
  %3827 = vmatpush1.bf16.xpose.msra.mxu0 0
  %3828 = vmatprep.subr.bf16.mxu0 0
  %3829 = vmatpush1.bf16.xpose.msra.mxu0 0
  %3830 = vmatprep.subr.bf16.mxu0 0
  %3831 = vmatpush1.bf16.xpose.msra.mxu0 0
  %3832 = vmatprep.subr.bf16.mxu0 0
  %3833 = vmatpush1.bf16.xpose.msra.mxu0 0
  %3834 = vmatprep.subr.bf16.mxu0 0
  %3835 = vmatpush1.bf16.xpose.msra.mxu0 0
  %3836 = vmatprep.subr.bf16.mxu0 0
  %3837 = vmatpush1.bf16.xpose.msra.mxu0 0
  %3838 = vmatprep.subr.bf16.mxu0 0
  %3839 = vmatpush1.bf16.xpose.msra.mxu0 0
  %3840 = vmatprep.subr.bf16.mxu0 0
  %3841 = vmatpush1.bf16.xpose.msra.mxu0 0
  %3842 = vmatprep.subr.bf16.mxu0 0
  %3843 = vmatpush1.bf16.xpose.msra.mxu0 0
  %3844 = vmatprep.subr.bf16.mxu0 0
  %3845 = vmatpush1.bf16.xpose.msra.mxu0 0
  %3846 = vmatprep.subr.bf16.mxu0 0
  %3847 = vmatpush1.bf16.xpose.msra.mxu0 0
  %3848 = vmatprep.subr.bf16.mxu0 0
  %3849 = vmatpush1.bf16.xpose.msra.mxu0 0
  %3850 = vmatprep.subr.bf16.mxu0 0
  %3851 = vmatpush1.bf16.xpose.msra.mxu0 0
  %3852 = vmatprep.subr.bf16.mxu0 0
  %3853 = vmatpush1.bf16.xpose.msra.mxu0 0
  %3854 = vmatprep.mubr.bf16.mxu0 0
  %3855 = vmatmul.mubr.bf16.gmra.mrb[0].mxu0 %v3817
  %v3856 = vpop.f32.mrb[0].mxu0
  %v3857 = vadd.f32 %v222, %v3856
  %v3858 = vpop.f32.mrb[0].mxu0
  %v3859 = vpop.f32.mrb[0].mxu0
  %v3860 = vpop.f32.mrb[0].mxu0
  %3861 = vdwg.mxu0
  %3862 = vrot.lane.b32.xlu0 %v2933, 112
  %v3863 = vpop.permute.xlu0 %3862
  %3864 = vrot.lane.b32.xlu0 %v2933, 80
  %v3865 = vpop.permute.xlu0 %3864
  %v3867 = vsel %vm372, %v3863, 0
  %v3870 = vsel %vm372, %v3865, 0
  %3872 = vmatprep.subr.bf16.mxu0 0
  %3873 = vmatpush1.bf16.xpose.msra.mxu0 %v3870
  %3874 = vmatprep.subr.bf16.mxu0 0
  %3875 = vmatpush1.bf16.xpose.msra.mxu0 0
  %3876 = vmatprep.subr.bf16.mxu0 0
  %3877 = vmatpush1.bf16.xpose.msra.mxu0 0
  %3878 = vmatprep.subr.bf16.mxu0 0
  %3879 = vmatpush1.bf16.xpose.msra.mxu0 0
  %3880 = vmatprep.subr.bf16.mxu0 0
  %3881 = vmatpush1.bf16.xpose.msra.mxu0 0
  %3882 = vmatprep.subr.bf16.mxu0 0
  %3883 = vmatpush1.bf16.xpose.msra.mxu0 0
  %3884 = vmatprep.subr.bf16.mxu0 0
  %3885 = vmatpush1.bf16.xpose.msra.mxu0 0
  %3886 = vmatprep.subr.bf16.mxu0 0
  %3887 = vmatpush1.bf16.xpose.msra.mxu0 0
  %3888 = vmatprep.subr.bf16.mxu0 0
  %3889 = vmatpush1.bf16.xpose.msra.mxu0 0
  %3890 = vmatprep.subr.bf16.mxu0 0
  %3891 = vmatpush1.bf16.xpose.msra.mxu0 0
  %3892 = vmatprep.subr.bf16.mxu0 0
  %3893 = vmatpush1.bf16.xpose.msra.mxu0 0
  %3894 = vmatprep.subr.bf16.mxu0 0
  %3895 = vmatpush1.bf16.xpose.msra.mxu0 0
  %3896 = vmatprep.subr.bf16.mxu0 0
  %3897 = vmatpush1.bf16.xpose.msra.mxu0 0
  %3898 = vmatprep.subr.bf16.mxu0 0
  %3899 = vmatpush1.bf16.xpose.msra.mxu0 0
  %3900 = vmatprep.subr.bf16.mxu0 0
  %3901 = vmatpush1.bf16.xpose.msra.mxu0 0
  %3902 = vmatprep.subr.bf16.mxu0 0
  %3903 = vmatpush1.bf16.xpose.msra.mxu0 0
  %3904 = vmatprep.mubr.bf16.mxu0 0
  %3905 = vmatmul.mubr.bf16.gmra.mrb[0].mxu0 %v3867
  %v3906 = vpop.f32.mrb[0].mxu0
  %v3907 = vadd.f32 %v226, %v3906
  %v3908 = vpop.f32.mrb[0].mxu0
  %v3909 = vpop.f32.mrb[0].mxu0
  %v3910 = vpop.f32.mrb[0].mxu0
  %3911 = vdwg.mxu0
  %3912 = vrot.lane.b32.xlu0 %v2934, 112
  %v3913 = vpop.permute.xlu0 %3912
  %3914 = vrot.lane.b32.xlu0 %v2934, 80
  %v3915 = vpop.permute.xlu0 %3914
  %v3917 = vsel %vm372, %v3913, 0
  %v3920 = vsel %vm372, %v3915, 0
  %3922 = vmatprep.subr.bf16.mxu0 0
  %3923 = vmatpush1.bf16.xpose.msra.mxu0 %v3920
  %3924 = vmatprep.subr.bf16.mxu0 0
  %3925 = vmatpush1.bf16.xpose.msra.mxu0 0
  %3926 = vmatprep.subr.bf16.mxu0 0
  %3927 = vmatpush1.bf16.xpose.msra.mxu0 0
  %3928 = vmatprep.subr.bf16.mxu0 0
  %3929 = vmatpush1.bf16.xpose.msra.mxu0 0
  %3930 = vmatprep.subr.bf16.mxu0 0
  %3931 = vmatpush1.bf16.xpose.msra.mxu0 0
  %3932 = vmatprep.subr.bf16.mxu0 0
  %3933 = vmatpush1.bf16.xpose.msra.mxu0 0
  %3934 = vmatprep.subr.bf16.mxu0 0
  %3935 = vmatpush1.bf16.xpose.msra.mxu0 0
  %3936 = vmatprep.subr.bf16.mxu0 0
  %3937 = vmatpush1.bf16.xpose.msra.mxu0 0
  %3938 = vmatprep.subr.bf16.mxu0 0
  %3939 = vmatpush1.bf16.xpose.msra.mxu0 0
  %3940 = vmatprep.subr.bf16.mxu0 0
  %3941 = vmatpush1.bf16.xpose.msra.mxu0 0
  %3942 = vmatprep.subr.bf16.mxu0 0
  %3943 = vmatpush1.bf16.xpose.msra.mxu0 0
  %3944 = vmatprep.subr.bf16.mxu0 0
  %3945 = vmatpush1.bf16.xpose.msra.mxu0 0
  %3946 = vmatprep.subr.bf16.mxu0 0
  %3947 = vmatpush1.bf16.xpose.msra.mxu0 0
  %3948 = vmatprep.subr.bf16.mxu0 0
  %3949 = vmatpush1.bf16.xpose.msra.mxu0 0
  %3950 = vmatprep.subr.bf16.mxu0 0
  %3951 = vmatpush1.bf16.xpose.msra.mxu0 0
  %3952 = vmatprep.subr.bf16.mxu0 0
  %3953 = vmatpush1.bf16.xpose.msra.mxu0 0
  %3954 = vmatprep.mubr.bf16.mxu0 0
  %3955 = vmatmul.mubr.bf16.gmra.mrb[0].mxu0 %v3917
  %v3956 = vpop.f32.mrb[0].mxu0
  %v3957 = vadd.f32 %v230, %v3956
  %v3958 = vpop.f32.mrb[0].mxu0
  %v3959 = vpop.f32.mrb[0].mxu0
  %v3960 = vpop.f32.mrb[0].mxu0
  %3961 = vdwg.mxu0
  %3962 = vrot.lane.b32.xlu0 %v2935, 112
  %v3963 = vpop.permute.xlu0 %3962
  %3964 = vrot.lane.b32.xlu0 %v2935, 80
  %v3965 = vpop.permute.xlu0 %3964
  %v3967 = vsel %vm372, %v3963, 0
  %v3970 = vsel %vm372, %v3965, 0
  %3972 = vmatprep.subr.bf16.mxu0 0
  %3973 = vmatpush1.bf16.xpose.msra.mxu0 %v3970
  %3974 = vmatprep.subr.bf16.mxu0 0
  %3975 = vmatpush1.bf16.xpose.msra.mxu0 0
  %3976 = vmatprep.subr.bf16.mxu0 0
  %3977 = vmatpush1.bf16.xpose.msra.mxu0 0
  %3978 = vmatprep.subr.bf16.mxu0 0
  %3979 = vmatpush1.bf16.xpose.msra.mxu0 0
  %3980 = vmatprep.subr.bf16.mxu0 0
  %3981 = vmatpush1.bf16.xpose.msra.mxu0 0
  %3982 = vmatprep.subr.bf16.mxu0 0
  %3983 = vmatpush1.bf16.xpose.msra.mxu0 0
  %3984 = vmatprep.subr.bf16.mxu0 0
  %3985 = vmatpush1.bf16.xpose.msra.mxu0 0
  %3986 = vmatprep.subr.bf16.mxu0 0
  %3987 = vmatpush1.bf16.xpose.msra.mxu0 0
  %3988 = vmatprep.subr.bf16.mxu0 0
  %3989 = vmatpush1.bf16.xpose.msra.mxu0 0
  %3990 = vmatprep.subr.bf16.mxu0 0
  %3991 = vmatpush1.bf16.xpose.msra.mxu0 0
  %3992 = vmatprep.subr.bf16.mxu0 0
  %3993 = vmatpush1.bf16.xpose.msra.mxu0 0
  %3994 = vmatprep.subr.bf16.mxu0 0
  %3995 = vmatpush1.bf16.xpose.msra.mxu0 0
  %3996 = vmatprep.subr.bf16.mxu0 0
  %3997 = vmatpush1.bf16.xpose.msra.mxu0 0
  %3998 = vmatprep.subr.bf16.mxu0 0
  %3999 = vmatpush1.bf16.xpose.msra.mxu0 0
  %4000 = vmatprep.subr.bf16.mxu0 0
  %4001 = vmatpush1.bf16.xpose.msra.mxu0 0
  %4002 = vmatprep.subr.bf16.mxu0 0
  %4003 = vmatpush1.bf16.xpose.msra.mxu0 0
  %4004 = vmatprep.mubr.bf16.mxu0 0
  %4005 = vmatmul.mubr.bf16.gmra.mrb[0].mxu0 %v3967
  %v4006 = vpop.f32.mrb[0].mxu0
  %v4007 = vadd.f32 %v234, %v4006
  %v4008 = vpop.f32.mrb[0].mxu0
  %v4009 = vpop.f32.mrb[0].mxu0
  %v4010 = vpop.f32.mrb[0].mxu0
  %4011 = vdwg.mxu0
  %4012 = vrot.lane.b32.xlu0 %v2936, 112
  %v4013 = vpop.permute.xlu0 %4012
  %4014 = vrot.lane.b32.xlu0 %v2936, 80
  %v4015 = vpop.permute.xlu0 %4014
  %v4017 = vsel %vm372, %v4013, 0
  %v4020 = vsel %vm372, %v4015, 0
  %4022 = vmatprep.subr.bf16.mxu0 0
  %4023 = vmatpush1.bf16.xpose.msra.mxu0 %v4020
  %4024 = vmatprep.subr.bf16.mxu0 0
  %4025 = vmatpush1.bf16.xpose.msra.mxu0 0
  %4026 = vmatprep.subr.bf16.mxu0 0
  %4027 = vmatpush1.bf16.xpose.msra.mxu0 0
  %4028 = vmatprep.subr.bf16.mxu0 0
  %4029 = vmatpush1.bf16.xpose.msra.mxu0 0
  %4030 = vmatprep.subr.bf16.mxu0 0
  %4031 = vmatpush1.bf16.xpose.msra.mxu0 0
  %4032 = vmatprep.subr.bf16.mxu0 0
  %4033 = vmatpush1.bf16.xpose.msra.mxu0 0
  %4034 = vmatprep.subr.bf16.mxu0 0
  %4035 = vmatpush1.bf16.xpose.msra.mxu0 0
  %4036 = vmatprep.subr.bf16.mxu0 0
  %4037 = vmatpush1.bf16.xpose.msra.mxu0 0
  %4038 = vmatprep.subr.bf16.mxu0 0
  %4039 = vmatpush1.bf16.xpose.msra.mxu0 0
  %4040 = vmatprep.subr.bf16.mxu0 0
  %4041 = vmatpush1.bf16.xpose.msra.mxu0 0
  %4042 = vmatprep.subr.bf16.mxu0 0
  %4043 = vmatpush1.bf16.xpose.msra.mxu0 0
  %4044 = vmatprep.subr.bf16.mxu0 0
  %4045 = vmatpush1.bf16.xpose.msra.mxu0 0
  %4046 = vmatprep.subr.bf16.mxu0 0
  %4047 = vmatpush1.bf16.xpose.msra.mxu0 0
  %4048 = vmatprep.subr.bf16.mxu0 0
  %4049 = vmatpush1.bf16.xpose.msra.mxu0 0
  %4050 = vmatprep.subr.bf16.mxu0 0
  %4051 = vmatpush1.bf16.xpose.msra.mxu0 0
  %4052 = vmatprep.subr.bf16.mxu0 0
  %4053 = vmatpush1.bf16.xpose.msra.mxu0 0
  %4054 = vmatprep.mubr.bf16.mxu0 0
  %4055 = vmatmul.mubr.bf16.gmra.mrb[0].mxu0 %v4017
  %v4056 = vpop.f32.mrb[0].mxu0
  %v4057 = vadd.f32 %v238, %v4056
  %v4058 = vpop.f32.mrb[0].mxu0
  %v4059 = vpop.f32.mrb[0].mxu0
  %v4060 = vpop.f32.mrb[0].mxu0
  %4061 = vdwg.mxu0
  %4062 = vrot.lane.b32.xlu0 %v2937, 112
  %v4063 = vpop.permute.xlu0 %4062
  %4064 = vrot.lane.b32.xlu0 %v2937, 80
  %v4065 = vpop.permute.xlu0 %4064
  %v4067 = vsel %vm372, %v4063, 0
  %v4070 = vsel %vm372, %v4065, 0
  %4072 = vmatprep.subr.bf16.mxu0 0
  %4073 = vmatpush1.bf16.xpose.msra.mxu0 %v4070
  %4074 = vmatprep.subr.bf16.mxu0 0
  %4075 = vmatpush1.bf16.xpose.msra.mxu0 0
  %4076 = vmatprep.subr.bf16.mxu0 0
  %4077 = vmatpush1.bf16.xpose.msra.mxu0 0
  %4078 = vmatprep.subr.bf16.mxu0 0
  %4079 = vmatpush1.bf16.xpose.msra.mxu0 0
  %4080 = vmatprep.subr.bf16.mxu0 0
  %4081 = vmatpush1.bf16.xpose.msra.mxu0 0
  %4082 = vmatprep.subr.bf16.mxu0 0
  %4083 = vmatpush1.bf16.xpose.msra.mxu0 0
  %4084 = vmatprep.subr.bf16.mxu0 0
  %4085 = vmatpush1.bf16.xpose.msra.mxu0 0
  %4086 = vmatprep.subr.bf16.mxu0 0
  %4087 = vmatpush1.bf16.xpose.msra.mxu0 0
  %4088 = vmatprep.subr.bf16.mxu0 0
  %4089 = vmatpush1.bf16.xpose.msra.mxu0 0
  %4090 = vmatprep.subr.bf16.mxu0 0
  %4091 = vmatpush1.bf16.xpose.msra.mxu0 0
  %4092 = vmatprep.subr.bf16.mxu0 0
  %4093 = vmatpush1.bf16.xpose.msra.mxu0 0
  %4094 = vmatprep.subr.bf16.mxu0 0
  %4095 = vmatpush1.bf16.xpose.msra.mxu0 0
  %4096 = vmatprep.subr.bf16.mxu0 0
  %4097 = vmatpush1.bf16.xpose.msra.mxu0 0
  %4098 = vmatprep.subr.bf16.mxu0 0
  %4099 = vmatpush1.bf16.xpose.msra.mxu0 0
  %4100 = vmatprep.subr.bf16.mxu0 0
  %4101 = vmatpush1.bf16.xpose.msra.mxu0 0
  %4102 = vmatprep.subr.bf16.mxu0 0
  %4103 = vmatpush1.bf16.xpose.msra.mxu0 0
  %4104 = vmatprep.mubr.bf16.mxu0 0
  %4105 = vmatmul.mubr.bf16.gmra.mrb[0].mxu0 %v4067
  %v4106 = vpop.f32.mrb[0].mxu0
  %v4107 = vadd.f32 %v242, %v4106
  %v4108 = vpop.f32.mrb[0].mxu0
  %v4109 = vpop.f32.mrb[0].mxu0
  %v4110 = vpop.f32.mrb[0].mxu0
  %4111 = vdwg.mxu0
  %4112 = vrot.lane.b32.xlu0 %v2938, 112
  %v4113 = vpop.permute.xlu0 %4112
  %4114 = vrot.lane.b32.xlu0 %v2938, 80
  %v4115 = vpop.permute.xlu0 %4114
  %v4117 = vsel %vm372, %v4113, 0
  %v4120 = vsel %vm372, %v4115, 0
  %4122 = vmatprep.subr.bf16.mxu0 0
  %4123 = vmatpush1.bf16.xpose.msra.mxu0 %v4120
  %4124 = vmatprep.subr.bf16.mxu0 0
  %4125 = vmatpush1.bf16.xpose.msra.mxu0 0
  %4126 = vmatprep.subr.bf16.mxu0 0
  %4127 = vmatpush1.bf16.xpose.msra.mxu0 0
  %4128 = vmatprep.subr.bf16.mxu0 0
  %4129 = vmatpush1.bf16.xpose.msra.mxu0 0
  %4130 = vmatprep.subr.bf16.mxu0 0
  %4131 = vmatpush1.bf16.xpose.msra.mxu0 0
  %4132 = vmatprep.subr.bf16.mxu0 0
  %4133 = vmatpush1.bf16.xpose.msra.mxu0 0
  %4134 = vmatprep.subr.bf16.mxu0 0
  %4135 = vmatpush1.bf16.xpose.msra.mxu0 0
  %4136 = vmatprep.subr.bf16.mxu0 0
  %4137 = vmatpush1.bf16.xpose.msra.mxu0 0
  %4138 = vmatprep.subr.bf16.mxu0 0
  %4139 = vmatpush1.bf16.xpose.msra.mxu0 0
  %4140 = vmatprep.subr.bf16.mxu0 0
  %4141 = vmatpush1.bf16.xpose.msra.mxu0 0
  %4142 = vmatprep.subr.bf16.mxu0 0
  %4143 = vmatpush1.bf16.xpose.msra.mxu0 0
  %4144 = vmatprep.subr.bf16.mxu0 0
  %4145 = vmatpush1.bf16.xpose.msra.mxu0 0
  %4146 = vmatprep.subr.bf16.mxu0 0
  %4147 = vmatpush1.bf16.xpose.msra.mxu0 0
  %4148 = vmatprep.subr.bf16.mxu0 0
  %4149 = vmatpush1.bf16.xpose.msra.mxu0 0
  %4150 = vmatprep.subr.bf16.mxu0 0
  %4151 = vmatpush1.bf16.xpose.msra.mxu0 0
  %4152 = vmatprep.subr.bf16.mxu0 0
  %4153 = vmatpush1.bf16.xpose.msra.mxu0 0
  %4154 = vmatprep.mubr.bf16.mxu0 0
  %4155 = vmatmul.mubr.bf16.gmra.mrb[0].mxu0 %v4117
  %v4156 = vpop.f32.mrb[0].mxu0
  %v4157 = vadd.f32 %v246, %v4156
  %v4158 = vpop.f32.mrb[0].mxu0
  %v4159 = vpop.f32.mrb[0].mxu0
  %v4160 = vpop.f32.mrb[0].mxu0
  %4161 = vdwg.mxu0
  %4162 = vrot.lane.b32.xlu0 %v2939, 112
  %v4163 = vpop.permute.xlu0 %4162
  %4164 = vrot.lane.b32.xlu0 %v2939, 80
  %v4165 = vpop.permute.xlu0 %4164
  %v4167 = vsel %vm372, %v4163, 0
  %v4170 = vsel %vm372, %v4165, 0
  %4172 = vmatprep.subr.bf16.mxu0 0
  %4173 = vmatpush1.bf16.xpose.msra.mxu0 %v4170
  %4174 = vmatprep.subr.bf16.mxu0 0
  %4175 = vmatpush1.bf16.xpose.msra.mxu0 0
  %4176 = vmatprep.subr.bf16.mxu0 0
  %4177 = vmatpush1.bf16.xpose.msra.mxu0 0
  %4178 = vmatprep.subr.bf16.mxu0 0
  %4179 = vmatpush1.bf16.xpose.msra.mxu0 0
  %4180 = vmatprep.subr.bf16.mxu0 0
  %4181 = vmatpush1.bf16.xpose.msra.mxu0 0
  %4182 = vmatprep.subr.bf16.mxu0 0
  %4183 = vmatpush1.bf16.xpose.msra.mxu0 0
  %4184 = vmatprep.subr.bf16.mxu0 0
  %4185 = vmatpush1.bf16.xpose.msra.mxu0 0
  %4186 = vmatprep.subr.bf16.mxu0 0
  %4187 = vmatpush1.bf16.xpose.msra.mxu0 0
  %4188 = vmatprep.subr.bf16.mxu0 0
  %4189 = vmatpush1.bf16.xpose.msra.mxu0 0
  %4190 = vmatprep.subr.bf16.mxu0 0
  %4191 = vmatpush1.bf16.xpose.msra.mxu0 0
  %4192 = vmatprep.subr.bf16.mxu0 0
  %4193 = vmatpush1.bf16.xpose.msra.mxu0 0
  %4194 = vmatprep.subr.bf16.mxu0 0
  %4195 = vmatpush1.bf16.xpose.msra.mxu0 0
  %4196 = vmatprep.subr.bf16.mxu0 0
  %4197 = vmatpush1.bf16.xpose.msra.mxu0 0
  %4198 = vmatprep.subr.bf16.mxu0 0
  %4199 = vmatpush1.bf16.xpose.msra.mxu0 0
  %4200 = vmatprep.subr.bf16.mxu0 0
  %4201 = vmatpush1.bf16.xpose.msra.mxu0 0
  %4202 = vmatprep.subr.bf16.mxu0 0
  %4203 = vmatpush1.bf16.xpose.msra.mxu0 0
  %4204 = vmatprep.mubr.bf16.mxu0 0
  %4205 = vmatmul.mubr.bf16.gmra.mrb[0].mxu0 %v4167
  %v4206 = vpop.f32.mrb[0].mxu0
  %v4207 = vadd.f32 %v250, %v4206
  %v4208 = vpop.f32.mrb[0].mxu0
  %v4209 = vpop.f32.mrb[0].mxu0
  %v4210 = vpop.f32.mrb[0].mxu0
  %4211 = vdwg.mxu0
  %v4212 = vsel %vm762, %v3857, -inf
  %4213 = vmax.xlane.f32.xlu0 %v4212
  %v4214 = vpop.xlane.xlu0 %4213
  %v4215 = vsel %vm762, %v3907, -inf
  %4216 = vmax.xlane.f32.xlu0 %v4215
  %v4217 = vpop.xlane.xlu0 %4216
  %v4218 = vsel %vm762, %v3957, -inf
  %4219 = vmax.xlane.f32.xlu0 %v4218
  %v4220 = vpop.xlane.xlu0 %4219
  %v4221 = vsel %vm762, %v4007, -inf
  %4222 = vmax.xlane.f32.xlu0 %v4221
  %v4223 = vpop.xlane.xlu0 %4222
  %v4224 = vsel %vm762, %v4057, -inf
  %4225 = vmax.xlane.f32.xlu0 %v4224
  %v4226 = vpop.xlane.xlu0 %4225
  %v4227 = vsel %vm762, %v4107, -inf
  %4228 = vmax.xlane.f32.xlu0 %v4227
  %v4229 = vpop.xlane.xlu0 %4228
  %v4230 = vsel %vm762, %v4157, -inf
  %4231 = vmax.xlane.f32.xlu0 %v4230
  %v4232 = vpop.xlane.xlu0 %4231
  %v4233 = vsel %vm762, %v4207, -inf
  %4234 = vmax.xlane.f32.xlu0 %v4233
  %v4235 = vpop.xlane.xlu0 %4234
  %v4236 = vsub.f32 %v3857, %v4214
  %v4237 = vsub.f32 %v3907, %v4217
  %v4238 = vsub.f32 %v3957, %v4220
  %v4239 = vsub.f32 %v4007, %v4223
  %v4240 = vsub.f32 %v4057, %v4226
  %v4241 = vsub.f32 %v4107, %v4229
  %v4242 = vsub.f32 %v4157, %v4232
  %v4243 = vsub.f32 %v4207, %v4235
  %v4244 = vmul.f32 %v4236, 1.442695
  %v4245 = vpow.pop %v4244
  %v4246 = vmul.f32 %v4237, 1.442695
  %v4247 = vpow.pop %v4246
  %v4248 = vmul.f32 %v4238, 1.442695
  %v4249 = vpow.pop %v4248
  %v4250 = vmul.f32 %v4239, 1.442695
  %v4251 = vpow.pop %v4250
  %v4252 = vmul.f32 %v4240, 1.442695
  %v4253 = vpow.pop %v4252
  %v4254 = vmul.f32 %v4241, 1.442695
  %v4255 = vpow.pop %v4254
  %v4256 = vmul.f32 %v4242, 1.442695
  %v4257 = vpow.pop %v4256
  %v4258 = vmul.f32 %v4243, 1.442695
  %v4259 = vpow.pop %v4258
  %v4260 = vsel %vm762, %v4245, 0.0
  %4261 = vadd.xlane.f32.xlu0 %v4260
  %v4262 = vpop.xlane.xlu0 %4261
  %v4263 = vsel %vm762, %v4247, 0.0
  %4264 = vadd.xlane.f32.xlu0 %v4263
  %v4265 = vpop.xlane.xlu0 %4264
  %v4266 = vsel %vm762, %v4249, 0.0
  %4267 = vadd.xlane.f32.xlu0 %v4266
  %v4268 = vpop.xlane.xlu0 %4267
  %v4269 = vsel %vm762, %v4251, 0.0
  %4270 = vadd.xlane.f32.xlu0 %v4269
  %v4271 = vpop.xlane.xlu0 %4270
  %v4272 = vsel %vm762, %v4253, 0.0
  %4273 = vadd.xlane.f32.xlu0 %v4272
  %v4274 = vpop.xlane.xlu0 %4273
  %v4275 = vsel %vm762, %v4255, 0.0
  %4276 = vadd.xlane.f32.xlu0 %v4275
  %v4277 = vpop.xlane.xlu0 %4276
  %v4278 = vsel %vm762, %v4257, 0.0
  %4279 = vadd.xlane.f32.xlu0 %v4278
  %v4280 = vpop.xlane.xlu0 %4279
  %v4281 = vsel %vm762, %v4259, 0.0
  %4282 = vadd.xlane.f32.xlu0 %v4281
  %v4283 = vpop.xlane.xlu0 %4282
  %v4284 = vrcp.pop %v4262
  %v4285 = vmul.f32 %v4245, %v4284
  %v4286 = vrcp.pop %v4265
  %v4287 = vmul.f32 %v4247, %v4286
  %v4288 = vrcp.pop %v4268
  %v4289 = vmul.f32 %v4249, %v4288
  %v4290 = vrcp.pop %v4271
  %v4291 = vmul.f32 %v4251, %v4290
  %v4292 = vrcp.pop %v4274
  %v4293 = vmul.f32 %v4253, %v4292
  %v4294 = vrcp.pop %v4277
  %v4295 = vmul.f32 %v4255, %v4294
  %v4296 = vrcp.pop %v4280
  %v4297 = vmul.f32 %v4257, %v4296
  %v4298 = vrcp.pop %v4283
  %v4299 = vmul.f32 %v4259, %v4298
  %v4300 = vpack.c.bf16 %v4285, %v4285
  %v4301 = vpack.c.bf16 %v4287, %v4287
  %v4302 = vpack.c.bf16 %v4289, %v4289
  %v4303 = vpack.c.bf16 %v4291, %v4291
  %v4304 = vpack.c.bf16 %v4293, %v4293
  %v4305 = vpack.c.bf16 %v4295, %v4295
  %v4306 = vpack.c.bf16 %v4297, %v4297
  %v4307 = vpack.c.bf16 %v4299, %v4299
  %4308 = vrot.lane.b32.xlu0 %v2932, 48
  %v4309 = vpop.permute.xlu0 %4308
  %v4311 = vsel %vm762, %v4300, 0
  %v4314 = vsel %vm864, %v4309, 0
  %4316 = vmatprep.subr.bf16.mxu0 0
  %4317 = vmatpush1.bf16.msra.mxu0 %v4314
  %4318 = vmatprep.subr.bf16.mxu0 0
  %4319 = vmatpush1.bf16.msra.mxu0 0
  %4320 = vmatprep.subr.bf16.mxu0 0
  %4321 = vmatpush1.bf16.msra.mxu0 0
  %4322 = vmatprep.subr.bf16.mxu0 0
  %4323 = vmatpush1.bf16.msra.mxu0 0
  %4324 = vmatprep.subr.bf16.mxu0 0
  %4325 = vmatpush1.bf16.msra.mxu0 0
  %4326 = vmatprep.subr.bf16.mxu0 0
  %4327 = vmatpush1.bf16.msra.mxu0 0
  %4328 = vmatprep.subr.bf16.mxu0 0
  %4329 = vmatpush1.bf16.msra.mxu0 0
  %4330 = vmatprep.subr.bf16.mxu0 0
  %4331 = vmatpush1.bf16.msra.mxu0 0
  %4332 = vmatprep.subr.bf16.mxu0 0
  %4333 = vmatpush1.bf16.msra.mxu0 0
  %4334 = vmatprep.subr.bf16.mxu0 0
  %4335 = vmatpush1.bf16.msra.mxu0 0
  %4336 = vmatprep.subr.bf16.mxu0 0
  %4337 = vmatpush1.bf16.msra.mxu0 0
  %4338 = vmatprep.subr.bf16.mxu0 0
  %4339 = vmatpush1.bf16.msra.mxu0 0
  %4340 = vmatprep.subr.bf16.mxu0 0
  %4341 = vmatpush1.bf16.msra.mxu0 0
  %4342 = vmatprep.subr.bf16.mxu0 0
  %4343 = vmatpush1.bf16.msra.mxu0 0
  %4344 = vmatprep.subr.bf16.mxu0 0
  %4345 = vmatpush1.bf16.msra.mxu0 0
  %4346 = vmatprep.subr.bf16.mxu0 0
  %4347 = vmatpush1.bf16.msra.mxu0 0
  %4348 = vmatprep.mubr.bf16.mxu0 0
  %4349 = vmatmul.mubr.bf16.gmra.mrb[0].mxu0 %v4311
  %v4350 = vpop.f32.mrb[0].mxu0
  %v4351 = vadd.f32 0.0, %v4350
  %v4352 = vpop.f32.mrb[0].mxu0
  %v4353 = vpop.f32.mrb[0].mxu0
  %v4354 = vpop.f32.mrb[0].mxu0
  %4355 = vdwg.mxu0
  %4356 = vrot.lane.b32.xlu0 %v2933, 48
  %v4357 = vpop.permute.xlu0 %4356
  %v4359 = vsel %vm762, %v4301, 0
  %v4362 = vsel %vm864, %v4357, 0
  %4364 = vmatprep.subr.bf16.mxu0 0
  %4365 = vmatpush1.bf16.msra.mxu0 %v4362
  %4366 = vmatprep.subr.bf16.mxu0 0
  %4367 = vmatpush1.bf16.msra.mxu0 0
  %4368 = vmatprep.subr.bf16.mxu0 0
  %4369 = vmatpush1.bf16.msra.mxu0 0
  %4370 = vmatprep.subr.bf16.mxu0 0
  %4371 = vmatpush1.bf16.msra.mxu0 0
  %4372 = vmatprep.subr.bf16.mxu0 0
  %4373 = vmatpush1.bf16.msra.mxu0 0
  %4374 = vmatprep.subr.bf16.mxu0 0
  %4375 = vmatpush1.bf16.msra.mxu0 0
  %4376 = vmatprep.subr.bf16.mxu0 0
  %4377 = vmatpush1.bf16.msra.mxu0 0
  %4378 = vmatprep.subr.bf16.mxu0 0
  %4379 = vmatpush1.bf16.msra.mxu0 0
  %4380 = vmatprep.subr.bf16.mxu0 0
  %4381 = vmatpush1.bf16.msra.mxu0 0
  %4382 = vmatprep.subr.bf16.mxu0 0
  %4383 = vmatpush1.bf16.msra.mxu0 0
  %4384 = vmatprep.subr.bf16.mxu0 0
  %4385 = vmatpush1.bf16.msra.mxu0 0
  %4386 = vmatprep.subr.bf16.mxu0 0
  %4387 = vmatpush1.bf16.msra.mxu0 0
  %4388 = vmatprep.subr.bf16.mxu0 0
  %4389 = vmatpush1.bf16.msra.mxu0 0
  %4390 = vmatprep.subr.bf16.mxu0 0
  %4391 = vmatpush1.bf16.msra.mxu0 0
  %4392 = vmatprep.subr.bf16.mxu0 0
  %4393 = vmatpush1.bf16.msra.mxu0 0
  %4394 = vmatprep.subr.bf16.mxu0 0
  %4395 = vmatpush1.bf16.msra.mxu0 0
  %4396 = vmatprep.mubr.bf16.mxu0 0
  %4397 = vmatmul.mubr.bf16.gmra.mrb[0].mxu0 %v4359
  %v4398 = vpop.f32.mrb[0].mxu0
  %v4399 = vadd.f32 0.0, %v4398
  %v4400 = vpop.f32.mrb[0].mxu0
  %v4401 = vpop.f32.mrb[0].mxu0
  %v4402 = vpop.f32.mrb[0].mxu0
  %4403 = vdwg.mxu0
  %4404 = vrot.lane.b32.xlu0 %v2934, 48
  %v4405 = vpop.permute.xlu0 %4404
  %v4407 = vsel %vm762, %v4302, 0
  %v4410 = vsel %vm864, %v4405, 0
  %4412 = vmatprep.subr.bf16.mxu0 0
  %4413 = vmatpush1.bf16.msra.mxu0 %v4410
  %4414 = vmatprep.subr.bf16.mxu0 0
  %4415 = vmatpush1.bf16.msra.mxu0 0
  %4416 = vmatprep.subr.bf16.mxu0 0
  %4417 = vmatpush1.bf16.msra.mxu0 0
  %4418 = vmatprep.subr.bf16.mxu0 0
  %4419 = vmatpush1.bf16.msra.mxu0 0
  %4420 = vmatprep.subr.bf16.mxu0 0
  %4421 = vmatpush1.bf16.msra.mxu0 0
  %4422 = vmatprep.subr.bf16.mxu0 0
  %4423 = vmatpush1.bf16.msra.mxu0 0
  %4424 = vmatprep.subr.bf16.mxu0 0
  %4425 = vmatpush1.bf16.msra.mxu0 0
  %4426 = vmatprep.subr.bf16.mxu0 0
  %4427 = vmatpush1.bf16.msra.mxu0 0
  %4428 = vmatprep.subr.bf16.mxu0 0
  %4429 = vmatpush1.bf16.msra.mxu0 0
  %4430 = vmatprep.subr.bf16.mxu0 0
  %4431 = vmatpush1.bf16.msra.mxu0 0
  %4432 = vmatprep.subr.bf16.mxu0 0
  %4433 = vmatpush1.bf16.msra.mxu0 0
  %4434 = vmatprep.subr.bf16.mxu0 0
  %4435 = vmatpush1.bf16.msra.mxu0 0
  %4436 = vmatprep.subr.bf16.mxu0 0
  %4437 = vmatpush1.bf16.msra.mxu0 0
  %4438 = vmatprep.subr.bf16.mxu0 0
  %4439 = vmatpush1.bf16.msra.mxu0 0
  %4440 = vmatprep.subr.bf16.mxu0 0
  %4441 = vmatpush1.bf16.msra.mxu0 0
  %4442 = vmatprep.subr.bf16.mxu0 0
  %4443 = vmatpush1.bf16.msra.mxu0 0
  %4444 = vmatprep.mubr.bf16.mxu0 0
  %4445 = vmatmul.mubr.bf16.gmra.mrb[0].mxu0 %v4407
  %v4446 = vpop.f32.mrb[0].mxu0
  %v4447 = vadd.f32 0.0, %v4446
  %v4448 = vpop.f32.mrb[0].mxu0
  %v4449 = vpop.f32.mrb[0].mxu0
  %v4450 = vpop.f32.mrb[0].mxu0
  %4451 = vdwg.mxu0
  %4452 = vrot.lane.b32.xlu0 %v2935, 48
  %v4453 = vpop.permute.xlu0 %4452
  %v4455 = vsel %vm762, %v4303, 0
  %v4458 = vsel %vm864, %v4453, 0
  %4460 = vmatprep.subr.bf16.mxu0 0
  %4461 = vmatpush1.bf16.msra.mxu0 %v4458
  %4462 = vmatprep.subr.bf16.mxu0 0
  %4463 = vmatpush1.bf16.msra.mxu0 0
  %4464 = vmatprep.subr.bf16.mxu0 0
  %4465 = vmatpush1.bf16.msra.mxu0 0
  %4466 = vmatprep.subr.bf16.mxu0 0
  %4467 = vmatpush1.bf16.msra.mxu0 0
  %4468 = vmatprep.subr.bf16.mxu0 0
  %4469 = vmatpush1.bf16.msra.mxu0 0
  %4470 = vmatprep.subr.bf16.mxu0 0
  %4471 = vmatpush1.bf16.msra.mxu0 0
  %4472 = vmatprep.subr.bf16.mxu0 0
  %4473 = vmatpush1.bf16.msra.mxu0 0
  %4474 = vmatprep.subr.bf16.mxu0 0
  %4475 = vmatpush1.bf16.msra.mxu0 0
  %4476 = vmatprep.subr.bf16.mxu0 0
  %4477 = vmatpush1.bf16.msra.mxu0 0
  %4478 = vmatprep.subr.bf16.mxu0 0
  %4479 = vmatpush1.bf16.msra.mxu0 0
  %4480 = vmatprep.subr.bf16.mxu0 0
  %4481 = vmatpush1.bf16.msra.mxu0 0
  %4482 = vmatprep.subr.bf16.mxu0 0
  %4483 = vmatpush1.bf16.msra.mxu0 0
  %4484 = vmatprep.subr.bf16.mxu0 0
  %4485 = vmatpush1.bf16.msra.mxu0 0
  %4486 = vmatprep.subr.bf16.mxu0 0
  %4487 = vmatpush1.bf16.msra.mxu0 0
  %4488 = vmatprep.subr.bf16.mxu0 0
  %4489 = vmatpush1.bf16.msra.mxu0 0
  %4490 = vmatprep.subr.bf16.mxu0 0
  %4491 = vmatpush1.bf16.msra.mxu0 0
  %4492 = vmatprep.mubr.bf16.mxu0 0
  %4493 = vmatmul.mubr.bf16.gmra.mrb[0].mxu0 %v4455
  %v4494 = vpop.f32.mrb[0].mxu0
  %v4495 = vadd.f32 0.0, %v4494
  %v4496 = vpop.f32.mrb[0].mxu0
  %v4497 = vpop.f32.mrb[0].mxu0
  %v4498 = vpop.f32.mrb[0].mxu0
  %4499 = vdwg.mxu0
  %4500 = vrot.lane.b32.xlu0 %v2936, 48
  %v4501 = vpop.permute.xlu0 %4500
  %v4503 = vsel %vm762, %v4304, 0
  %v4506 = vsel %vm864, %v4501, 0
  %4508 = vmatprep.subr.bf16.mxu0 0
  %4509 = vmatpush1.bf16.msra.mxu0 %v4506
  %4510 = vmatprep.subr.bf16.mxu0 0
  %4511 = vmatpush1.bf16.msra.mxu0 0
  %4512 = vmatprep.subr.bf16.mxu0 0
  %4513 = vmatpush1.bf16.msra.mxu0 0
  %4514 = vmatprep.subr.bf16.mxu0 0
  %4515 = vmatpush1.bf16.msra.mxu0 0
  %4516 = vmatprep.subr.bf16.mxu0 0
  %4517 = vmatpush1.bf16.msra.mxu0 0
  %4518 = vmatprep.subr.bf16.mxu0 0
  %4519 = vmatpush1.bf16.msra.mxu0 0
  %4520 = vmatprep.subr.bf16.mxu0 0
  %4521 = vmatpush1.bf16.msra.mxu0 0
  %4522 = vmatprep.subr.bf16.mxu0 0
  %4523 = vmatpush1.bf16.msra.mxu0 0
  %4524 = vmatprep.subr.bf16.mxu0 0
  %4525 = vmatpush1.bf16.msra.mxu0 0
  %4526 = vmatprep.subr.bf16.mxu0 0
  %4527 = vmatpush1.bf16.msra.mxu0 0
  %4528 = vmatprep.subr.bf16.mxu0 0
  %4529 = vmatpush1.bf16.msra.mxu0 0
  %4530 = vmatprep.subr.bf16.mxu0 0
  %4531 = vmatpush1.bf16.msra.mxu0 0
  %4532 = vmatprep.subr.bf16.mxu0 0
  %4533 = vmatpush1.bf16.msra.mxu0 0
  %4534 = vmatprep.subr.bf16.mxu0 0
  %4535 = vmatpush1.bf16.msra.mxu0 0
  %4536 = vmatprep.subr.bf16.mxu0 0
  %4537 = vmatpush1.bf16.msra.mxu0 0
  %4538 = vmatprep.subr.bf16.mxu0 0
  %4539 = vmatpush1.bf16.msra.mxu0 0
  %4540 = vmatprep.mubr.bf16.mxu0 0
  %4541 = vmatmul.mubr.bf16.gmra.mrb[0].mxu0 %v4503
  %v4542 = vpop.f32.mrb[0].mxu0
  %v4543 = vadd.f32 0.0, %v4542
  %v4544 = vpop.f32.mrb[0].mxu0
  %v4545 = vpop.f32.mrb[0].mxu0
  %v4546 = vpop.f32.mrb[0].mxu0
  %4547 = vdwg.mxu0
  %4548 = vrot.lane.b32.xlu0 %v2937, 48
  %v4549 = vpop.permute.xlu0 %4548
  %v4551 = vsel %vm762, %v4305, 0
  %v4554 = vsel %vm864, %v4549, 0
  %4556 = vmatprep.subr.bf16.mxu0 0
  %4557 = vmatpush1.bf16.msra.mxu0 %v4554
  %4558 = vmatprep.subr.bf16.mxu0 0
  %4559 = vmatpush1.bf16.msra.mxu0 0
  %4560 = vmatprep.subr.bf16.mxu0 0
  %4561 = vmatpush1.bf16.msra.mxu0 0
  %4562 = vmatprep.subr.bf16.mxu0 0
  %4563 = vmatpush1.bf16.msra.mxu0 0
  %4564 = vmatprep.subr.bf16.mxu0 0
  %4565 = vmatpush1.bf16.msra.mxu0 0
  %4566 = vmatprep.subr.bf16.mxu0 0
  %4567 = vmatpush1.bf16.msra.mxu0 0
  %4568 = vmatprep.subr.bf16.mxu0 0
  %4569 = vmatpush1.bf16.msra.mxu0 0
  %4570 = vmatprep.subr.bf16.mxu0 0
  %4571 = vmatpush1.bf16.msra.mxu0 0
  %4572 = vmatprep.subr.bf16.mxu0 0
  %4573 = vmatpush1.bf16.msra.mxu0 0
  %4574 = vmatprep.subr.bf16.mxu0 0
  %4575 = vmatpush1.bf16.msra.mxu0 0
  %4576 = vmatprep.subr.bf16.mxu0 0
  %4577 = vmatpush1.bf16.msra.mxu0 0
  %4578 = vmatprep.subr.bf16.mxu0 0
  %4579 = vmatpush1.bf16.msra.mxu0 0
  %4580 = vmatprep.subr.bf16.mxu0 0
  %4581 = vmatpush1.bf16.msra.mxu0 0
  %4582 = vmatprep.subr.bf16.mxu0 0
  %4583 = vmatpush1.bf16.msra.mxu0 0
  %4584 = vmatprep.subr.bf16.mxu0 0
  %4585 = vmatpush1.bf16.msra.mxu0 0
  %4586 = vmatprep.subr.bf16.mxu0 0
  %4587 = vmatpush1.bf16.msra.mxu0 0
  %4588 = vmatprep.mubr.bf16.mxu0 0
  %4589 = vmatmul.mubr.bf16.gmra.mrb[0].mxu0 %v4551
  %v4590 = vpop.f32.mrb[0].mxu0
  %v4591 = vadd.f32 0.0, %v4590
  %v4592 = vpop.f32.mrb[0].mxu0
  %v4593 = vpop.f32.mrb[0].mxu0
  %v4594 = vpop.f32.mrb[0].mxu0
  %4595 = vdwg.mxu0
  %4596 = vrot.lane.b32.xlu0 %v2938, 48
  %v4597 = vpop.permute.xlu0 %4596
  %v4599 = vsel %vm762, %v4306, 0
  %v4602 = vsel %vm864, %v4597, 0
  %4604 = vmatprep.subr.bf16.mxu0 0
  %4605 = vmatpush1.bf16.msra.mxu0 %v4602
  %4606 = vmatprep.subr.bf16.mxu0 0
  %4607 = vmatpush1.bf16.msra.mxu0 0
  %4608 = vmatprep.subr.bf16.mxu0 0
  %4609 = vmatpush1.bf16.msra.mxu0 0
  %4610 = vmatprep.subr.bf16.mxu0 0
  %4611 = vmatpush1.bf16.msra.mxu0 0
  %4612 = vmatprep.subr.bf16.mxu0 0
  %4613 = vmatpush1.bf16.msra.mxu0 0
  %4614 = vmatprep.subr.bf16.mxu0 0
  %4615 = vmatpush1.bf16.msra.mxu0 0
  %4616 = vmatprep.subr.bf16.mxu0 0
  %4617 = vmatpush1.bf16.msra.mxu0 0
  %4618 = vmatprep.subr.bf16.mxu0 0
  %4619 = vmatpush1.bf16.msra.mxu0 0
  %4620 = vmatprep.subr.bf16.mxu0 0
  %4621 = vmatpush1.bf16.msra.mxu0 0
  %4622 = vmatprep.subr.bf16.mxu0 0
  %4623 = vmatpush1.bf16.msra.mxu0 0
  %4624 = vmatprep.subr.bf16.mxu0 0
  %4625 = vmatpush1.bf16.msra.mxu0 0
  %4626 = vmatprep.subr.bf16.mxu0 0
  %4627 = vmatpush1.bf16.msra.mxu0 0
  %4628 = vmatprep.subr.bf16.mxu0 0
  %4629 = vmatpush1.bf16.msra.mxu0 0
  %4630 = vmatprep.subr.bf16.mxu0 0
  %4631 = vmatpush1.bf16.msra.mxu0 0
  %4632 = vmatprep.subr.bf16.mxu0 0
  %4633 = vmatpush1.bf16.msra.mxu0 0
  %4634 = vmatprep.subr.bf16.mxu0 0
  %4635 = vmatpush1.bf16.msra.mxu0 0
  %4636 = vmatprep.mubr.bf16.mxu0 0
  %4637 = vmatmul.mubr.bf16.gmra.mrb[0].mxu0 %v4599
  %v4638 = vpop.f32.mrb[0].mxu0
  %v4639 = vadd.f32 0.0, %v4638
  %v4640 = vpop.f32.mrb[0].mxu0
  %v4641 = vpop.f32.mrb[0].mxu0
  %v4642 = vpop.f32.mrb[0].mxu0
  %4643 = vdwg.mxu0
  %4644 = vrot.lane.b32.xlu0 %v2939, 48
  %v4645 = vpop.permute.xlu0 %4644
  %v4647 = vsel %vm762, %v4307, 0
  %v4650 = vsel %vm864, %v4645, 0
  %4652 = vmatprep.subr.bf16.mxu0 0
  %4653 = vmatpush1.bf16.msra.mxu0 %v4650
  %4654 = vmatprep.subr.bf16.mxu0 0
  %4655 = vmatpush1.bf16.msra.mxu0 0
  %4656 = vmatprep.subr.bf16.mxu0 0
  %4657 = vmatpush1.bf16.msra.mxu0 0
  %4658 = vmatprep.subr.bf16.mxu0 0
  %4659 = vmatpush1.bf16.msra.mxu0 0
  %4660 = vmatprep.subr.bf16.mxu0 0
  %4661 = vmatpush1.bf16.msra.mxu0 0
  %4662 = vmatprep.subr.bf16.mxu0 0
  %4663 = vmatpush1.bf16.msra.mxu0 0
  %4664 = vmatprep.subr.bf16.mxu0 0
  %4665 = vmatpush1.bf16.msra.mxu0 0
  %4666 = vmatprep.subr.bf16.mxu0 0
  %4667 = vmatpush1.bf16.msra.mxu0 0
  %4668 = vmatprep.subr.bf16.mxu0 0
  %4669 = vmatpush1.bf16.msra.mxu0 0
  %4670 = vmatprep.subr.bf16.mxu0 0
  %4671 = vmatpush1.bf16.msra.mxu0 0
  %4672 = vmatprep.subr.bf16.mxu0 0
  %4673 = vmatpush1.bf16.msra.mxu0 0
  %4674 = vmatprep.subr.bf16.mxu0 0
  %4675 = vmatpush1.bf16.msra.mxu0 0
  %4676 = vmatprep.subr.bf16.mxu0 0
  %4677 = vmatpush1.bf16.msra.mxu0 0
  %4678 = vmatprep.subr.bf16.mxu0 0
  %4679 = vmatpush1.bf16.msra.mxu0 0
  %4680 = vmatprep.subr.bf16.mxu0 0
  %4681 = vmatpush1.bf16.msra.mxu0 0
  %4682 = vmatprep.subr.bf16.mxu0 0
  %4683 = vmatpush1.bf16.msra.mxu0 0
  %4684 = vmatprep.mubr.bf16.mxu0 0
  %4685 = vmatmul.mubr.bf16.gmra.mrb[0].mxu0 %v4647
  %v4686 = vpop.f32.mrb[0].mxu0
  %v4687 = vadd.f32 0.0, %v4686
  %v4688 = vpop.f32.mrb[0].mxu0
  %v4689 = vpop.f32.mrb[0].mxu0
  %v4690 = vpop.f32.mrb[0].mxu0
  %4691 = vdwg.mxu0
  %4700 = vrot.lane.b32.xlu0 %v4351, 16
  %v4701 = vpop.permute.xlu0 %4700
  %4702 = vrot.lane.b32.xlu0 %v4399, 16
  %v4703 = vpop.permute.xlu0 %4702
  %4704 = vrot.lane.b32.xlu0 %v4447, 16
  %v4705 = vpop.permute.xlu0 %4704
  %4706 = vrot.lane.b32.xlu0 %v4495, 16
  %v4707 = vpop.permute.xlu0 %4706
  %4708 = vrot.lane.b32.xlu0 %v4543, 16
  %v4709 = vpop.permute.xlu0 %4708
  %4710 = vrot.lane.b32.xlu0 %v4591, 16
  %v4711 = vpop.permute.xlu0 %4710
  %4712 = vrot.lane.b32.xlu0 %v4639, 16
  %v4713 = vpop.permute.xlu0 %4712
  %4714 = vrot.lane.b32.xlu0 %v4687, 16
  %v4715 = vpop.permute.xlu0 %4714
  %v4724 = vsel %vm372, %v3471, %v4701
  %v4725 = vsel %vm372, %v3519, %v4703
  %v4726 = vsel %vm372, %v3567, %v4705
  %v4727 = vsel %vm372, %v3615, %v4707
  %v4728 = vsel %vm372, %v3663, %v4709
  %v4729 = vsel %vm372, %v3711, %v4711
  %v4730 = vsel %vm372, %v3759, %v4713
  %v4731 = vsel %vm372, %v3807, %v4715
  %v4732 = vpack.c.bf16 %v4725, %v4724
  %v4733 = vpack.c.bf16 %v4727, %v4726
  %v4734 = vpack.c.bf16 %v4729, %v4728
  %v4735 = vpack.c.bf16 %v4731, %v4730
  %v4736 = vld [vmem:[%s2834 + $0x4] sm:$0xf]
  %v4737 = vld [vmem:[%s2834 + $0x10] sm:$0xf]
  %v4738 = vld [vmem:[%s2834 + $0x1c] sm:$0xf]
  %v4739 = vld [vmem:[%s2834 + $0x28] sm:$0xf]
  %v4740 = vlaneseq
  %v4741 = vshrl.u32 %v4740, 7
  %v4742 = vsub.s32 1, %v4741
  %v4743 = vrot.slane %v2829, %v4742
  %v4748 = vunpack.c.l.b16 %v4736
  %v4749 = vunpack.c.l.b16 %v4737
  %v4750 = vunpack.c.l.b16 %v4738
  %v4751 = vunpack.c.l.b16 %v4739
  %v4752 = vpack.c.b16 %v4749, %v4748
  %v4753 = vpack.c.b16 %v4751, %v4750
  %v4757 = vsel %vm36, %v4732, 0
  %v4760 = vsel %vm36, %v4733, 0
  %v4763 = vsel %vm36, %v4734, 0
  %v4766 = vsel %vm36, %v4735, 0
  %4768 = vmatprep.subr.bf16.mxu0 0
  %4769 = vmatpush1.bf16.msra.mxu0 %v4752
  %4770 = vmatprep.subr.bf16.mxu0 0
  %4771 = vmatpush1.bf16.msra.mxu0 %v4753
  %4772 = vmatprep.subr.bf16.mxu0 0
  %4773 = vmatpush1.bf16.msra.mxu0 0
  %4774 = vmatprep.subr.bf16.mxu0 0
  %4775 = vmatpush1.bf16.msra.mxu0 0
  %4776 = vmatprep.subr.bf16.mxu0 0
  %4777 = vmatpush1.bf16.msra.mxu0 0
  %4778 = vmatprep.subr.bf16.mxu0 0
  %4779 = vmatpush1.bf16.msra.mxu0 0
  %4780 = vmatprep.subr.bf16.mxu0 0
  %4781 = vmatpush1.bf16.msra.mxu0 0
  %4782 = vmatprep.subr.bf16.mxu0 0
  %4783 = vmatpush1.bf16.msra.mxu0 0
  %4784 = vmatprep.subr.bf16.mxu0 0
  %4785 = vmatpush1.bf16.msra.mxu0 0
  %4786 = vmatprep.subr.bf16.mxu0 0
  %4787 = vmatpush1.bf16.msra.mxu0 0
  %4788 = vmatprep.subr.bf16.mxu0 0
  %4789 = vmatpush1.bf16.msra.mxu0 0
  %4790 = vmatprep.subr.bf16.mxu0 0
  %4791 = vmatpush1.bf16.msra.mxu0 0
  %4792 = vmatprep.subr.bf16.mxu0 0
  %4793 = vmatpush1.bf16.msra.mxu0 0
  %4794 = vmatprep.subr.bf16.mxu0 0
  %4795 = vmatpush1.bf16.msra.mxu0 0
  %4796 = vmatprep.subr.bf16.mxu0 0
  %4797 = vmatpush1.bf16.msra.mxu0 0
  %4798 = vmatprep.subr.bf16.mxu0 0
  %4799 = vmatpush1.bf16.msra.mxu0 0
  %4800 = vmatprep.mubr.bf16.mxu0 0
  %4801 = vmatmul.mubr.bf16.gmra.mrb[0].mxu0 %v4757
  %v4802 = vpop.f32.mrb[0].mxu0
  %v4803 = vadd.f32 %v4743, %v4802
  %v4804 = vpop.f32.mrb[0].mxu0
  %v4805 = vpop.f32.mrb[0].mxu0
  %v4806 = vadd.f32 %v4743, %v4805
  %v4807 = vpop.f32.mrb[0].mxu0
  %4808 = vmatprep.mubr.bf16.mxu0 0
  %4809 = vmatmul.mubr.bf16.gmra.mrb[0].mxu0 %v4760
  %v4810 = vpop.f32.mrb[0].mxu0
  %v4811 = vadd.f32 %v4743, %v4810
  %v4812 = vpop.f32.mrb[0].mxu0
  %v4813 = vpop.f32.mrb[0].mxu0
  %v4814 = vadd.f32 %v4743, %v4813
  %v4815 = vpop.f32.mrb[0].mxu0
  %4816 = vmatprep.mubr.bf16.mxu0 0
  %4817 = vmatmul.mubr.bf16.gmra.mrb[0].mxu0 %v4763
  %v4818 = vpop.f32.mrb[0].mxu0
  %v4819 = vadd.f32 %v4743, %v4818
  %v4820 = vpop.f32.mrb[0].mxu0
  %v4821 = vpop.f32.mrb[0].mxu0
  %v4822 = vadd.f32 %v4743, %v4821
  %v4823 = vpop.f32.mrb[0].mxu0
  %4824 = vmatprep.mubr.bf16.mxu0 0
  %4825 = vmatmul.mubr.bf16.gmra.mrb[0].mxu0 %v4766
  %v4826 = vpop.f32.mrb[0].mxu0
  %v4827 = vadd.f32 %v4743, %v4826
  %v4828 = vpop.f32.mrb[0].mxu0
  %v4829 = vpop.f32.mrb[0].mxu0
  %v4830 = vadd.f32 %v4743, %v4829
  %v4831 = vpop.f32.mrb[0].mxu0
  %4832 = vdwg.mxu0
  %v4833 = vadd.f32 %v2820, %v4803
  %v4834 = vadd.f32 %v2821, %v4806
  %v4835 = vadd.f32 %v2822, %v4811
  %v4836 = vadd.f32 %v2823, %v4814
  %v4837 = vadd.f32 %v2824, %v4819
  %v4838 = vadd.f32 %v2825, %v4822
  %v4839 = vadd.f32 %v2826, %v4827
  %v4840 = vadd.f32 %v2827, %v4830
  %v4841 = vsel %vm36, %v4833, 0.0
  %4842 = vadd.xlane.f32.xlu0 %v4841
  %v4843 = vpop.xlane.xlu0 %4842
  %v4844 = vsel %vm36, %v4834, 0.0
  %4845 = vadd.xlane.f32.xlu0 %v4844
  %v4846 = vpop.xlane.xlu0 %4845
  %v4847 = vsel %vm36, %v4835, 0.0
  %4848 = vadd.xlane.f32.xlu0 %v4847
  %v4849 = vpop.xlane.xlu0 %4848
  %v4850 = vsel %vm36, %v4836, 0.0
  %4851 = vadd.xlane.f32.xlu0 %v4850
  %v4852 = vpop.xlane.xlu0 %4851
  %v4853 = vsel %vm36, %v4837, 0.0
  %4854 = vadd.xlane.f32.xlu0 %v4853
  %v4855 = vpop.xlane.xlu0 %4854
  %v4856 = vsel %vm36, %v4838, 0.0
  %4857 = vadd.xlane.f32.xlu0 %v4856
  %v4858 = vpop.xlane.xlu0 %4857
  %v4859 = vsel %vm36, %v4839, 0.0
  %4860 = vadd.xlane.f32.xlu0 %v4859
  %v4861 = vpop.xlane.xlu0 %4860
  %v4862 = vsel %vm36, %v4840, 0.0
  %4863 = vadd.xlane.f32.xlu0 %v4862
  %v4864 = vpop.xlane.xlu0 %4863
  %v4865 = vmul.f32 %v4843, %v61
  %v4866 = vmul.f32 %v4846, %v61
  %v4867 = vmul.f32 %v4849, %v61
  %v4868 = vmul.f32 %v4852, %v61
  %v4869 = vmul.f32 %v4855, %v61
  %v4870 = vmul.f32 %v4858, %v61
  %v4871 = vmul.f32 %v4861, %v61
  %v4872 = vmul.f32 %v4864, %v61
  %v4873 = vsub.f32 %v4833, %v4865
  %v4874 = vsub.f32 %v4834, %v4866
  %v4875 = vsub.f32 %v4835, %v4867
  %v4876 = vsub.f32 %v4836, %v4868
  %v4877 = vsub.f32 %v4837, %v4869
  %v4878 = vsub.f32 %v4838, %v4870
  %v4879 = vsub.f32 %v4839, %v4871
  %v4880 = vsub.f32 %v4840, %v4872
  %v4881 = vmul.f32 %v4873, %v4873
  %v4882 = vmul.f32 %v4874, %v4874
  %v4883 = vmul.f32 %v4875, %v4875
  %v4884 = vmul.f32 %v4876, %v4876
  %v4885 = vmul.f32 %v4877, %v4877
  %v4886 = vmul.f32 %v4878, %v4878
  %v4887 = vmul.f32 %v4879, %v4879
  %v4888 = vmul.f32 %v4880, %v4880
  %v4889 = vsel %vm36, %v4881, 0.0
  %4890 = vadd.xlane.f32.xlu0 %v4889
  %v4891 = vpop.xlane.xlu0 %4890
  %v4892 = vsel %vm36, %v4882, 0.0
  %4893 = vadd.xlane.f32.xlu0 %v4892
  %v4894 = vpop.xlane.xlu0 %4893
  %v4895 = vsel %vm36, %v4883, 0.0
  %4896 = vadd.xlane.f32.xlu0 %v4895
  %v4897 = vpop.xlane.xlu0 %4896
  %v4898 = vsel %vm36, %v4884, 0.0
  %4899 = vadd.xlane.f32.xlu0 %v4898
  %v4900 = vpop.xlane.xlu0 %4899
  %v4901 = vsel %vm36, %v4885, 0.0
  %4902 = vadd.xlane.f32.xlu0 %v4901
  %v4903 = vpop.xlane.xlu0 %4902
  %v4904 = vsel %vm36, %v4886, 0.0
  %4905 = vadd.xlane.f32.xlu0 %v4904
  %v4906 = vpop.xlane.xlu0 %4905
  %v4907 = vsel %vm36, %v4887, 0.0
  %4908 = vadd.xlane.f32.xlu0 %v4907
  %v4909 = vpop.xlane.xlu0 %4908
  %v4910 = vsel %vm36, %v4888, 0.0
  %4911 = vadd.xlane.f32.xlu0 %v4910
  %v4912 = vpop.xlane.xlu0 %4911
  %v4913 = vmul.f32 %v4891, %v61
  %v4914 = vmul.f32 %v4894, %v61
  %v4915 = vmul.f32 %v4897, %v61
  %v4916 = vmul.f32 %v4900, %v61
  %v4917 = vmul.f32 %v4903, %v61
  %v4918 = vmul.f32 %v4906, %v61
  %v4919 = vmul.f32 %v4909, %v61
  %v4920 = vmul.f32 %v4912, %v61
  %v4921 = vadd.f32 %v4913, 1e-12
  %v4922 = vadd.f32 %v4914, 1e-12
  %v4923 = vadd.f32 %v4915, 1e-12
  %v4924 = vadd.f32 %v4916, 1e-12
  %v4925 = vadd.f32 %v4917, 1e-12
  %v4926 = vadd.f32 %v4918, 1e-12
  %v4927 = vadd.f32 %v4919, 1e-12
  %v4928 = vadd.f32 %v4920, 1e-12
  %v4929 = vrsqrt.pop %v4921
  %v4930 = vrsqrt.pop %v4922
  %v4931 = vrsqrt.pop %v4923
  %v4932 = vrsqrt.pop %v4924
  %v4933 = vrsqrt.pop %v4925
  %v4934 = vrsqrt.pop %v4926
  %v4935 = vrsqrt.pop %v4927
  %v4936 = vrsqrt.pop %v4928
  %v4937 = vmul.f32 %v4873, %v4929
  %v4938 = vmul.f32 %v4874, %v4930
  %v4939 = vmul.f32 %v4875, %v4931
  %v4940 = vmul.f32 %v4876, %v4932
  %v4941 = vmul.f32 %v4877, %v4933
  %v4942 = vmul.f32 %v4878, %v4934
  %v4943 = vmul.f32 %v4879, %v4935
  %v4944 = vmul.f32 %v4880, %v4936
  %v4945 = vlaneseq
  %v4946 = vshrl.u32 %v4945, 7
  %v4947 = vsub.s32 2, %v4946
  %v4948 = vrot.slane %v2829, %v4947
  %v4949 = vmul.f32 %v4937, %v4948
  %v4950 = vmul.f32 %v4938, %v4948
  %v4951 = vmul.f32 %v4939, %v4948
  %v4952 = vmul.f32 %v4940, %v4948
  %v4953 = vmul.f32 %v4941, %v4948
  %v4954 = vmul.f32 %v4942, %v4948
  %v4955 = vmul.f32 %v4943, %v4948
  %v4956 = vmul.f32 %v4944, %v4948
  %v4957 = vlaneseq
  %v4958 = vshrl.u32 %v4957, 7
  %v4959 = vsub.s32 3, %v4958
  %v4960 = vrot.slane %v2829, %v4959
  %v4961 = vadd.f32 %v4949, %v4960
  %v4962 = vadd.f32 %v4950, %v4960
  %v4963 = vadd.f32 %v4951, %v4960
  %v4964 = vadd.f32 %v4952, %v4960
  %v4965 = vadd.f32 %v4953, %v4960
  %v4966 = vadd.f32 %v4954, %v4960
  %v4967 = vadd.f32 %v4955, %v4960
  %v4968 = vadd.f32 %v4956, %v4960
  %v4969 = vpack.c.bf16 %v4962, %v4961
  %v4970 = vpack.c.bf16 %v4964, %v4963
  %v4971 = vpack.c.bf16 %v4966, %v4965
  %v4972 = vpack.c.bf16 %v4968, %v4967
  %v4973 = vld [vmem:[%s2834 + $0x8] sm:$0xf]
  %v4974 = vld [vmem:[%s2834 + $0x14] sm:$0xf]
  %v4975 = vld [vmem:[%s2834 + $0x20] sm:$0xf]
  %v4976 = vld [vmem:[%s2834 + $0x2c] sm:$0xf]
  %v4977 = vlaneseq
  %v4978 = vshrl.u32 %v4977, 7
  %v4979 = vsub.s32 4, %v4978
  %v4980 = vrot.slane %v2829, %v4979
  %v4985 = vunpack.c.l.b16 %v4973
  %v4986 = vunpack.c.l.b16 %v4974
  %v4987 = vunpack.c.l.b16 %v4975
  %v4988 = vunpack.c.l.b16 %v4976
  %v4989 = vpack.c.b16 %v4986, %v4985
  %v4990 = vpack.c.b16 %v4988, %v4987
  %v4994 = vsel %vm36, %v4969, 0
  %v4997 = vsel %vm36, %v4970, 0
  %v5000 = vsel %vm36, %v4971, 0
  %v5003 = vsel %vm36, %v4972, 0
  %5005 = vmatprep.subr.bf16.mxu0 0
  %5006 = vmatpush1.bf16.msra.mxu0 %v4989
  %5007 = vmatprep.subr.bf16.mxu0 0
  %5008 = vmatpush1.bf16.msra.mxu0 %v4990
  %5009 = vmatprep.subr.bf16.mxu0 0
  %5010 = vmatpush1.bf16.msra.mxu0 0
  %5011 = vmatprep.subr.bf16.mxu0 0
  %5012 = vmatpush1.bf16.msra.mxu0 0
  %5013 = vmatprep.subr.bf16.mxu0 0
  %5014 = vmatpush1.bf16.msra.mxu0 0
  %5015 = vmatprep.subr.bf16.mxu0 0
  %5016 = vmatpush1.bf16.msra.mxu0 0
  %5017 = vmatprep.subr.bf16.mxu0 0
  %5018 = vmatpush1.bf16.msra.mxu0 0
  %5019 = vmatprep.subr.bf16.mxu0 0
  %5020 = vmatpush1.bf16.msra.mxu0 0
  %5021 = vmatprep.subr.bf16.mxu0 0
  %5022 = vmatpush1.bf16.msra.mxu0 0
  %5023 = vmatprep.subr.bf16.mxu0 0
  %5024 = vmatpush1.bf16.msra.mxu0 0
  %5025 = vmatprep.subr.bf16.mxu0 0
  %5026 = vmatpush1.bf16.msra.mxu0 0
  %5027 = vmatprep.subr.bf16.mxu0 0
  %5028 = vmatpush1.bf16.msra.mxu0 0
  %5029 = vmatprep.subr.bf16.mxu0 0
  %5030 = vmatpush1.bf16.msra.mxu0 0
  %5031 = vmatprep.subr.bf16.mxu0 0
  %5032 = vmatpush1.bf16.msra.mxu0 0
  %5033 = vmatprep.subr.bf16.mxu0 0
  %5034 = vmatpush1.bf16.msra.mxu0 0
  %5035 = vmatprep.subr.bf16.mxu0 0
  %5036 = vmatpush1.bf16.msra.mxu0 0
  %5037 = vmatprep.mubr.bf16.mxu0 0
  %5038 = vmatmul.mubr.bf16.gmra.mrb[0].mxu0 %v4994
  %v5039 = vpop.f32.mrb[0].mxu0
  %v5040 = vadd.f32 %v4980, %v5039
  %v5041 = vpop.f32.mrb[0].mxu0
  %v5042 = vpop.f32.mrb[0].mxu0
  %v5043 = vadd.f32 %v4980, %v5042
  %v5044 = vpop.f32.mrb[0].mxu0
  %5045 = vmatprep.mubr.bf16.mxu0 0
  %5046 = vmatmul.mubr.bf16.gmra.mrb[0].mxu0 %v4997
  %v5047 = vpop.f32.mrb[0].mxu0
  %v5048 = vadd.f32 %v4980, %v5047
  %v5049 = vpop.f32.mrb[0].mxu0
  %v5050 = vpop.f32.mrb[0].mxu0
  %v5051 = vadd.f32 %v4980, %v5050
  %v5052 = vpop.f32.mrb[0].mxu0
  %5053 = vmatprep.mubr.bf16.mxu0 0
  %5054 = vmatmul.mubr.bf16.gmra.mrb[0].mxu0 %v5000
  %v5055 = vpop.f32.mrb[0].mxu0
  %v5056 = vadd.f32 %v4980, %v5055
  %v5057 = vpop.f32.mrb[0].mxu0
  %v5058 = vpop.f32.mrb[0].mxu0
  %v5059 = vadd.f32 %v4980, %v5058
  %v5060 = vpop.f32.mrb[0].mxu0
  %5061 = vmatprep.mubr.bf16.mxu0 0
  %5062 = vmatmul.mubr.bf16.gmra.mrb[0].mxu0 %v5003
  %v5063 = vpop.f32.mrb[0].mxu0
  %v5064 = vadd.f32 %v4980, %v5063
  %v5065 = vpop.f32.mrb[0].mxu0
  %v5066 = vpop.f32.mrb[0].mxu0
  %v5067 = vadd.f32 %v4980, %v5066
  %v5068 = vpop.f32.mrb[0].mxu0
  %5069 = vdwg.mxu0
  %v5070 = vmul.f32 %v5040, %v5040
  %v5071 = vmul.f32 %v5043, %v5043
  %v5072 = vmul.f32 %v5048, %v5048
  %v5073 = vmul.f32 %v5051, %v5051
  %v5074 = vmul.f32 %v5056, %v5056
  %v5075 = vmul.f32 %v5059, %v5059
  %v5076 = vmul.f32 %v5064, %v5064
  %v5077 = vmul.f32 %v5067, %v5067
  %v5078 = vmul.f32 %v5040, %v5070
  %v5079 = vmul.f32 %v5043, %v5071
  %v5080 = vmul.f32 %v5048, %v5072
  %v5081 = vmul.f32 %v5051, %v5073
  %v5082 = vmul.f32 %v5056, %v5074
  %v5083 = vmul.f32 %v5059, %v5075
  %v5084 = vmul.f32 %v5064, %v5076
  %v5085 = vmul.f32 %v5067, %v5077
  %v5086 = vmul.f32 %v5078, 0.044715
  %v5087 = vmul.f32 %v5079, 0.044715
  %v5088 = vmul.f32 %v5080, 0.044715
  %v5089 = vmul.f32 %v5081, 0.044715
  %v5090 = vmul.f32 %v5082, 0.044715
  %v5091 = vmul.f32 %v5083, 0.044715
  %v5092 = vmul.f32 %v5084, 0.044715
  %v5093 = vmul.f32 %v5085, 0.044715
  %v5094 = vadd.f32 %v5040, %v5086
  %v5095 = vadd.f32 %v5043, %v5087
  %v5096 = vadd.f32 %v5048, %v5088
  %v5097 = vadd.f32 %v5051, %v5089
  %v5098 = vadd.f32 %v5056, %v5090
  %v5099 = vadd.f32 %v5059, %v5091
  %v5100 = vadd.f32 %v5064, %v5092
  %v5101 = vadd.f32 %v5067, %v5093
  %v5102 = vmul.f32 %v5094, 0.7978846
  %v5103 = vmul.f32 %v5095, 0.7978846
  %v5104 = vmul.f32 %v5096, 0.7978846
  %v5105 = vmul.f32 %v5097, 0.7978846
  %v5106 = vmul.f32 %v5098, 0.7978846
  %v5107 = vmul.f32 %v5099, 0.7978846
  %v5108 = vmul.f32 %v5100, 0.7978846
  %v5109 = vmul.f32 %v5101, 0.7978846
  %v5110 = vtanh.pop %v5102
  %v5111 = vtanh.pop %v5103
  %v5112 = vtanh.pop %v5104
  %v5113 = vtanh.pop %v5105
  %v5114 = vtanh.pop %v5106
  %v5115 = vtanh.pop %v5107
  %v5116 = vtanh.pop %v5108
  %v5117 = vtanh.pop %v5109
  %v5118 = vadd.f32 %v5110, 1.0
  %v5119 = vadd.f32 %v5111, 1.0
  %v5120 = vadd.f32 %v5112, 1.0
  %v5121 = vadd.f32 %v5113, 1.0
  %v5122 = vadd.f32 %v5114, 1.0
  %v5123 = vadd.f32 %v5115, 1.0
  %v5124 = vadd.f32 %v5116, 1.0
  %v5125 = vadd.f32 %v5117, 1.0
  %v5126 = vmul.f32 %v5118, 0.5
  %v5127 = vmul.f32 %v5119, 0.5
  %v5128 = vmul.f32 %v5120, 0.5
  %v5129 = vmul.f32 %v5121, 0.5
  %v5130 = vmul.f32 %v5122, 0.5
  %v5131 = vmul.f32 %v5123, 0.5
  %v5132 = vmul.f32 %v5124, 0.5
  %v5133 = vmul.f32 %v5125, 0.5
  %v5134 = vmul.f32 %v5040, %v5126
  %v5135 = vmul.f32 %v5043, %v5127
  %v5136 = vmul.f32 %v5048, %v5128
  %v5137 = vmul.f32 %v5051, %v5129
  %v5138 = vmul.f32 %v5056, %v5130
  %v5139 = vmul.f32 %v5059, %v5131
  %v5140 = vmul.f32 %v5064, %v5132
  %v5141 = vmul.f32 %v5067, %v5133
  %v5142 = vpack.c.bf16 %v5135, %v5134
  %v5143 = vpack.c.bf16 %v5137, %v5136
  %v5144 = vpack.c.bf16 %v5139, %v5138
  %v5145 = vpack.c.bf16 %v5141, %v5140
  %s5146 = scalar_lea.vmem %s3, 32
  %v5147 = vld [vmem:[%s5146] sm:$0xf]
  %v5148 = vld [vmem:[%s5146 + $0x4] sm:$0xf]
  %v5149 = vld [vmem:[%s5146 + $0x8] sm:$0xf]
  %v5150 = vld [vmem:[%s5146 + $0xc] sm:$0xf]
  %v5151 = vld [vmem:[%s5146 + $0x10] sm:$0xf]
  %v5152 = vld [vmem:[%s5146 + $0x14] sm:$0xf]
  %v5153 = vld [vmem:[%s5146 + $0x18] sm:$0xf]
  %v5154 = vld [vmem:[%s5146 + $0x1c] sm:$0xf]
  %v5155 = vlaneseq
  %v5156 = vshrl.u32 %v5155, 7
  %v5157 = vsub.s32 5, %v5156
  %v5158 = vrot.slane %v2829, %v5157
  %v5167 = vunpack.c.l.b16 %v5147
  %v5168 = vunpack.c.l.b16 %v5148
  %v5169 = vunpack.c.l.b16 %v5149
  %v5170 = vunpack.c.l.b16 %v5150
  %v5171 = vunpack.c.l.b16 %v5151
  %v5172 = vunpack.c.l.b16 %v5152
  %v5173 = vunpack.c.l.b16 %v5153
  %v5174 = vunpack.c.l.b16 %v5154
  %v5175 = vpack.c.b16 %v5168, %v5167
  %v5176 = vpack.c.b16 %v5170, %v5169
  %v5177 = vpack.c.b16 %v5172, %v5171
  %v5178 = vpack.c.b16 %v5174, %v5173
  %v5184 = vsel %vm2614, %v5142, 0
  %v5187 = vsel %vm2614, %v5143, 0
  %v5190 = vsel %vm2614, %v5144, 0
  %v5193 = vsel %vm2614, %v5145, 0
  %5195 = vmatprep.subr.bf16.mxu0 0
  %5196 = vmatpush1.bf16.msra.mxu0 %v5175
  %5197 = vmatprep.subr.bf16.mxu0 0
  %5198 = vmatpush1.bf16.msra.mxu0 %v5176
  %5199 = vmatprep.subr.bf16.mxu0 0
  %5200 = vmatpush1.bf16.msra.mxu0 %v5177
  %5201 = vmatprep.subr.bf16.mxu0 0
  %5202 = vmatpush1.bf16.msra.mxu0 %v5178
  %5203 = vmatprep.subr.bf16.mxu0 0
  %5204 = vmatpush1.bf16.msra.mxu0 0
  %5205 = vmatprep.subr.bf16.mxu0 0
  %5206 = vmatpush1.bf16.msra.mxu0 0
  %5207 = vmatprep.subr.bf16.mxu0 0
  %5208 = vmatpush1.bf16.msra.mxu0 0
  %5209 = vmatprep.subr.bf16.mxu0 0
  %5210 = vmatpush1.bf16.msra.mxu0 0
  %5211 = vmatprep.subr.bf16.mxu0 0
  %5212 = vmatpush1.bf16.msra.mxu0 0
  %5213 = vmatprep.subr.bf16.mxu0 0
  %5214 = vmatpush1.bf16.msra.mxu0 0
  %5215 = vmatprep.subr.bf16.mxu0 0
  %5216 = vmatpush1.bf16.msra.mxu0 0
  %5217 = vmatprep.subr.bf16.mxu0 0
  %5218 = vmatpush1.bf16.msra.mxu0 0
  %5219 = vmatprep.subr.bf16.mxu0 0
  %5220 = vmatpush1.bf16.msra.mxu0 0
  %5221 = vmatprep.subr.bf16.mxu0 0
  %5222 = vmatpush1.bf16.msra.mxu0 0
  %5223 = vmatprep.subr.bf16.mxu0 0
  %5224 = vmatpush1.bf16.msra.mxu0 0
  %5225 = vmatprep.subr.bf16.mxu0 0
  %5226 = vmatpush1.bf16.msra.mxu0 0
  %5227 = vmatprep.mubr.bf16.mxu0 0
  %5228 = vmatmul.mubr.bf16.gmra.mrb[0].mxu0 %v5184
  %v5229 = vpop.f32.mrb[0].mxu0
  %v5230 = vadd.f32 %v5158, %v5229
  %v5231 = vpop.f32.mrb[0].mxu0
  %v5232 = vpop.f32.mrb[0].mxu0
  %v5233 = vadd.f32 %v5158, %v5232
  %v5234 = vpop.f32.mrb[0].mxu0
  %5235 = vmatprep.mubr.bf16.mxu0 0
  %5236 = vmatmul.mubr.bf16.gmra.mrb[0].mxu0 %v5187
  %v5237 = vpop.f32.mrb[0].mxu0
  %v5238 = vadd.f32 %v5158, %v5237
  %v5239 = vpop.f32.mrb[0].mxu0
  %v5240 = vpop.f32.mrb[0].mxu0
  %v5241 = vadd.f32 %v5158, %v5240
  %v5242 = vpop.f32.mrb[0].mxu0
  %5243 = vmatprep.mubr.bf16.mxu0 0
  %5244 = vmatmul.mubr.bf16.gmra.mrb[0].mxu0 %v5190
  %v5245 = vpop.f32.mrb[0].mxu0
  %v5246 = vadd.f32 %v5158, %v5245
  %v5247 = vpop.f32.mrb[0].mxu0
  %v5248 = vpop.f32.mrb[0].mxu0
  %v5249 = vadd.f32 %v5158, %v5248
  %v5250 = vpop.f32.mrb[0].mxu0
  %5251 = vmatprep.mubr.bf16.mxu0 0
  %5252 = vmatmul.mubr.bf16.gmra.mrb[0].mxu0 %v5193
  %v5253 = vpop.f32.mrb[0].mxu0
  %v5254 = vadd.f32 %v5158, %v5253
  %v5255 = vpop.f32.mrb[0].mxu0
  %v5256 = vpop.f32.mrb[0].mxu0
  %v5257 = vadd.f32 %v5158, %v5256
  %v5258 = vpop.f32.mrb[0].mxu0
  %5259 = vdwg.mxu0
  %v5260 = vadd.f32 %v4961, %v5230
  %v5261 = vadd.f32 %v4962, %v5233
  %v5262 = vadd.f32 %v4963, %v5238
  %v5263 = vadd.f32 %v4964, %v5241
  %v5264 = vadd.f32 %v4965, %v5246
  %v5265 = vadd.f32 %v4966, %v5249
  %v5266 = vadd.f32 %v4967, %v5254
  %v5267 = vadd.f32 %v4968, %v5257
  %v5268 = vsel %vm36, %v5260, 0.0
  %5269 = vadd.xlane.f32.xlu0 %v5268
  %v5270 = vpop.xlane.xlu0 %5269
  %v5271 = vsel %vm36, %v5261, 0.0
  %5272 = vadd.xlane.f32.xlu0 %v5271
  %v5273 = vpop.xlane.xlu0 %5272
  %v5274 = vsel %vm36, %v5262, 0.0
  %5275 = vadd.xlane.f32.xlu0 %v5274
  %v5276 = vpop.xlane.xlu0 %5275
  %v5277 = vsel %vm36, %v5263, 0.0
  %5278 = vadd.xlane.f32.xlu0 %v5277
  %v5279 = vpop.xlane.xlu0 %5278
  %v5280 = vsel %vm36, %v5264, 0.0
  %5281 = vadd.xlane.f32.xlu0 %v5280
  %v5282 = vpop.xlane.xlu0 %5281
  %v5283 = vsel %vm36, %v5265, 0.0
  %5284 = vadd.xlane.f32.xlu0 %v5283
  %v5285 = vpop.xlane.xlu0 %5284
  %v5286 = vsel %vm36, %v5266, 0.0
  %5287 = vadd.xlane.f32.xlu0 %v5286
  %v5288 = vpop.xlane.xlu0 %5287
  %v5289 = vsel %vm36, %v5267, 0.0
  %5290 = vadd.xlane.f32.xlu0 %v5289
  %v5291 = vpop.xlane.xlu0 %5290
  %v5292 = vmul.f32 %v5270, %v61
  %v5293 = vmul.f32 %v5273, %v61
  %v5294 = vmul.f32 %v5276, %v61
  %v5295 = vmul.f32 %v5279, %v61
  %v5296 = vmul.f32 %v5282, %v61
  %v5297 = vmul.f32 %v5285, %v61
  %v5298 = vmul.f32 %v5288, %v61
  %v5299 = vmul.f32 %v5291, %v61
  %v5300 = vsub.f32 %v5260, %v5292
  %v5301 = vsub.f32 %v5261, %v5293
  %v5302 = vsub.f32 %v5262, %v5294
  %v5303 = vsub.f32 %v5263, %v5295
  %v5304 = vsub.f32 %v5264, %v5296
  %v5305 = vsub.f32 %v5265, %v5297
  %v5306 = vsub.f32 %v5266, %v5298
  %v5307 = vsub.f32 %v5267, %v5299
  %v5308 = vmul.f32 %v5300, %v5300
  %v5309 = vmul.f32 %v5301, %v5301
  %v5310 = vmul.f32 %v5302, %v5302
  %v5311 = vmul.f32 %v5303, %v5303
  %v5312 = vmul.f32 %v5304, %v5304
  %v5313 = vmul.f32 %v5305, %v5305
  %v5314 = vmul.f32 %v5306, %v5306
  %v5315 = vmul.f32 %v5307, %v5307
  %v5316 = vsel %vm36, %v5308, 0.0
  %5317 = vadd.xlane.f32.xlu0 %v5316
  %v5318 = vpop.xlane.xlu0 %5317
  %v5319 = vsel %vm36, %v5309, 0.0
  %5320 = vadd.xlane.f32.xlu0 %v5319
  %v5321 = vpop.xlane.xlu0 %5320
  %v5322 = vsel %vm36, %v5310, 0.0
  %5323 = vadd.xlane.f32.xlu0 %v5322
  %v5324 = vpop.xlane.xlu0 %5323
  %v5325 = vsel %vm36, %v5311, 0.0
  %5326 = vadd.xlane.f32.xlu0 %v5325
  %v5327 = vpop.xlane.xlu0 %5326
  %v5328 = vsel %vm36, %v5312, 0.0
  %5329 = vadd.xlane.f32.xlu0 %v5328
  %v5330 = vpop.xlane.xlu0 %5329
  %v5331 = vsel %vm36, %v5313, 0.0
  %5332 = vadd.xlane.f32.xlu0 %v5331
  %v5333 = vpop.xlane.xlu0 %5332
  %v5334 = vsel %vm36, %v5314, 0.0
  %5335 = vadd.xlane.f32.xlu0 %v5334
  %v5336 = vpop.xlane.xlu0 %5335
  %v5337 = vsel %vm36, %v5315, 0.0
  %5338 = vadd.xlane.f32.xlu0 %v5337
  %v5339 = vpop.xlane.xlu0 %5338
  %v5340 = vmul.f32 %v5318, %v61
  %v5341 = vmul.f32 %v5321, %v61
  %v5342 = vmul.f32 %v5324, %v61
  %v5343 = vmul.f32 %v5327, %v61
  %v5344 = vmul.f32 %v5330, %v61
  %v5345 = vmul.f32 %v5333, %v61
  %v5346 = vmul.f32 %v5336, %v61
  %v5347 = vmul.f32 %v5339, %v61
  %v5348 = vadd.f32 %v5340, 1e-12
  %v5349 = vadd.f32 %v5341, 1e-12
  %v5350 = vadd.f32 %v5342, 1e-12
  %v5351 = vadd.f32 %v5343, 1e-12
  %v5352 = vadd.f32 %v5344, 1e-12
  %v5353 = vadd.f32 %v5345, 1e-12
  %v5354 = vadd.f32 %v5346, 1e-12
  %v5355 = vadd.f32 %v5347, 1e-12
  %v5356 = vrsqrt.pop %v5348
  %v5357 = vrsqrt.pop %v5349
  %v5358 = vrsqrt.pop %v5350
  %v5359 = vrsqrt.pop %v5351
  %v5360 = vrsqrt.pop %v5352
  %v5361 = vrsqrt.pop %v5353
  %v5362 = vrsqrt.pop %v5354
  %v5363 = vrsqrt.pop %v5355
  %v5364 = vmul.f32 %v5300, %v5356
  %v5365 = vmul.f32 %v5301, %v5357
  %v5366 = vmul.f32 %v5302, %v5358
  %v5367 = vmul.f32 %v5303, %v5359
  %v5368 = vmul.f32 %v5304, %v5360
  %v5369 = vmul.f32 %v5305, %v5361
  %v5370 = vmul.f32 %v5306, %v5362
  %v5371 = vmul.f32 %v5307, %v5363
  %v5372 = vlaneseq
  %v5373 = vshrl.u32 %v5372, 7
  %v5374 = vsub.s32 6, %v5373
  %v5375 = vrot.slane %v2829, %v5374
  %v5376 = vmul.f32 %v5364, %v5375
  %v5377 = vmul.f32 %v5365, %v5375
  %v5378 = vmul.f32 %v5366, %v5375
  %v5379 = vmul.f32 %v5367, %v5375
  %v5380 = vmul.f32 %v5368, %v5375
  %v5381 = vmul.f32 %v5369, %v5375
  %v5382 = vmul.f32 %v5370, %v5375
  %v5383 = vmul.f32 %v5371, %v5375
  %v5384 = vlaneseq
  %v5385 = vshrl.u32 %v5384, 7
  %v5386 = vsub.s32 7, %v5385
  %v5387 = vrot.slane %v2829, %v5386
  %v5388 = vadd.f32 %v5376, %v5387
  %v5389 = vadd.f32 %v5377, %v5387
  %v5390 = vadd.f32 %v5378, %v5387
  %v5391 = vadd.f32 %v5379, %v5387
  %v5392 = vadd.f32 %v5380, %v5387
  %v5393 = vadd.f32 %v5381, %v5387
  %v5394 = vadd.f32 %v5382, %v5387
  %v5395 = vadd.f32 %v5383, %v5387
  %v5396 = vpack.c.bf16 %v5388, %v5388
  %v5397 = vpack.c.bf16 %v5389, %v5389
  %v5398 = vpack.c.bf16 %v5390, %v5390
  %v5399 = vpack.c.bf16 %v5391, %v5391
  %v5400 = vpack.c.bf16 %v5392, %v5392
  %v5401 = vpack.c.bf16 %v5393, %v5393
  %v5402 = vpack.c.bf16 %v5394, %v5394
  %v5403 = vpack.c.bf16 %v5395, %v5395
  %v5404 = vld [vmem:[%s4] sm:$0xf]
  %v5405 = vld [vmem:[%s4 + $0x4] sm:$0xf]
  %v5406 = vld [vmem:[%s4 + $0x8] sm:$0xf]
  %v5407 = vld [vmem:[%s4 + $0xc] sm:$0xf]
  %v5408 = vlaneseq
  %v5409 = vshrl.u32 %v5408, 7
  %v5410 = vsub.s32 2, %v5409
  %v5411 = vrot.slane %v27, %v5410
  %v5420 = vunpack.c.l.b16 %v5396
  %v5421 = vunpack.c.l.b16 %v5397
  %v5422 = vunpack.c.l.b16 %v5398
  %v5423 = vunpack.c.l.b16 %v5399
  %v5424 = vunpack.c.l.b16 %v5400
  %v5425 = vunpack.c.l.b16 %v5401
  %v5426 = vunpack.c.l.b16 %v5402
  %v5427 = vunpack.c.l.b16 %v5403
  %v5428 = vrot.slane %v5421, 7
  %vm5429 = vcmask 1041409
  %v5430 = vsel %vm5429, %v5428, %v5420
  %v5431 = vrot.slane %v5422, 6
  %vm5432 = vcmask 1042434
  %v5433 = vsel %vm5432, %v5431, %v5430
  %v5434 = vrot.slane %v5423, 5
  %vm5435 = vcmask 1043459
  %v5436 = vsel %vm5435, %v5434, %v5433
  %v5437 = vrot.slane %v5424, 4
  %vm5438 = vcmask 1044484
  %v5439 = vsel %vm5438, %v5437, %v5436
  %v5440 = vrot.slane %v5425, 3
  %vm5441 = vcmask 1045509
  %v5442 = vsel %vm5441, %v5440, %v5439
  %v5443 = vrot.slane %v5426, 2
  %vm5444 = vcmask 1046534
  %v5445 = vsel %vm5444, %v5443, %v5442
  %v5446 = vrot.slane %v5427, 1
  %vm5447 = vcmask 1047559
  %v5448 = vsel %vm5447, %v5446, %v5445
  %v5449 = vpack.c.b16 %v5448, %v5448
  %v5454 = vunpack.c.l.b16 %v5404
  %v5455 = vunpack.c.l.b16 %v5405
  %v5456 = vunpack.c.l.b16 %v5406
  %v5457 = vunpack.c.l.b16 %v5407
  %v5458 = vpack.c.b16 %v5455, %v5454
  %v5459 = vpack.c.b16 %v5457, %v5456
  %v5463 = vsel %vm36, %v5449, 0
  %5465 = vmatprep.subr.bf16.mxu0 0
  %5466 = vmatpush1.bf16.msra.mxu0 %v5458
  %5467 = vmatprep.subr.bf16.mxu0 0
  %5468 = vmatpush1.bf16.msra.mxu0 %v5459
  %5469 = vmatprep.subr.bf16.mxu0 0
  %5470 = vmatpush1.bf16.msra.mxu0 0
  %5471 = vmatprep.subr.bf16.mxu0 0
  %5472 = vmatpush1.bf16.msra.mxu0 0
  %5473 = vmatprep.subr.bf16.mxu0 0
  %5474 = vmatpush1.bf16.msra.mxu0 0
  %5475 = vmatprep.subr.bf16.mxu0 0
  %5476 = vmatpush1.bf16.msra.mxu0 0
  %5477 = vmatprep.subr.bf16.mxu0 0
  %5478 = vmatpush1.bf16.msra.mxu0 0
  %5479 = vmatprep.subr.bf16.mxu0 0
  %5480 = vmatpush1.bf16.msra.mxu0 0
  %5481 = vmatprep.subr.bf16.mxu0 0
  %5482 = vmatpush1.bf16.msra.mxu0 0
  %5483 = vmatprep.subr.bf16.mxu0 0
  %5484 = vmatpush1.bf16.msra.mxu0 0
  %5485 = vmatprep.subr.bf16.mxu0 0
  %5486 = vmatpush1.bf16.msra.mxu0 0
  %5487 = vmatprep.subr.bf16.mxu0 0
  %5488 = vmatpush1.bf16.msra.mxu0 0
  %5489 = vmatprep.subr.bf16.mxu0 0
  %5490 = vmatpush1.bf16.msra.mxu0 0
  %5491 = vmatprep.subr.bf16.mxu0 0
  %5492 = vmatpush1.bf16.msra.mxu0 0
  %5493 = vmatprep.subr.bf16.mxu0 0
  %5494 = vmatpush1.bf16.msra.mxu0 0
  %5495 = vmatprep.subr.bf16.mxu0 0
  %5496 = vmatpush1.bf16.msra.mxu0 0
  %5497 = vmatprep.mubr.bf16.mxu0 0
  %5498 = vmatmul.mubr.bf16.gmra.mrb[0].mxu0 %v5463
  %v5499 = vpop.f32.mrb[0].mxu0
  %v5500 = vadd.f32 %v5411, %v5499
  %v5501 = vpop.f32.mrb[0].mxu0
  %v5502 = vpop.f32.mrb[0].mxu0
  %v5503 = vpop.f32.mrb[0].mxu0
  %5504 = vdwg.mxu0
  %v5505 = vtanh.pop %v5500
  %v5506 = vlaneseq
  %v5507 = vshrl.u32 %v5506, 7
  %v5508 = vsub.s32 3, %v5507
  %v5509 = vrot.slane %v27, %v5508
  %v5510 = vmul.f32 %v5505, %v5509
  %v5511 = vsel %vm36, %v5510, 0.0
  %5512 = vadd.xlane.f32.xlu0 %v5511
  %v5513 = vpop.xlane.xlu0 %5512
  %v5514 = vlaneseq
  %v5515 = vshrl.u32 %v5514, 7
  %v5516 = vsub.s32 4, %v5515
  %v5517 = vrot.slane %v27, %v5516
  %v5518 = vadd.f32 %v5513, %v5517
  %vm5519 = vcmask 7168
  %5520 = vst.msk [vmem:[%s7] sm:$0xff] %vm5519, %v5518
  // Predicated region
  $region30: #{multiple_choice_forward.1} parent=0 // pred_check
    _
  $region31: #{multiple_choice_forward.1} parent=0 // pred_check_branch
    %5522 = sbr.rel (0) target = $region33
  $region32: #{multiple_choice_forward.1} parent=0 // pred_region
    _
  $region33: #{multiple_choice_forward.1} parent=0 // pred_fallthru
    _
  // Predicated region
  $region34: #{multiple_choice_forward.1} parent=0 // pred_check
    _
  $region35: #{multiple_choice_forward.1} parent=0 // pred_check_branch
    %5524 = sbr.rel (0) target = $region37
  $region36: #{multiple_choice_forward.1} parent=0 // pred_region
    _
  $region37: #{multiple_choice_forward.1} parent=0 // pred_fallthru
    _

</llo_original>
